<compile_context>
chip_gen: v5e
topology: v5e:2x2
jax: 0.10.0
libtpu: 0.0.40
codegen_flags: <defaults>
</compile_context>

<pallas_src>
import functools

import jax
import jax.numpy as jnp
from jax.experimental import pallas as pl
from jax.experimental.pallas import tpu as pltpu


LATENT = 36
LANE = 128          # lane-group width used to align the mu|logvar split


def _round_up(a, b):
    return (a + b - 1) // b * b


# ----------------------------------------------------------------------------
# Fused VAE forward kernel
# ----------------------------------------------------------------------------
def _vae_fused_kernel(x_ref, eps_ref,
                      w1_ref, b1_ref, w2_ref, b2_ref,
                      wml_ref, bml_ref,
                      w4_ref, b4_ref, w5_ref, b5_ref, w6_ref, b6_ref,
                      recon_ref, ml_ref):
    f32 = jnp.float32
    bf16 = jnp.bfloat16

    # ---- encoder_common: Linear(784,400)+ReLU, Linear(400,100)+ReLU --------
    # x and weights are bf16 MXU operands; accumulate + elementwise in f32.
    h = jnp.dot(x_ref[...], w1_ref[...], preferred_element_type=f32) + b1_ref[...]
    h = jnp.maximum(h, 0.0)
    h = jnp.dot(h.astype(bf16), w2_ref[...], preferred_element_type=f32) + b2_ref[...]
    h = jnp.maximum(h, 0.0)

    # ---- encoder_mu | encoder_logvar: one (100, 256) lane-aligned GEMM -----
    # mu lives in lanes [0, 36), logvar in lanes [128, 164); the rest is zero.
    ml = jnp.dot(h.astype(bf16), wml_ref[...], preferred_element_type=f32) + bml_ref[...]
    mu_slab = ml[:, :LANE]        # lane-group-aligned slice (no lane shift)
    lv_slab = ml[:, LANE:]

    # ---- reparametrize: z = eps * exp(0.5*logvar) + mu (EUP epilogue) ------
    # Padded lanes: eps=0, logvar=0, mu=0  =>  z padded lanes are exactly 0.
    z = eps_ref[...] * jnp.exp(0.5 * lv_slab) + mu_slab

    # ---- decoder: Linear(36,100)+ReLU, Linear(100,400)+ReLU,
    #               Linear(400,784)+Tanh  (first weight zero-padded on K) ----
    d = jnp.dot(z.astype(bf16), w4_ref[...], preferred_element_type=f32) + b4_ref[...]
    d = jnp.maximum(d, 0.0)
    d = jnp.dot(d.astype(bf16), w5_ref[...], preferred_element_type=f32) + b5_ref[...]
    d = jnp.maximum(d, 0.0)
    d = jnp.dot(d.astype(bf16), w6_ref[...], preferred_element_type=f32) + b6_ref[...]
    d = jnp.tanh(d)

    recon_ref[...] = d.astype(recon_ref.dtype)      # lane-dense (bm, 784)
    ml_ref[...] = ml.astype(ml_ref.dtype)           # lane-dense (bm, 256)


# ----------------------------------------------------------------------------
# Wrapper
# ----------------------------------------------------------------------------
def vae_forward(params, x, eps, *, block_m=256):
    """x: (N, 784), eps: (N, 36) -> (recon (N,784), mu (N,36), logvar (N,36))."""
    f32 = jnp.float32
    bf16 = jnp.bfloat16

    x = x.reshape(-1, 784).astype(f32)
    n = x.shape[0]

    # Batch padding policy: large M tile, pad N up to a multiple of it
    # (never a tiny-divisor fallback).  bm stays a multiple of 8 (sublane).
    bm = min(block_m, _round_up(n, 8))
    n_pad = _round_up(n, bm)

    x_p = jnp.pad(x, ((0, n_pad - n), (0, 0))).astype(bf16)
    eps_p = jnp.zeros((n_pad, LANE), f32).at[:n, :LATENT].set(eps.astype(f32))

    # PyTorch (out, in) -> (in, out), bf16 MXU operands, biases stay f32.
    w1 = params["e1_w"].T.astype(bf16)                       # (784, 400)
    w2 = params["e2_w"].T.astype(bf16)                       # (400, 100)
    # mu|logvar fused & lane-group aligned: mu -> [0,36), logvar -> [128,164).
    wml = jnp.zeros((100, 2 * LANE), f32)
    wml = wml.at[:, :LATENT].set(params["mu_w"].T)
    wml = wml.at[:, LANE:LANE + LATENT].set(params["lv_w"].T)
    wml = wml.astype(bf16)                                    # (100, 256)
    bml = jnp.zeros((2 * LANE,), f32)
    bml = bml.at[:LATENT].set(params["mu_b"])
    bml = bml.at[LANE:LANE + LATENT].set(params["lv_b"])
    # Decoder first layer: zero-pad K from 36 to 128 (padded z lanes are 0).
    w4 = jnp.zeros((LANE, 100), f32).at[:LATENT, :].set(params["d1_w"].T).astype(bf16)
    w5 = params["d2_w"].T.astype(bf16)                        # (100, 400)
    w6 = params["d3_w"].T.astype(bf16)                        # (400, 784)

    weights = [
        w1, params["e1_b"].reshape(1, -1).astype(f32),
        w2, params["e2_b"].reshape(1, -1).astype(f32),
        wml, bml.reshape(1, -1),
        w4, params["d1_b"].reshape(1, -1).astype(f32),
        w5, params["d2_b"].reshape(1, -1).astype(f32),
        w6, params["d3_b"].reshape(1, -1).astype(f32),
    ]

    grid = (n_pad // bm,)

    def row_map(i):
        return (i, 0)

    def const_map(i):
        return (0, 0)

    in_specs = [
        pl.BlockSpec((bm, 784), row_map),        # x tile (bf16)
        pl.BlockSpec((bm, LANE), row_map),       # eps tile (f32, lane-padded)
    ] + [
        # Grid-invariant weights: fetched once, single-buffered.
        pl.BlockSpec(w.shape, const_map, pipeline_mode=pl.Buffered(1))
        for w in weights
    ]

    out_specs = (
        pl.BlockSpec((bm, 784), row_map),        # recon (lane-dense 784 wide)
        pl.BlockSpec((bm, 2 * LANE), row_map),   # mu|logvar slab (256 wide)
    )
    out_shape = (
        jax.ShapeDtypeStruct((n_pad, 784), f32),
        jax.ShapeDtypeStruct((n_pad, 2 * LANE), f32),
    )

    weight_bytes = sum(int(w.size) * w.dtype.itemsize for w in weights)
    io_bytes_per_step = bm * (784 * 2 + LANE * 4 + 784 * 4 + 2 * LANE * 4)
    # Explicit scoped-VMEM budget: weights (single-buffered) + double-buffered
    # I/O tiles + f32 intermediate headroom, capped under v7x's 64 MiB per TC.
    vmem_limit = weight_bytes + 2 * io_bytes_per_step + bm * 2048 * 4 + (4 << 20)
    vmem_limit = int(min(max(vmem_limit, 24 << 20), 48 << 20))

    cost = pl.CostEstimate(
        flops=2 * n_pad * (784 * 400 + 400 * 100 + 100 * 2 * LANE
                           + LANE * 100 + 100 * 400 + 400 * 784),
        transcendentals=n_pad * (LANE + 784),    # exp(0.5*logvar) + tanh
        bytes_accessed=(x_p.size * 2 + eps_p.size * 4 + weight_bytes
                        + n_pad * 784 * 4 + n_pad * 2 * LANE * 4),
    )

    recon_p, ml_p = pl.pallas_call(
        _vae_fused_kernel,
        grid=grid,
        in_specs=in_specs,
        out_specs=out_specs,
        out_shape=out_shape,
        compiler_params=pltpu.CompilerParams(
            dimension_semantics=("parallel",),   # shards M across v7x TCs
            vmem_limit_bytes=vmem_limit),
        cost_estimate=cost,
    )(x_p, eps_p, *weights)

    # Slice padded rows off and split the lane-aligned mu|logvar slab.
    recon = recon_p[:n]
    mu = ml_p[:n, :LATENT]
    logvar = ml_p[:n, LANE:LANE + LATENT]
    return recon, mu, logvar


# ----------------------------------------------------------------------------
# Parameter init (PyTorch nn.Linear default: U(-1/sqrt(fan_in), 1/sqrt(fan_in)))
# ----------------------------------------------------------------------------
def init_params(key):
    ks = jax.random.split(key, 14)

    def u(k, shape, fan_in):
        bound = 1.0 / jnp.sqrt(jnp.float32(fan_in))
        return jax.random.uniform(k, shape, jnp.float32, -bound, bound)

    p = {}
    # encoder_common: Linear(784,400), Linear(400,100)   (PyTorch (out, in))
    p["e1_w"] = u(ks[0], (400, 784), 784)
    p["e1_b"] = u(ks[1], (400,), 784)
    p["e2_w"] = u(ks[2], (100, 400), 400)
    p["e2_b"] = u(ks[3], (100,), 400)
    # encoder_mu / encoder_logvar: Linear(100,36)
    p["mu_w"] = u(ks[4], (36, 100), 100)
    p["mu_b"] = u(ks[5], (36,), 100)
    p["lv_w"] = u(ks[6], (36, 100), 100)
    p["lv_b"] = u(ks[7], (36,), 100)
    # decoder: Linear(36,100), Linear(100,400), Linear(400,784)
    p["d1_w"] = u(ks[8], (100, 36), 36)
    p["d1_b"] = u(ks[9], (100,), 36)
    p["d2_w"] = u(ks[10], (400, 100), 100)
    p["d2_b"] = u(ks[11], (400,), 100)
    p["d3_w"] = u(ks[12], (784, 400), 400)
    p["d3_b"] = u(ks[13], (784,), 400)
    return p


if __name__ == "__main__":
    key = jax.random.PRNGKey(0)
    k_params, k_x, k_eps = jax.random.split(key, 3)

    batch = 2
    params = init_params(k_params)
    x = jax.random.normal(k_x, (batch, 784), jnp.float32)     # flattened 28x28
    # TODO(synk): PyTorch samples eps inside forward(); here it is a
    # deterministic external input (could use pltpu.prng_seed +
    # pltpu.stateful_normal in-kernel to drop this input entirely).
    eps = jax.random.normal(k_eps, (batch, 36), jnp.float32)

    fwd = jax.jit(vae_forward)
    recon, mu, logvar = fwd(params, x, eps)
    jax.block_until_ready((recon, mu, logvar))

    assert recon.shape == (batch, 784)
    assert mu.shape == (batch, 36)
    assert logvar.shape == (batch, 36)

    # Sanity check against a pure-JAX f32 reference of the same math.
    # Tolerances are loosened because the kernel uses bf16 MXU operands.
    def ref(params, x, eps):
        h = jnp.maximum(x @ params["e1_w"].T + params["e1_b"], 0.0)
        h = jnp.maximum(h @ params["e2_w"].T + params["e2_b"], 0.0)
        mu_r = h @ params["mu_w"].T + params["mu_b"]
        lv_r = h @ params["lv_w"].T + params["lv_b"]
        z = eps * jnp.exp(0.5 * lv_r) + mu_r
        d = jnp.maximum(z @ params["d1_w"].T + params["d1_b"], 0.0)
        d = jnp.maximum(d @ params["d2_w"].T + params["d2_b"], 0.0)
        d = jnp.tanh(d @ params["d3_w"].T + params["d3_b"])
        return d, mu_r, lv_r

    r_ref, mu_r, lv_r = ref(params, x, eps)
    assert jnp.allclose(recon, r_ref, atol=5e-2, rtol=5e-2)
    assert jnp.allclose(mu, mu_r, atol=5e-2, rtol=5e-2)
    assert jnp.allclose(logvar, lv_r, atol=5e-2, rtol=5e-2)

    print("KERNEL_OK")
</pallas_src>

<mosaic_0001>
module attributes {stable_mosaic.version = 11 : i64} {
  func.func @_vae_fused_kernel(%arg0: i32, %arg1: memref<8x784xbf16, #tpu.memory_space<vmem>>, %arg2: memref<8x128xf32, #tpu.memory_space<vmem>>, %arg3: memref<784x400xbf16, #tpu.memory_space<vmem>>, %arg4: memref<1x400xf32, #tpu.memory_space<vmem>>, %arg5: memref<400x100xbf16, #tpu.memory_space<vmem>>, %arg6: memref<1x100xf32, #tpu.memory_space<vmem>>, %arg7: memref<100x256xbf16, #tpu.memory_space<vmem>>, %arg8: memref<1x256xf32, #tpu.memory_space<vmem>>, %arg9: memref<128x100xbf16, #tpu.memory_space<vmem>>, %arg10: memref<1x100xf32, #tpu.memory_space<vmem>>, %arg11: memref<100x400xbf16, #tpu.memory_space<vmem>>, %arg12: memref<1x400xf32, #tpu.memory_space<vmem>>, %arg13: memref<400x784xbf16, #tpu.memory_space<vmem>>, %arg14: memref<1x784xf32, #tpu.memory_space<vmem>>, %arg15: memref<8x784xf32, #tpu.memory_space<vmem>>, %arg16: memref<8x256xf32, #tpu.memory_space<vmem>>) attributes {dimension_semantics = [#tpu.dimension_semantics<parallel>], iteration_bounds = array<i64: 1>, scalar_prefetch = 0 : i64, scratch_operands = 0 : i64, tpu.core_type = #tpu.core_type<tc>, window_params = [{transform_indices = @transform_0, window_bounds = array<i64: 8, 784>}, {transform_indices = @transform_1, window_bounds = array<i64: 8, 128>}, {pipeline_mode = #tpu.pipeline_mode<synchronous>, transform_indices = @transform_2, window_bounds = array<i64: 784, 400>}, {pipeline_mode = #tpu.pipeline_mode<synchronous>, transform_indices = @transform_3, window_bounds = array<i64: 1, 400>}, {pipeline_mode = #tpu.pipeline_mode<synchronous>, transform_indices = @transform_4, window_bounds = array<i64: 400, 100>}, {pipeline_mode = #tpu.pipeline_mode<synchronous>, transform_indices = @transform_5, window_bounds = array<i64: 1, 100>}, {pipeline_mode = #tpu.pipeline_mode<synchronous>, transform_indices = @transform_6, window_bounds = array<i64: 100, 256>}, {pipeline_mode = #tpu.pipeline_mode<synchronous>, transform_indices = @transform_7, window_bounds = array<i64: 1, 256>}, {pipeline_mode = #tpu.pipeline_mode<synchronous>, transform_indices = @transform_8, window_bounds = array<i64: 128, 100>}, {pipeline_mode = #tpu.pipeline_mode<synchronous>, transform_indices = @transform_9, window_bounds = array<i64: 1, 100>}, {pipeline_mode = #tpu.pipeline_mode<synchronous>, transform_indices = @transform_10, window_bounds = array<i64: 100, 400>}, {pipeline_mode = #tpu.pipeline_mode<synchronous>, transform_indices = @transform_11, window_bounds = array<i64: 1, 400>}, {pipeline_mode = #tpu.pipeline_mode<synchronous>, transform_indices = @transform_12, window_bounds = array<i64: 400, 784>}, {pipeline_mode = #tpu.pipeline_mode<synchronous>, transform_indices = @transform_13, window_bounds = array<i64: 1, 784>}, {transform_indices = @transform_14, window_bounds = array<i64: 8, 784>}, {transform_indices = @transform_15, window_bounds = array<i64: 8, 256>}]} {
    %c0 = arith.constant 0 : index
    %c0_0 = arith.constant 0 : index
    %0 = vector.load %arg1[%c0, %c0_0] : memref<8x784xbf16, #tpu.memory_space<vmem>>, vector<8x784xbf16>
    %c0_1 = arith.constant 0 : index
    %c0_2 = arith.constant 0 : index
    %1 = vector.load %arg3[%c0_1, %c0_2] : memref<784x400xbf16, #tpu.memory_space<vmem>>, vector<784x400xbf16>
    %cst = arith.constant dense<0.000000e+00> : vector<8x400xf32>
    %2 = tpu.matmul %0, %1, %cst {dimension_numbers = #tpu.dot_dimension_numbers<[1], [0], [0], [1], [0, 0, 1, 1], [], []>} : vector<8x784xbf16>, vector<784x400xbf16>, vector<8x400xf32> -> vector<8x400xf32>
    %c0_3 = arith.constant 0 : index
    %c0_4 = arith.constant 0 : index
    %3 = vector.load %arg4[%c0_3, %c0_4] : memref<1x400xf32, #tpu.memory_space<vmem>>, vector<1x400xf32>
    %4 = vector.broadcast %3 : vector<1x400xf32> to vector<8x400xf32>
    %5 = arith.addf %2, %4 : vector<8x400xf32>
    %cst_5 = arith.constant 0.000000e+00 : f32
    %6 = vector.broadcast %cst_5 : f32 to vector<8x400xf32>
    %7 = arith.maximumf %5, %6 : vector<8x400xf32>
    %8 = arith.truncf %7 : vector<8x400xf32> to vector<8x400xbf16>
    %c0_6 = arith.constant 0 : index
    %c0_7 = arith.constant 0 : index
    %9 = vector.load %arg5[%c0_6, %c0_7] : memref<400x100xbf16, #tpu.memory_space<vmem>>, vector<400x100xbf16>
    %cst_8 = arith.constant dense<0.000000e+00> : vector<8x100xf32>
    %10 = tpu.matmul %8, %9, %cst_8 {dimension_numbers = #tpu.dot_dimension_numbers<[1], [0], [0], [1], [0, 0, 1, 1], [], []>} : vector<8x400xbf16>, vector<400x100xbf16>, vector<8x100xf32> -> vector<8x100xf32>
    %c0_9 = arith.constant 0 : index
    %c0_10 = arith.constant 0 : index
    %11 = vector.load %arg6[%c0_9, %c0_10] : memref<1x100xf32, #tpu.memory_space<vmem>>, vector<1x100xf32>
    %12 = vector.broadcast %11 : vector<1x100xf32> to vector<8x100xf32>
    %13 = arith.addf %10, %12 : vector<8x100xf32>
    %cst_11 = arith.constant 0.000000e+00 : f32
    %14 = vector.broadcast %cst_11 : f32 to vector<8x100xf32>
    %15 = arith.maximumf %13, %14 : vector<8x100xf32>
    %16 = arith.truncf %15 : vector<8x100xf32> to vector<8x100xbf16>
    %c0_12 = arith.constant 0 : index
    %c0_13 = arith.constant 0 : index
    %17 = vector.load %arg7[%c0_12, %c0_13] : memref<100x256xbf16, #tpu.memory_space<vmem>>, vector<100x256xbf16>
    %cst_14 = arith.constant dense<0.000000e+00> : vector<8x256xf32>
    %18 = tpu.matmul %16, %17, %cst_14 {dimension_numbers = #tpu.dot_dimension_numbers<[1], [0], [0], [1], [0, 0, 1, 1], [], []>} : vector<8x100xbf16>, vector<100x256xbf16>, vector<8x256xf32> -> vector<8x256xf32>
    %c0_15 = arith.constant 0 : index
    %c0_16 = arith.constant 0 : index
    %19 = vector.load %arg8[%c0_15, %c0_16] : memref<1x256xf32, #tpu.memory_space<vmem>>, vector<1x256xf32>
    %20 = vector.broadcast %19 : vector<1x256xf32> to vector<8x256xf32>
    %21 = arith.addf %18, %20 : vector<8x256xf32>
    %22 = vector.extract_strided_slice %21 {offsets = [0, 0], sizes = [8, 128], strides = [1, 1]} : vector<8x256xf32> to vector<8x128xf32>
    %23 = vector.extract_strided_slice %21 {offsets = [0, 128], sizes = [8, 128], strides = [1, 1]} : vector<8x256xf32> to vector<8x128xf32>
    %c0_17 = arith.constant 0 : index
    %c0_18 = arith.constant 0 : index
    %24 = vector.load %arg2[%c0_17, %c0_18] : memref<8x128xf32, #tpu.memory_space<vmem>>, vector<8x128xf32>
    %cst_19 = arith.constant 5.000000e-01 : f32
    %25 = vector.broadcast %cst_19 : f32 to vector<8x128xf32>
    %26 = arith.mulf %25, %23 : vector<8x128xf32>
    %27 = math.exp %26 : vector<8x128xf32>
    %28 = arith.mulf %24, %27 : vector<8x128xf32>
    %29 = arith.addf %28, %22 : vector<8x128xf32>
    %30 = arith.truncf %29 : vector<8x128xf32> to vector<8x128xbf16>
    %c0_20 = arith.constant 0 : index
    %c0_21 = arith.constant 0 : index
    %31 = vector.load %arg9[%c0_20, %c0_21] : memref<128x100xbf16, #tpu.memory_space<vmem>>, vector<128x100xbf16>
    %cst_22 = arith.constant dense<0.000000e+00> : vector<8x100xf32>
    %32 = tpu.matmul %30, %31, %cst_22 {dimension_numbers = #tpu.dot_dimension_numbers<[1], [0], [0], [1], [0, 0, 1, 1], [], []>} : vector<8x128xbf16>, vector<128x100xbf16>, vector<8x100xf32> -> vector<8x100xf32>
    %c0_23 = arith.constant 0 : index
    %c0_24 = arith.constant 0 : index
    %33 = vector.load %arg10[%c0_23, %c0_24] : memref<1x100xf32, #tpu.memory_space<vmem>>, vector<1x100xf32>
    %34 = vector.broadcast %33 : vector<1x100xf32> to vector<8x100xf32>
    %35 = arith.addf %32, %34 : vector<8x100xf32>
    %cst_25 = arith.constant 0.000000e+00 : f32
    %36 = vector.broadcast %cst_25 : f32 to vector<8x100xf32>
    %37 = arith.maximumf %35, %36 : vector<8x100xf32>
    %38 = arith.truncf %37 : vector<8x100xf32> to vector<8x100xbf16>
    %c0_26 = arith.constant 0 : index
    %c0_27 = arith.constant 0 : index
    %39 = vector.load %arg11[%c0_26, %c0_27] : memref<100x400xbf16, #tpu.memory_space<vmem>>, vector<100x400xbf16>
    %cst_28 = arith.constant dense<0.000000e+00> : vector<8x400xf32>
    %40 = tpu.matmul %38, %39, %cst_28 {dimension_numbers = #tpu.dot_dimension_numbers<[1], [0], [0], [1], [0, 0, 1, 1], [], []>} : vector<8x100xbf16>, vector<100x400xbf16>, vector<8x400xf32> -> vector<8x400xf32>
    %c0_29 = arith.constant 0 : index
    %c0_30 = arith.constant 0 : index
    %41 = vector.load %arg12[%c0_29, %c0_30] : memref<1x400xf32, #tpu.memory_space<vmem>>, vector<1x400xf32>
    %42 = vector.broadcast %41 : vector<1x400xf32> to vector<8x400xf32>
    %43 = arith.addf %40, %42 : vector<8x400xf32>
    %cst_31 = arith.constant 0.000000e+00 : f32
    %44 = vector.broadcast %cst_31 : f32 to vector<8x400xf32>
    %45 = arith.maximumf %43, %44 : vector<8x400xf32>
    %46 = arith.truncf %45 : vector<8x400xf32> to vector<8x400xbf16>
    %c0_32 = arith.constant 0 : index
    %c0_33 = arith.constant 0 : index
    %47 = vector.load %arg13[%c0_32, %c0_33] : memref<400x784xbf16, #tpu.memory_space<vmem>>, vector<400x784xbf16>
    %cst_34 = arith.constant dense<0.000000e+00> : vector<8x784xf32>
    %48 = tpu.matmul %46, %47, %cst_34 {dimension_numbers = #tpu.dot_dimension_numbers<[1], [0], [0], [1], [0, 0, 1, 1], [], []>} : vector<8x400xbf16>, vector<400x784xbf16>, vector<8x784xf32> -> vector<8x784xf32>
    %c0_35 = arith.constant 0 : index
    %c0_36 = arith.constant 0 : index
    %49 = vector.load %arg14[%c0_35, %c0_36] : memref<1x784xf32, #tpu.memory_space<vmem>>, vector<1x784xf32>
    %50 = vector.broadcast %49 : vector<1x784xf32> to vector<8x784xf32>
    %51 = arith.addf %48, %50 : vector<8x784xf32>
    %52 = math.tanh %51 : vector<8x784xf32>
    %c0_37 = arith.constant 0 : index
    %c0_38 = arith.constant 0 : index
    %53 = vector.load %arg15[%c0_37, %c0_38] : memref<8x784xf32, #tpu.memory_space<vmem>>, vector<8x784xf32>
    tpu.vector_store %arg15[%c0_37, %c0_38], %52 {strides = array<i32>} : memref<8x784xf32, #tpu.memory_space<vmem>>, vector<8x784xf32>,
    %c0_39 = arith.constant 0 : index
    %c0_40 = arith.constant 0 : index
    %54 = vector.load %arg16[%c0_39, %c0_40] : memref<8x256xf32, #tpu.memory_space<vmem>>, vector<8x256xf32>
    tpu.vector_store %arg16[%c0_39, %c0_40], %21 {strides = array<i32>} : memref<8x256xf32, #tpu.memory_space<vmem>>, vector<8x256xf32>,
    return
  }
  func.func @transform_0(%arg0: i32) -> (i32, i32) {
    %c0_i32 = arith.constant 0 : i32
    %c0_i32_0 = arith.constant 0 : i32
    return %arg0, %c0_i32 : i32, i32
  }
  func.func @transform_1(%arg0: i32) -> (i32, i32) {
    %c0_i32 = arith.constant 0 : i32
    %c0_i32_0 = arith.constant 0 : i32
    return %arg0, %c0_i32 : i32, i32
  }
  func.func @transform_2(%arg0: i32) -> (i32, i32) {
    %c0_i32 = arith.constant 0 : i32
    %c0_i32_0 = arith.constant 0 : i32
    %c0_i32_1 = arith.constant 0 : i32
    return %c0_i32, %c0_i32_0 : i32, i32
  }
  func.func @transform_3(%arg0: i32) -> (i32, i32) {
    %c0_i32 = arith.constant 0 : i32
    %c0_i32_0 = arith.constant 0 : i32
    %c0_i32_1 = arith.constant 0 : i32
    return %c0_i32, %c0_i32_0 : i32, i32
  }
  func.func @transform_4(%arg0: i32) -> (i32, i32) {
    %c0_i32 = arith.constant 0 : i32
    %c0_i32_0 = arith.constant 0 : i32
    %c0_i32_1 = arith.constant 0 : i32
    return %c0_i32, %c0_i32_0 : i32, i32
  }
  func.func @transform_5(%arg0: i32) -> (i32, i32) {
    %c0_i32 = arith.constant 0 : i32
    %c0_i32_0 = arith.constant 0 : i32
    %c0_i32_1 = arith.constant 0 : i32
    return %c0_i32, %c0_i32_0 : i32, i32
  }
  func.func @transform_6(%arg0: i32) -> (i32, i32) {
    %c0_i32 = arith.constant 0 : i32
    %c0_i32_0 = arith.constant 0 : i32
    %c0_i32_1 = arith.constant 0 : i32
    return %c0_i32, %c0_i32_0 : i32, i32
  }
  func.func @transform_7(%arg0: i32) -> (i32, i32) {
    %c0_i32 = arith.constant 0 : i32
    %c0_i32_0 = arith.constant 0 : i32
    %c0_i32_1 = arith.constant 0 : i32
    return %c0_i32, %c0_i32_0 : i32, i32
  }
  func.func @transform_8(%arg0: i32) -> (i32, i32) {
    %c0_i32 = arith.constant 0 : i32
    %c0_i32_0 = arith.constant 0 : i32
    %c0_i32_1 = arith.constant 0 : i32
    return %c0_i32, %c0_i32_0 : i32, i32
  }
  func.func @transform_9(%arg0: i32) -> (i32, i32) {
    %c0_i32 = arith.constant 0 : i32
    %c0_i32_0 = arith.constant 0 : i32
    %c0_i32_1 = arith.constant 0 : i32
    return %c0_i32, %c0_i32_0 : i32, i32
  }
  func.func @transform_10(%arg0: i32) -> (i32, i32) {
    %c0_i32 = arith.constant 0 : i32
    %c0_i32_0 = arith.constant 0 : i32
    %c0_i32_1 = arith.constant 0 : i32
    return %c0_i32, %c0_i32_0 : i32, i32
  }
  func.func @transform_11(%arg0: i32) -> (i32, i32) {
    %c0_i32 = arith.constant 0 : i32
    %c0_i32_0 = arith.constant 0 : i32
    %c0_i32_1 = arith.constant 0 : i32
    return %c0_i32, %c0_i32_0 : i32, i32
  }
  func.func @transform_12(%arg0: i32) -> (i32, i32) {
    %c0_i32 = arith.constant 0 : i32
    %c0_i32_0 = arith.constant 0 : i32
    %c0_i32_1 = arith.constant 0 : i32
    return %c0_i32, %c0_i32_0 : i32, i32
  }
  func.func @transform_13(%arg0: i32) -> (i32, i32) {
    %c0_i32 = arith.constant 0 : i32
    %c0_i32_0 = arith.constant 0 : i32
    %c0_i32_1 = arith.constant 0 : i32
    return %c0_i32, %c0_i32_0 : i32, i32
  }
  func.func @transform_14(%arg0: i32) -> (i32, i32) {
    %c0_i32 = arith.constant 0 : i32
    %c0_i32_0 = arith.constant 0 : i32
    return %arg0, %c0_i32 : i32, i32
  }
  func.func @transform_15(%arg0: i32) -> (i32, i32) {
    %c0_i32 = arith.constant 0 : i32
    %c0_i32_0 = arith.constant 0 : i32
    return %arg0, %c0_i32 : i32, i32
  }
}

</mosaic_0001>

<llo_original>
// kernel: vae_forward.1
$region0: #{vae_forward.1}
  #allocation0 [shape = 'u32[]', space=smem, size = 0x4, offset = 0x4, fixed_abs, tag = 'smem constant byte address 0x4 - core index']
  #allocation1 [shape = 'u32[72,128]{1,0:T(1,128)}', space=vmem, size = 0x9000, scoped, tag = 'internal scratch']
  %s0 = inlined_call_operand.vmem [shape: bf16[8,784], index: 0, kind: input, shape index: {}]
  %s1 = inlined_call_operand.vmem [shape: f32[8,128], index: 1, kind: input, shape index: {}]
  %s2 = inlined_call_operand.vmem [shape: bf16[784,400], index: 2, kind: input, shape index: {}]
  %s3 = inlined_call_operand.vmem [shape: f32[1,400], index: 3, kind: input, shape index: {}]
  %s4 = inlined_call_operand.vmem [shape: bf16[400,100], index: 4, kind: input, shape index: {}]
  %s5 = inlined_call_operand.vmem [shape: f32[1,100], index: 5, kind: input, shape index: {}]
  %s6 = inlined_call_operand.vmem [shape: bf16[100,256], index: 6, kind: input, shape index: {}]
  %s7 = inlined_call_operand.vmem [shape: f32[1,256], index: 7, kind: input, shape index: {}]
  %s8 = inlined_call_operand.vmem [shape: bf16[128,100], index: 8, kind: input, shape index: {}]
  %s9 = inlined_call_operand.vmem [shape: f32[1,100], index: 9, kind: input, shape index: {}]
  %s10 = inlined_call_operand.vmem [shape: bf16[100,400], index: 10, kind: input, shape index: {}]
  %s11 = inlined_call_operand.vmem [shape: f32[1,400], index: 11, kind: input, shape index: {}]
  %s12 = inlined_call_operand.vmem [shape: bf16[400,784], index: 12, kind: input, shape index: {}]
  %s13 = inlined_call_operand.vmem [shape: f32[1,784], index: 13, kind: input, shape index: {}]
  %s14 = inlined_call_operand.vmem [shape: f32[8,784], index: 14, kind: output, shape index: {0}]
  %s15 = inlined_call_operand.vmem [shape: f32[8,256], index: 15, kind: output, shape index: {1}]
  %16 = xla_tuple %s14, %s15
  %s17 = sld [smem:[#allocation0]]
  $region74: #{vae_forward.1} parent=0
    _
  %s19 = ssub.s32 1, %s17
  %s20 = scalar_select 0, %s19, %s17
  // Predicated region
  $region2: #{vae_forward.1} parent=0 // pred_check
    _
  $region3: #{vae_forward.1} parent=0 // pred_check_branch
    %22 = sbr.rel (0) target = $region5
  $region4: #{vae_forward.1} parent=0 // pred_region
    _
  $region5: #{vae_forward.1} parent=0 // pred_fallthru
    _
  // Predicated region
  $region6: #{vae_forward.1} parent=0 // pred_check
    _
  $region7: #{vae_forward.1} parent=0 // pred_check_branch
    %24 = sbr.rel (0) target = $region9
  $region8: #{vae_forward.1} parent=0 // pred_region
    _
  $region9: #{vae_forward.1} parent=0 // pred_fallthru
    _
  // Predicated region
  $region10: #{vae_forward.1} parent=0 // pred_check
    _
  $region11: #{vae_forward.1} parent=0 // pred_check_branch
    %26 = sbr.rel (0) target = $region13
  $region12: #{vae_forward.1} parent=0 // pred_region
    _
  $region13: #{vae_forward.1} parent=0 // pred_fallthru
    _
  // Predicated region
  $region14: #{vae_forward.1} parent=0 // pred_check
    _
  $region15: #{vae_forward.1} parent=0 // pred_check_branch
    %28 = sbr.rel (0) target = $region17
  $region16: #{vae_forward.1} parent=0 // pred_region
    _
  $region17: #{vae_forward.1} parent=0 // pred_fallthru
    _
  // Predicated region
  $region18: #{vae_forward.1} parent=0 // pred_check
    _
  $region19: #{vae_forward.1} parent=0 // pred_check_branch
    %30 = sbr.rel (0) target = $region21
  $region20: #{vae_forward.1} parent=0 // pred_region
    _
  $region21: #{vae_forward.1} parent=0 // pred_fallthru
    _
  // Predicated region
  $region22: #{vae_forward.1} parent=0 // pred_check
    _
  $region23: #{vae_forward.1} parent=0 // pred_check_branch
    %32 = sbr.rel (0) target = $region25
  $region24: #{vae_forward.1} parent=0 // pred_region
    _
  $region25: #{vae_forward.1} parent=0 // pred_fallthru
    _
  // Predicated region
  $region26: #{vae_forward.1} parent=0 // pred_check
    _
  $region27: #{vae_forward.1} parent=0 // pred_check_branch
    %34 = sbr.rel (0) target = $region29
  $region28: #{vae_forward.1} parent=0 // pred_region
    _
  $region29: #{vae_forward.1} parent=0 // pred_fallthru
    _
  // Predicated region
  $region30: #{vae_forward.1} parent=0 // pred_check
    _
  $region31: #{vae_forward.1} parent=0 // pred_check_branch
    %36 = sbr.rel (0) target = $region33
  $region32: #{vae_forward.1} parent=0 // pred_region
    _
  $region33: #{vae_forward.1} parent=0 // pred_fallthru
    _
  // Predicated region
  $region34: #{vae_forward.1} parent=0 // pred_check
    _
  $region35: #{vae_forward.1} parent=0 // pred_check_branch
    %38 = sbr.rel (0) target = $region37
  $region36: #{vae_forward.1} parent=0 // pred_region
    _
  $region37: #{vae_forward.1} parent=0 // pred_fallthru
    _
  // Predicated region
  $region38: #{vae_forward.1} parent=0 // pred_check
    _
  $region39: #{vae_forward.1} parent=0 // pred_check_branch
    %40 = sbr.rel (0) target = $region41
  $region40: #{vae_forward.1} parent=0 // pred_region
    _
  $region41: #{vae_forward.1} parent=0 // pred_fallthru
    _
  // Predicated region
  $region42: #{vae_forward.1} parent=0 // pred_check
    _
  $region43: #{vae_forward.1} parent=0 // pred_check_branch
    %42 = sbr.rel (0) target = $region45
  $region44: #{vae_forward.1} parent=0 // pred_region
    _
  $region45: #{vae_forward.1} parent=0 // pred_fallthru
    _
  // Predicated region
  $region46: #{vae_forward.1} parent=0 // pred_check
    _
  $region47: #{vae_forward.1} parent=0 // pred_check_branch
    %44 = sbr.rel (0) target = $region49
  $region48: #{vae_forward.1} parent=0 // pred_region
    _
  $region49: #{vae_forward.1} parent=0 // pred_fallthru
    _
  // Predicated region
  $region50: #{vae_forward.1} parent=0 // pred_check
    _
  $region51: #{vae_forward.1} parent=0 // pred_check_branch
    %46 = sbr.rel (0) target = $region53
  $region52: #{vae_forward.1} parent=0 // pred_region
    _
  $region53: #{vae_forward.1} parent=0 // pred_fallthru
    _
  // Predicated region
  $region54: #{vae_forward.1} parent=0 // pred_check
    _
  $region55: #{vae_forward.1} parent=0 // pred_check_branch
    %48 = sbr.rel (0) target = $region57
  $region56: #{vae_forward.1} parent=0 // pred_region
    _
  $region57: #{vae_forward.1} parent=0 // pred_fallthru
    _
  %v50 = vld [vmem:[%s0] sm:$0xff]
  %v51 = vld [vmem:[%s0 + $0x8] sm:$0xff]
  %v52 = vld [vmem:[%s0 + $0x10] sm:$0xff]
  %v53 = vld [vmem:[%s0 + $0x18] sm:$0xf]
  %v54 = vld [vmem:[%s2] sm:$0xff]
  %v55 = vld [vmem:[%s2 + $0x8] sm:$0xff]
  %v56 = vld [vmem:[%s2 + $0x10] sm:$0xff]
  %v57 = vld [vmem:[%s2 + $0x18] sm:$0xff]
  %v58 = vld [vmem:[%s2 + $0x20] sm:$0xff]
  %v59 = vld [vmem:[%s2 + $0x28] sm:$0xff]
  %v60 = vld [vmem:[%s2 + $0x30] sm:$0xff]
  %v61 = vld [vmem:[%s2 + $0x38] sm:$0xff]
  %v62 = vld [vmem:[%s2 + $0x40] sm:$0xff]
  %v63 = vld [vmem:[%s2 + $0x48] sm:$0xff]
  %v64 = vld [vmem:[%s2 + $0x50] sm:$0xff]
  %v65 = vld [vmem:[%s2 + $0x58] sm:$0xff]
  %v66 = vld [vmem:[%s2 + $0x60] sm:$0xff]
  %v67 = vld [vmem:[%s2 + $0x68] sm:$0xff]
  %v68 = vld [vmem:[%s2 + $0x70] sm:$0xff]
  %v69 = vld [vmem:[%s2 + $0x78] sm:$0xff]
  %v70 = vld [vmem:[%s2 + $0x80] sm:$0xff]
  %v71 = vld [vmem:[%s2 + $0x88] sm:$0xff]
  %v72 = vld [vmem:[%s2 + $0x90] sm:$0xff]
  %v73 = vld [vmem:[%s2 + $0x98] sm:$0xff]
  %v74 = vld [vmem:[%s2 + $0xa0] sm:$0xff]
  %v75 = vld [vmem:[%s2 + $0xa8] sm:$0xff]
  %v76 = vld [vmem:[%s2 + $0xb0] sm:$0xff]
  %v77 = vld [vmem:[%s2 + $0xb8] sm:$0xff]
  %v78 = vld [vmem:[%s2 + $0xc0] sm:$0xff]
  %v79 = vld [vmem:[%s2 + $0xc8] sm:$0xff]
  %v80 = vld [vmem:[%s2 + $0xd0] sm:$0xff]
  %v81 = vld [vmem:[%s2 + $0xd8] sm:$0xff]
  %v82 = vld [vmem:[%s2 + $0xe0] sm:$0xff]
  %v83 = vld [vmem:[%s2 + $0xe8] sm:$0xff]
  %v84 = vld [vmem:[%s2 + $0xf0] sm:$0xff]
  %v85 = vld [vmem:[%s2 + $0xf8] sm:$0xff]
  %v86 = vld [vmem:[%s2 + $0x100] sm:$0xff]
  %v87 = vld [vmem:[%s2 + $0x108] sm:$0xff]
  %v88 = vld [vmem:[%s2 + $0x110] sm:$0xff]
  %v89 = vld [vmem:[%s2 + $0x118] sm:$0xff]
  %v90 = vld [vmem:[%s2 + $0x120] sm:$0xff]
  %v91 = vld [vmem:[%s2 + $0x128] sm:$0xff]
  %v92 = vld [vmem:[%s2 + $0x130] sm:$0xff]
  %v93 = vld [vmem:[%s2 + $0x138] sm:$0xff]
  %v94 = vld [vmem:[%s2 + $0x140] sm:$0xff]
  %v95 = vld [vmem:[%s2 + $0x148] sm:$0xff]
  %v96 = vld [vmem:[%s2 + $0x150] sm:$0xff]
  %v97 = vld [vmem:[%s2 + $0x158] sm:$0xff]
  %v98 = vld [vmem:[%s2 + $0x160] sm:$0xff]
  %v99 = vld [vmem:[%s2 + $0x168] sm:$0xff]
  %v100 = vld [vmem:[%s2 + $0x170] sm:$0xff]
  %v101 = vld [vmem:[%s2 + $0x178] sm:$0xff]
  %v102 = vld [vmem:[%s2 + $0x180] sm:$0xff]
  %v103 = vld [vmem:[%s2 + $0x188] sm:$0xff]
  %v104 = vld [vmem:[%s2 + $0x190] sm:$0xff]
  %v105 = vld [vmem:[%s2 + $0x198] sm:$0xff]
  %v106 = vld [vmem:[%s2 + $0x1a0] sm:$0xff]
  %v107 = vld [vmem:[%s2 + $0x1a8] sm:$0xff]
  %v108 = vld [vmem:[%s2 + $0x1b0] sm:$0xff]
  %v109 = vld [vmem:[%s2 + $0x1b8] sm:$0xff]
  %v110 = vld [vmem:[%s2 + $0x1c0] sm:$0xff]
  %v111 = vld [vmem:[%s2 + $0x1c8] sm:$0xff]
  %v112 = vld [vmem:[%s2 + $0x1d0] sm:$0xff]
  %v113 = vld [vmem:[%s2 + $0x1d8] sm:$0xff]
  %v114 = vld [vmem:[%s2 + $0x1e0] sm:$0xff]
  %v115 = vld [vmem:[%s2 + $0x1e8] sm:$0xff]
  %v116 = vld [vmem:[%s2 + $0x1f0] sm:$0xff]
  %v117 = vld [vmem:[%s2 + $0x1f8] sm:$0xff]
  %v118 = vld [vmem:[%s2 + $0x200] sm:$0xff]
  %v119 = vld [vmem:[%s2 + $0x208] sm:$0xff]
  %v120 = vld [vmem:[%s2 + $0x210] sm:$0xff]
  %v121 = vld [vmem:[%s2 + $0x218] sm:$0xff]
  %v122 = vld [vmem:[%s2 + $0x220] sm:$0xff]
  %v123 = vld [vmem:[%s2 + $0x228] sm:$0xff]
  %v124 = vld [vmem:[%s2 + $0x230] sm:$0xff]
  %v125 = vld [vmem:[%s2 + $0x238] sm:$0xff]
  %v126 = vld [vmem:[%s2 + $0x240] sm:$0xff]
  %v127 = vld [vmem:[%s2 + $0x248] sm:$0xff]
  %v128 = vld [vmem:[%s2 + $0x250] sm:$0xff]
  %v129 = vld [vmem:[%s2 + $0x258] sm:$0xff]
  %v130 = vld [vmem:[%s2 + $0x260] sm:$0xff]
  %v131 = vld [vmem:[%s2 + $0x268] sm:$0xff]
  %v132 = vld [vmem:[%s2 + $0x270] sm:$0xff]
  %v133 = vld [vmem:[%s2 + $0x278] sm:$0xff]
  %v134 = vld [vmem:[%s2 + $0x280] sm:$0xff]
  %v135 = vld [vmem:[%s2 + $0x288] sm:$0xff]
  %v136 = vld [vmem:[%s2 + $0x290] sm:$0xff]
  %v137 = vld [vmem:[%s2 + $0x298] sm:$0xff]
  %v138 = vld [vmem:[%s2 + $0x2a0] sm:$0xff]
  %v139 = vld [vmem:[%s2 + $0x2a8] sm:$0xff]
  %v140 = vld [vmem:[%s2 + $0x2b0] sm:$0xff]
  %v141 = vld [vmem:[%s2 + $0x2b8] sm:$0xff]
  %v142 = vld [vmem:[%s2 + $0x2c0] sm:$0xff]
  %v143 = vld [vmem:[%s2 + $0x2c8] sm:$0xff]
  %v144 = vld [vmem:[%s2 + $0x2d0] sm:$0xff]
  %v145 = vld [vmem:[%s2 + $0x2d8] sm:$0xff]
  %v146 = vld [vmem:[%s2 + $0x2e0] sm:$0xff]
  %v147 = vld [vmem:[%s2 + $0x2e8] sm:$0xff]
  %v148 = vld [vmem:[%s2 + $0x2f0] sm:$0xff]
  %v149 = vld [vmem:[%s2 + $0x2f8] sm:$0xff]
  %v150 = vld [vmem:[%s2 + $0x300] sm:$0xff]
  %v151 = vld [vmem:[%s2 + $0x308] sm:$0xff]
  %v152 = vld [vmem:[%s2 + $0x310] sm:$0xff]
  %v153 = vld [vmem:[%s2 + $0x318] sm:$0xff]
  %v154 = vld [vmem:[%s2 + $0x320] sm:$0xff]
  %v155 = vld [vmem:[%s2 + $0x328] sm:$0xff]
  %v156 = vld [vmem:[%s2 + $0x330] sm:$0xff]
  %v157 = vld [vmem:[%s2 + $0x338] sm:$0xff]
  %v158 = vld [vmem:[%s2 + $0x340] sm:$0xff]
  %v159 = vld [vmem:[%s2 + $0x348] sm:$0xff]
  %v160 = vld [vmem:[%s2 + $0x350] sm:$0xff]
  %v161 = vld [vmem:[%s2 + $0x358] sm:$0xff]
  %v162 = vld [vmem:[%s2 + $0x360] sm:$0xff]
  %v163 = vld [vmem:[%s2 + $0x368] sm:$0xff]
  %v164 = vld [vmem:[%s2 + $0x370] sm:$0xff]
  %v165 = vld [vmem:[%s2 + $0x378] sm:$0xff]
  %v166 = vld [vmem:[%s2 + $0x380] sm:$0xff]
  %v167 = vld [vmem:[%s2 + $0x388] sm:$0xff]
  %v168 = vld [vmem:[%s2 + $0x390] sm:$0xff]
  %v169 = vld [vmem:[%s2 + $0x398] sm:$0xff]
  %v170 = vld [vmem:[%s2 + $0x3a0] sm:$0xff]
  %v171 = vld [vmem:[%s2 + $0x3a8] sm:$0xff]
  %v172 = vld [vmem:[%s2 + $0x3b0] sm:$0xff]
  %v173 = vld [vmem:[%s2 + $0x3b8] sm:$0xff]
  %v174 = vld [vmem:[%s2 + $0x3c0] sm:$0xff]
  %v175 = vld [vmem:[%s2 + $0x3c8] sm:$0xff]
  %v176 = vld [vmem:[%s2 + $0x3d0] sm:$0xff]
  %v177 = vld [vmem:[%s2 + $0x3d8] sm:$0xff]
  %v178 = vld [vmem:[%s2 + $0x3e0] sm:$0xff]
  %v179 = vld [vmem:[%s2 + $0x3e8] sm:$0xff]
  %v180 = vld [vmem:[%s2 + $0x3f0] sm:$0xff]
  %v181 = vld [vmem:[%s2 + $0x3f8] sm:$0xff]
  %v182 = vld [vmem:[%s2 + $0x400] sm:$0xff]
  %v183 = vld [vmem:[%s2 + $0x408] sm:$0xff]
  %v184 = vld [vmem:[%s2 + $0x410] sm:$0xff]
  %v185 = vld [vmem:[%s2 + $0x418] sm:$0xff]
  %v186 = vld [vmem:[%s2 + $0x420] sm:$0xff]
  %v187 = vld [vmem:[%s2 + $0x428] sm:$0xff]
  %v188 = vld [vmem:[%s2 + $0x430] sm:$0xff]
  %v189 = vld [vmem:[%s2 + $0x438] sm:$0xff]
  %v190 = vld [vmem:[%s2 + $0x440] sm:$0xff]
  %v191 = vld [vmem:[%s2 + $0x448] sm:$0xff]
  %v192 = vld [vmem:[%s2 + $0x450] sm:$0xff]
  %v193 = vld [vmem:[%s2 + $0x458] sm:$0xff]
  %v194 = vld [vmem:[%s2 + $0x460] sm:$0xff]
  %v195 = vld [vmem:[%s2 + $0x468] sm:$0xff]
  %v196 = vld [vmem:[%s2 + $0x470] sm:$0xff]
  %v197 = vld [vmem:[%s2 + $0x478] sm:$0xff]
  %v198 = vld [vmem:[%s2 + $0x480] sm:$0xff]
  %v199 = vld [vmem:[%s2 + $0x488] sm:$0xff]
  %v200 = vld [vmem:[%s2 + $0x490] sm:$0xff]
  %v201 = vld [vmem:[%s2 + $0x498] sm:$0xff]
  %v202 = vld [vmem:[%s2 + $0x4a0] sm:$0xff]
  %v203 = vld [vmem:[%s2 + $0x4a8] sm:$0xff]
  %v204 = vld [vmem:[%s2 + $0x4b0] sm:$0xff]
  %v205 = vld [vmem:[%s2 + $0x4b8] sm:$0xff]
  %v206 = vld [vmem:[%s2 + $0x4c0] sm:$0xff]
  %v207 = vld [vmem:[%s2 + $0x4c8] sm:$0xff]
  %v208 = vld [vmem:[%s2 + $0x4d0] sm:$0xff]
  %v209 = vld [vmem:[%s2 + $0x4d8] sm:$0xff]
  %v210 = vld [vmem:[%s2 + $0x4e0] sm:$0xff]
  %v211 = vld [vmem:[%s2 + $0x4e8] sm:$0xff]
  %v212 = vld [vmem:[%s2 + $0x4f0] sm:$0xff]
  %v213 = vld [vmem:[%s2 + $0x4f8] sm:$0xff]
  %v214 = vld [vmem:[%s2 + $0x500] sm:$0xff]
  %v215 = vld [vmem:[%s2 + $0x508] sm:$0xff]
  %v216 = vld [vmem:[%s2 + $0x510] sm:$0xff]
  %v217 = vld [vmem:[%s2 + $0x518] sm:$0xff]
  %v218 = vld [vmem:[%s2 + $0x520] sm:$0xff]
  %v219 = vld [vmem:[%s2 + $0x528] sm:$0xff]
  %v220 = vld [vmem:[%s2 + $0x530] sm:$0xff]
  %v221 = vld [vmem:[%s2 + $0x538] sm:$0xff]
  %v222 = vld [vmem:[%s2 + $0x540] sm:$0xff]
  %v223 = vld [vmem:[%s2 + $0x548] sm:$0xff]
  %v224 = vld [vmem:[%s2 + $0x550] sm:$0xff]
  %v225 = vld [vmem:[%s2 + $0x558] sm:$0xff]
  %v226 = vld [vmem:[%s2 + $0x560] sm:$0xff]
  %v227 = vld [vmem:[%s2 + $0x568] sm:$0xff]
  %v228 = vld [vmem:[%s2 + $0x570] sm:$0xff]
  %v229 = vld [vmem:[%s2 + $0x578] sm:$0xff]
  %v230 = vld [vmem:[%s2 + $0x580] sm:$0xff]
  %v231 = vld [vmem:[%s2 + $0x588] sm:$0xff]
  %v232 = vld [vmem:[%s2 + $0x590] sm:$0xff]
  %v233 = vld [vmem:[%s2 + $0x598] sm:$0xff]
  %v234 = vld [vmem:[%s2 + $0x5a0] sm:$0xff]
  %v235 = vld [vmem:[%s2 + $0x5a8] sm:$0xff]
  %v236 = vld [vmem:[%s2 + $0x5b0] sm:$0xff]
  %v237 = vld [vmem:[%s2 + $0x5b8] sm:$0xff]
  %v238 = vld [vmem:[%s2 + $0x5c0] sm:$0xff]
  %v239 = vld [vmem:[%s2 + $0x5c8] sm:$0xff]
  %v240 = vld [vmem:[%s2 + $0x5d0] sm:$0xff]
  %v241 = vld [vmem:[%s2 + $0x5d8] sm:$0xff]
  %v242 = vld [vmem:[%s2 + $0x5e0] sm:$0xff]
  %v243 = vld [vmem:[%s2 + $0x5e8] sm:$0xff]
  %v244 = vld [vmem:[%s2 + $0x5f0] sm:$0xff]
  %v245 = vld [vmem:[%s2 + $0x5f8] sm:$0xff]
  %v246 = vld [vmem:[%s2 + $0x600] sm:$0xff]
  %v247 = vld [vmem:[%s2 + $0x608] sm:$0xff]
  %v248 = vld [vmem:[%s2 + $0x610] sm:$0xff]
  %v249 = vld [vmem:[%s2 + $0x618] sm:$0xff]
  %v250 = vld [vmem:[%s3] sm:$0xf]
  %v252 = vperm.slane %v250, 0
  %v253 = vperm.slane %v250, 1
  %v254 = vperm.slane %v250, 2
  %v255 = vperm.slane %v250, 3
  %v264 = vunpack.c.l.b16 %v50
  %v265 = vunpack.c.h.b16 %v50
  %v266 = vunpack.c.l.b16 %v51
  %v267 = vunpack.c.h.b16 %v51
  %v268 = vunpack.c.l.b16 %v52
  %v269 = vunpack.c.h.b16 %v52
  %v270 = vunpack.c.l.b16 %v53
  %v271 = vpack.c.b16 %v264, %v264
  %v272 = vpack.c.b16 %v265, %v265
  %v273 = vpack.c.b16 %v266, %v266
  %v274 = vpack.c.b16 %v267, %v267
  %v275 = vpack.c.b16 %v268, %v268
  %v276 = vpack.c.b16 %v269, %v269
  %v277 = vpack.c.b16 %v270, %v270
  %v480 = vunpack.c.l.b16 %v54
  %v481 = vunpack.c.h.b16 %v54
  %v482 = vunpack.c.l.b16 %v55
  %v483 = vunpack.c.h.b16 %v55
  %v484 = vunpack.c.l.b16 %v56
  %v485 = vunpack.c.h.b16 %v56
  %v486 = vunpack.c.l.b16 %v57
  %v487 = vunpack.c.h.b16 %v57
  %v488 = vunpack.c.l.b16 %v58
  %v489 = vunpack.c.h.b16 %v58
  %v490 = vunpack.c.l.b16 %v59
  %v491 = vunpack.c.h.b16 %v59
  %v492 = vunpack.c.l.b16 %v60
  %v493 = vunpack.c.h.b16 %v60
  %v494 = vunpack.c.l.b16 %v61
  %v495 = vunpack.c.h.b16 %v61
  %v496 = vunpack.c.l.b16 %v62
  %v497 = vunpack.c.h.b16 %v62
  %v498 = vunpack.c.l.b16 %v63
  %v499 = vunpack.c.h.b16 %v63
  %v500 = vunpack.c.l.b16 %v64
  %v501 = vunpack.c.h.b16 %v64
  %v502 = vunpack.c.l.b16 %v65
  %v503 = vunpack.c.h.b16 %v65
  %v504 = vunpack.c.l.b16 %v66
  %v505 = vunpack.c.h.b16 %v66
  %v506 = vunpack.c.l.b16 %v67
  %v507 = vunpack.c.h.b16 %v67
  %v508 = vunpack.c.l.b16 %v68
  %v509 = vunpack.c.h.b16 %v68
  %v510 = vunpack.c.l.b16 %v69
  %v511 = vunpack.c.h.b16 %v69
  %v512 = vunpack.c.l.b16 %v70
  %v513 = vunpack.c.h.b16 %v70
  %v514 = vunpack.c.l.b16 %v71
  %v515 = vunpack.c.h.b16 %v71
  %v516 = vunpack.c.l.b16 %v72
  %v517 = vunpack.c.h.b16 %v72
  %v518 = vunpack.c.l.b16 %v73
  %v519 = vunpack.c.h.b16 %v73
  %v520 = vunpack.c.l.b16 %v74
  %v521 = vunpack.c.h.b16 %v74
  %v522 = vunpack.c.l.b16 %v75
  %v523 = vunpack.c.h.b16 %v75
  %v524 = vunpack.c.l.b16 %v76
  %v525 = vunpack.c.h.b16 %v76
  %v526 = vunpack.c.l.b16 %v77
  %v527 = vunpack.c.h.b16 %v77
  %v528 = vunpack.c.l.b16 %v78
  %v529 = vunpack.c.h.b16 %v78
  %v530 = vunpack.c.l.b16 %v79
  %v531 = vunpack.c.h.b16 %v79
  %v532 = vunpack.c.l.b16 %v80
  %v533 = vunpack.c.h.b16 %v80
  %v534 = vunpack.c.l.b16 %v81
  %v535 = vunpack.c.h.b16 %v81
  %v536 = vunpack.c.l.b16 %v82
  %v537 = vunpack.c.h.b16 %v82
  %v538 = vunpack.c.l.b16 %v83
  %v539 = vunpack.c.h.b16 %v83
  %v540 = vunpack.c.l.b16 %v84
  %v541 = vunpack.c.h.b16 %v84
  %v542 = vunpack.c.l.b16 %v85
  %v543 = vunpack.c.h.b16 %v85
  %v544 = vunpack.c.l.b16 %v86
  %v545 = vunpack.c.h.b16 %v86
  %v546 = vunpack.c.l.b16 %v87
  %v547 = vunpack.c.h.b16 %v87
  %v548 = vunpack.c.l.b16 %v88
  %v549 = vunpack.c.h.b16 %v88
  %v550 = vunpack.c.l.b16 %v89
  %v551 = vunpack.c.h.b16 %v89
  %v552 = vunpack.c.l.b16 %v90
  %v553 = vunpack.c.h.b16 %v90
  %v554 = vunpack.c.l.b16 %v91
  %v555 = vunpack.c.h.b16 %v91
  %v556 = vunpack.c.l.b16 %v92
  %v557 = vunpack.c.h.b16 %v92
  %v558 = vunpack.c.l.b16 %v93
  %v559 = vunpack.c.h.b16 %v93
  %v560 = vunpack.c.l.b16 %v94
  %v561 = vunpack.c.h.b16 %v94
  %v562 = vunpack.c.l.b16 %v95
  %v563 = vunpack.c.h.b16 %v95
  %v564 = vunpack.c.l.b16 %v96
  %v565 = vunpack.c.h.b16 %v96
  %v566 = vunpack.c.l.b16 %v97
  %v567 = vunpack.c.h.b16 %v97
  %v568 = vunpack.c.l.b16 %v98
  %v569 = vunpack.c.h.b16 %v98
  %v570 = vunpack.c.l.b16 %v99
  %v571 = vunpack.c.h.b16 %v99
  %v572 = vunpack.c.l.b16 %v100
  %v573 = vunpack.c.h.b16 %v100
  %v574 = vunpack.c.l.b16 %v101
  %v575 = vunpack.c.h.b16 %v101
  %v576 = vunpack.c.l.b16 %v102
  %v577 = vunpack.c.h.b16 %v102
  %v578 = vunpack.c.l.b16 %v103
  %v579 = vunpack.c.h.b16 %v103
  %v580 = vunpack.c.l.b16 %v104
  %v581 = vunpack.c.h.b16 %v104
  %v582 = vunpack.c.l.b16 %v105
  %v583 = vunpack.c.h.b16 %v105
  %v584 = vunpack.c.l.b16 %v106
  %v585 = vunpack.c.h.b16 %v106
  %v586 = vunpack.c.l.b16 %v107
  %v587 = vunpack.c.h.b16 %v107
  %v588 = vunpack.c.l.b16 %v108
  %v589 = vunpack.c.h.b16 %v108
  %v590 = vunpack.c.l.b16 %v109
  %v591 = vunpack.c.h.b16 %v109
  %v592 = vunpack.c.l.b16 %v110
  %v593 = vunpack.c.h.b16 %v110
  %v594 = vunpack.c.l.b16 %v111
  %v595 = vunpack.c.h.b16 %v111
  %v596 = vunpack.c.l.b16 %v112
  %v597 = vunpack.c.h.b16 %v112
  %v598 = vunpack.c.l.b16 %v113
  %v599 = vunpack.c.h.b16 %v113
  %v600 = vunpack.c.l.b16 %v114
  %v601 = vunpack.c.h.b16 %v114
  %v602 = vunpack.c.l.b16 %v115
  %v603 = vunpack.c.h.b16 %v115
  %v604 = vunpack.c.l.b16 %v116
  %v605 = vunpack.c.h.b16 %v116
  %v606 = vunpack.c.l.b16 %v117
  %v607 = vunpack.c.h.b16 %v117
  %v608 = vunpack.c.l.b16 %v118
  %v609 = vunpack.c.h.b16 %v118
  %v610 = vunpack.c.l.b16 %v119
  %v611 = vunpack.c.h.b16 %v119
  %v612 = vunpack.c.l.b16 %v120
  %v613 = vunpack.c.h.b16 %v120
  %v614 = vunpack.c.l.b16 %v121
  %v615 = vunpack.c.h.b16 %v121
  %v616 = vunpack.c.l.b16 %v122
  %v617 = vunpack.c.h.b16 %v122
  %v618 = vunpack.c.l.b16 %v123
  %v619 = vunpack.c.h.b16 %v123
  %v620 = vunpack.c.l.b16 %v124
  %v621 = vunpack.c.h.b16 %v124
  %v622 = vunpack.c.l.b16 %v125
  %v623 = vunpack.c.h.b16 %v125
  %v624 = vunpack.c.l.b16 %v126
  %v625 = vunpack.c.h.b16 %v126
  %v626 = vunpack.c.l.b16 %v127
  %v627 = vunpack.c.h.b16 %v127
  %v628 = vunpack.c.l.b16 %v128
  %v629 = vunpack.c.h.b16 %v128
  %v630 = vunpack.c.l.b16 %v129
  %v631 = vunpack.c.h.b16 %v129
  %v632 = vunpack.c.l.b16 %v130
  %v633 = vunpack.c.h.b16 %v130
  %v634 = vunpack.c.l.b16 %v131
  %v635 = vunpack.c.h.b16 %v131
  %v636 = vunpack.c.l.b16 %v132
  %v637 = vunpack.c.h.b16 %v132
  %v638 = vunpack.c.l.b16 %v133
  %v639 = vunpack.c.h.b16 %v133
  %v640 = vunpack.c.l.b16 %v134
  %v641 = vunpack.c.h.b16 %v134
  %v642 = vunpack.c.l.b16 %v135
  %v643 = vunpack.c.h.b16 %v135
  %v644 = vunpack.c.l.b16 %v136
  %v645 = vunpack.c.h.b16 %v136
  %v646 = vunpack.c.l.b16 %v137
  %v647 = vunpack.c.h.b16 %v137
  %v648 = vunpack.c.l.b16 %v138
  %v649 = vunpack.c.h.b16 %v138
  %v650 = vunpack.c.l.b16 %v139
  %v651 = vunpack.c.h.b16 %v139
  %v652 = vunpack.c.l.b16 %v140
  %v653 = vunpack.c.h.b16 %v140
  %v654 = vunpack.c.l.b16 %v141
  %v655 = vunpack.c.h.b16 %v141
  %v656 = vunpack.c.l.b16 %v142
  %v657 = vunpack.c.h.b16 %v142
  %v658 = vunpack.c.l.b16 %v143
  %v659 = vunpack.c.h.b16 %v143
  %v660 = vunpack.c.l.b16 %v144
  %v661 = vunpack.c.h.b16 %v144
  %v662 = vunpack.c.l.b16 %v145
  %v663 = vunpack.c.h.b16 %v145
  %v664 = vunpack.c.l.b16 %v146
  %v665 = vunpack.c.h.b16 %v146
  %v666 = vunpack.c.l.b16 %v147
  %v667 = vunpack.c.h.b16 %v147
  %v668 = vunpack.c.l.b16 %v148
  %v669 = vunpack.c.h.b16 %v148
  %v670 = vunpack.c.l.b16 %v149
  %v671 = vunpack.c.h.b16 %v149
  %v672 = vunpack.c.l.b16 %v150
  %v673 = vunpack.c.h.b16 %v150
  %v674 = vunpack.c.l.b16 %v151
  %v675 = vunpack.c.h.b16 %v151
  %v676 = vunpack.c.l.b16 %v152
  %v677 = vunpack.c.h.b16 %v152
  %v678 = vunpack.c.l.b16 %v153
  %v679 = vunpack.c.h.b16 %v153
  %v680 = vunpack.c.l.b16 %v154
  %v681 = vunpack.c.h.b16 %v154
  %v682 = vunpack.c.l.b16 %v155
  %v683 = vunpack.c.h.b16 %v155
  %v684 = vunpack.c.l.b16 %v156
  %v685 = vunpack.c.h.b16 %v156
  %v686 = vunpack.c.l.b16 %v157
  %v687 = vunpack.c.h.b16 %v157
  %v688 = vunpack.c.l.b16 %v158
  %v689 = vunpack.c.h.b16 %v158
  %v690 = vunpack.c.l.b16 %v159
  %v691 = vunpack.c.h.b16 %v159
  %v692 = vunpack.c.l.b16 %v160
  %v693 = vunpack.c.h.b16 %v160
  %v694 = vunpack.c.l.b16 %v161
  %v695 = vunpack.c.h.b16 %v161
  %v696 = vunpack.c.l.b16 %v162
  %v697 = vunpack.c.h.b16 %v162
  %v698 = vunpack.c.l.b16 %v163
  %v699 = vunpack.c.h.b16 %v163
  %v700 = vunpack.c.l.b16 %v164
  %v701 = vunpack.c.h.b16 %v164
  %v702 = vunpack.c.l.b16 %v165
  %v703 = vunpack.c.h.b16 %v165
  %v704 = vunpack.c.l.b16 %v166
  %v705 = vunpack.c.h.b16 %v166
  %v706 = vunpack.c.l.b16 %v167
  %v707 = vunpack.c.h.b16 %v167
  %v708 = vunpack.c.l.b16 %v168
  %v709 = vunpack.c.h.b16 %v168
  %v710 = vunpack.c.l.b16 %v169
  %v711 = vunpack.c.h.b16 %v169
  %v712 = vunpack.c.l.b16 %v170
  %v713 = vunpack.c.h.b16 %v170
  %v714 = vunpack.c.l.b16 %v171
  %v715 = vunpack.c.h.b16 %v171
  %v716 = vunpack.c.l.b16 %v172
  %v717 = vunpack.c.h.b16 %v172
  %v718 = vunpack.c.l.b16 %v173
  %v719 = vunpack.c.h.b16 %v173
  %v720 = vunpack.c.l.b16 %v174
  %v721 = vunpack.c.h.b16 %v174
  %v722 = vunpack.c.l.b16 %v175
  %v723 = vunpack.c.h.b16 %v175
  %v724 = vunpack.c.l.b16 %v176
  %v725 = vunpack.c.h.b16 %v176
  %v726 = vunpack.c.l.b16 %v177
  %v727 = vunpack.c.h.b16 %v177
  %v728 = vunpack.c.l.b16 %v178
  %v729 = vunpack.c.h.b16 %v178
  %v730 = vunpack.c.l.b16 %v179
  %v731 = vunpack.c.h.b16 %v179
  %v732 = vunpack.c.l.b16 %v180
  %v733 = vunpack.c.h.b16 %v180
  %v734 = vunpack.c.l.b16 %v181
  %v735 = vunpack.c.h.b16 %v181
  %v736 = vunpack.c.l.b16 %v182
  %v737 = vunpack.c.h.b16 %v182
  %v738 = vunpack.c.l.b16 %v183
  %v739 = vunpack.c.h.b16 %v183
  %v740 = vunpack.c.l.b16 %v184
  %v741 = vunpack.c.h.b16 %v184
  %v742 = vunpack.c.l.b16 %v185
  %v743 = vunpack.c.h.b16 %v185
  %v744 = vunpack.c.l.b16 %v186
  %v745 = vunpack.c.h.b16 %v186
  %v746 = vunpack.c.l.b16 %v187
  %v747 = vunpack.c.h.b16 %v187
  %v748 = vunpack.c.l.b16 %v188
  %v749 = vunpack.c.h.b16 %v188
  %v750 = vunpack.c.l.b16 %v189
  %v751 = vunpack.c.h.b16 %v189
  %v752 = vunpack.c.l.b16 %v190
  %v753 = vunpack.c.h.b16 %v190
  %v754 = vunpack.c.l.b16 %v191
  %v755 = vunpack.c.h.b16 %v191
  %v756 = vunpack.c.l.b16 %v192
  %v757 = vunpack.c.h.b16 %v192
  %v758 = vunpack.c.l.b16 %v193
  %v759 = vunpack.c.h.b16 %v193
  %v760 = vunpack.c.l.b16 %v194
  %v761 = vunpack.c.h.b16 %v194
  %v762 = vunpack.c.l.b16 %v195
  %v763 = vunpack.c.h.b16 %v195
  %v764 = vunpack.c.l.b16 %v196
  %v765 = vunpack.c.h.b16 %v196
  %v766 = vunpack.c.l.b16 %v197
  %v767 = vunpack.c.h.b16 %v197
  %v768 = vunpack.c.l.b16 %v198
  %v769 = vunpack.c.h.b16 %v198
  %v770 = vunpack.c.l.b16 %v199
  %v771 = vunpack.c.h.b16 %v199
  %v772 = vunpack.c.l.b16 %v200
  %v773 = vunpack.c.h.b16 %v200
  %v774 = vunpack.c.l.b16 %v201
  %v775 = vunpack.c.h.b16 %v201
  %v776 = vunpack.c.l.b16 %v202
  %v777 = vunpack.c.h.b16 %v202
  %v778 = vunpack.c.l.b16 %v203
  %v779 = vunpack.c.h.b16 %v203
  %v780 = vunpack.c.l.b16 %v204
  %v781 = vunpack.c.h.b16 %v204
  %v782 = vunpack.c.l.b16 %v205
  %v783 = vunpack.c.h.b16 %v205
  %v784 = vunpack.c.l.b16 %v206
  %v785 = vunpack.c.h.b16 %v206
  %v786 = vunpack.c.l.b16 %v207
  %v787 = vunpack.c.h.b16 %v207
  %v788 = vunpack.c.l.b16 %v208
  %v789 = vunpack.c.h.b16 %v208
  %v790 = vunpack.c.l.b16 %v209
  %v791 = vunpack.c.h.b16 %v209
  %v792 = vunpack.c.l.b16 %v210
  %v793 = vunpack.c.h.b16 %v210
  %v794 = vunpack.c.l.b16 %v211
  %v795 = vunpack.c.h.b16 %v211
  %v796 = vunpack.c.l.b16 %v212
  %v797 = vunpack.c.h.b16 %v212
  %v798 = vunpack.c.l.b16 %v213
  %v799 = vunpack.c.h.b16 %v213
  %v800 = vunpack.c.l.b16 %v214
  %v801 = vunpack.c.h.b16 %v214
  %v802 = vunpack.c.l.b16 %v215
  %v803 = vunpack.c.h.b16 %v215
  %v804 = vunpack.c.l.b16 %v216
  %v805 = vunpack.c.h.b16 %v216
  %v806 = vunpack.c.l.b16 %v217
  %v807 = vunpack.c.h.b16 %v217
  %v808 = vunpack.c.l.b16 %v218
  %v809 = vunpack.c.h.b16 %v218
  %v810 = vunpack.c.l.b16 %v219
  %v811 = vunpack.c.h.b16 %v219
  %v812 = vunpack.c.l.b16 %v220
  %v813 = vunpack.c.h.b16 %v220
  %v814 = vunpack.c.l.b16 %v221
  %v815 = vunpack.c.h.b16 %v221
  %v816 = vunpack.c.l.b16 %v222
  %v817 = vunpack.c.h.b16 %v222
  %v818 = vunpack.c.l.b16 %v223
  %v819 = vunpack.c.h.b16 %v223
  %v820 = vunpack.c.l.b16 %v224
  %v821 = vunpack.c.h.b16 %v224
  %v822 = vunpack.c.l.b16 %v225
  %v823 = vunpack.c.h.b16 %v225
  %v824 = vunpack.c.l.b16 %v226
  %v825 = vunpack.c.h.b16 %v226
  %v826 = vunpack.c.l.b16 %v227
  %v827 = vunpack.c.h.b16 %v227
  %v828 = vunpack.c.l.b16 %v228
  %v829 = vunpack.c.h.b16 %v228
  %v830 = vunpack.c.l.b16 %v229
  %v831 = vunpack.c.h.b16 %v229
  %v832 = vunpack.c.l.b16 %v230
  %v833 = vunpack.c.h.b16 %v230
  %v834 = vunpack.c.l.b16 %v231
  %v835 = vunpack.c.h.b16 %v231
  %v836 = vunpack.c.l.b16 %v232
  %v837 = vunpack.c.h.b16 %v232
  %v838 = vunpack.c.l.b16 %v233
  %v839 = vunpack.c.h.b16 %v233
  %v840 = vunpack.c.l.b16 %v234
  %v841 = vunpack.c.h.b16 %v234
  %v842 = vunpack.c.l.b16 %v235
  %v843 = vunpack.c.h.b16 %v235
  %v844 = vunpack.c.l.b16 %v236
  %v845 = vunpack.c.h.b16 %v236
  %v846 = vunpack.c.l.b16 %v237
  %v847 = vunpack.c.h.b16 %v237
  %v848 = vunpack.c.l.b16 %v238
  %v849 = vunpack.c.h.b16 %v238
  %v850 = vunpack.c.l.b16 %v239
  %v851 = vunpack.c.h.b16 %v239
  %v852 = vunpack.c.l.b16 %v240
  %v853 = vunpack.c.h.b16 %v240
  %v854 = vunpack.c.l.b16 %v241
  %v855 = vunpack.c.h.b16 %v241
  %v856 = vunpack.c.l.b16 %v242
  %v857 = vunpack.c.h.b16 %v242
  %v858 = vunpack.c.l.b16 %v243
  %v859 = vunpack.c.h.b16 %v243
  %v860 = vunpack.c.l.b16 %v244
  %v861 = vunpack.c.h.b16 %v244
  %v862 = vunpack.c.l.b16 %v245
  %v863 = vunpack.c.h.b16 %v245
  %v864 = vunpack.c.l.b16 %v246
  %v865 = vunpack.c.h.b16 %v246
  %v866 = vunpack.c.l.b16 %v247
  %v867 = vunpack.c.h.b16 %v247
  %v868 = vunpack.c.l.b16 %v248
  %v869 = vunpack.c.h.b16 %v248
  %v870 = vunpack.c.l.b16 %v249
  %v871 = vunpack.c.h.b16 %v249
  %v872 = vpack.c.b16 %v484, %v480
  %v873 = vpack.c.b16 %v485, %v481
  %v874 = vpack.c.b16 %v486, %v482
  %v875 = vpack.c.b16 %v487, %v483
  %v876 = vpack.c.b16 %v492, %v488
  %v877 = vpack.c.b16 %v493, %v489
  %v878 = vpack.c.b16 %v494, %v490
  %v879 = vpack.c.b16 %v495, %v491
  %v880 = vpack.c.b16 %v500, %v496
  %v881 = vpack.c.b16 %v501, %v497
  %v882 = vpack.c.b16 %v502, %v498
  %v883 = vpack.c.b16 %v503, %v499
  %v884 = vpack.c.b16 %v508, %v504
  %v885 = vpack.c.b16 %v509, %v505
  %v886 = vpack.c.b16 %v510, %v506
  %v887 = vpack.c.b16 %v511, %v507
  %v888 = vpack.c.b16 %v516, %v512
  %v889 = vpack.c.b16 %v517, %v513
  %v890 = vpack.c.b16 %v518, %v514
  %v891 = vpack.c.b16 %v519, %v515
  %v892 = vpack.c.b16 %v524, %v520
  %v893 = vpack.c.b16 %v525, %v521
  %v894 = vpack.c.b16 %v526, %v522
  %v895 = vpack.c.b16 %v527, %v523
  %v896 = vpack.c.b16 %v532, %v528
  %v897 = vpack.c.b16 %v533, %v529
  %v898 = vpack.c.b16 %v534, %v530
  %v899 = vpack.c.b16 %v535, %v531
  %v900 = vpack.c.b16 %v540, %v536
  %v901 = vpack.c.b16 %v541, %v537
  %v902 = vpack.c.b16 %v542, %v538
  %v903 = vpack.c.b16 %v543, %v539
  %v904 = vpack.c.b16 %v548, %v544
  %v905 = vpack.c.b16 %v549, %v545
  %v906 = vpack.c.b16 %v550, %v546
  %v907 = vpack.c.b16 %v551, %v547
  %v908 = vpack.c.b16 %v556, %v552
  %v909 = vpack.c.b16 %v557, %v553
  %v910 = vpack.c.b16 %v558, %v554
  %v911 = vpack.c.b16 %v559, %v555
  %v912 = vpack.c.b16 %v564, %v560
  %v913 = vpack.c.b16 %v565, %v561
  %v914 = vpack.c.b16 %v566, %v562
  %v915 = vpack.c.b16 %v567, %v563
  %v916 = vpack.c.b16 %v572, %v568
  %v917 = vpack.c.b16 %v573, %v569
  %v918 = vpack.c.b16 %v574, %v570
  %v919 = vpack.c.b16 %v575, %v571
  %v920 = vpack.c.b16 %v580, %v576
  %v921 = vpack.c.b16 %v581, %v577
  %v922 = vpack.c.b16 %v582, %v578
  %v923 = vpack.c.b16 %v583, %v579
  %v924 = vpack.c.b16 %v588, %v584
  %v925 = vpack.c.b16 %v589, %v585
  %v926 = vpack.c.b16 %v590, %v586
  %v927 = vpack.c.b16 %v591, %v587
  %v928 = vpack.c.b16 %v596, %v592
  %v929 = vpack.c.b16 %v597, %v593
  %v930 = vpack.c.b16 %v598, %v594
  %v931 = vpack.c.b16 %v599, %v595
  %v932 = vpack.c.b16 %v604, %v600
  %v933 = vpack.c.b16 %v605, %v601
  %v934 = vpack.c.b16 %v606, %v602
  %v935 = vpack.c.b16 %v607, %v603
  %v936 = vpack.c.b16 %v612, %v608
  %v937 = vpack.c.b16 %v613, %v609
  %v938 = vpack.c.b16 %v614, %v610
  %v939 = vpack.c.b16 %v615, %v611
  %v940 = vpack.c.b16 %v620, %v616
  %v941 = vpack.c.b16 %v621, %v617
  %v942 = vpack.c.b16 %v622, %v618
  %v943 = vpack.c.b16 %v623, %v619
  %v944 = vpack.c.b16 %v628, %v624
  %v945 = vpack.c.b16 %v629, %v625
  %v946 = vpack.c.b16 %v630, %v626
  %v947 = vpack.c.b16 %v631, %v627
  %v948 = vpack.c.b16 %v636, %v632
  %v949 = vpack.c.b16 %v637, %v633
  %v950 = vpack.c.b16 %v638, %v634
  %v951 = vpack.c.b16 %v639, %v635
  %v952 = vpack.c.b16 %v644, %v640
  %v953 = vpack.c.b16 %v645, %v641
  %v954 = vpack.c.b16 %v646, %v642
  %v955 = vpack.c.b16 %v647, %v643
  %v956 = vpack.c.b16 %v652, %v648
  %v957 = vpack.c.b16 %v653, %v649
  %v958 = vpack.c.b16 %v654, %v650
  %v959 = vpack.c.b16 %v655, %v651
  %v960 = vpack.c.b16 %v660, %v656
  %v961 = vpack.c.b16 %v661, %v657
  %v962 = vpack.c.b16 %v662, %v658
  %v963 = vpack.c.b16 %v663, %v659
  %v964 = vpack.c.b16 %v668, %v664
  %v965 = vpack.c.b16 %v669, %v665
  %v966 = vpack.c.b16 %v670, %v666
  %v967 = vpack.c.b16 %v671, %v667
  %v968 = vpack.c.b16 %v676, %v672
  %v969 = vpack.c.b16 %v677, %v673
  %v970 = vpack.c.b16 %v678, %v674
  %v971 = vpack.c.b16 %v679, %v675
  %v972 = vpack.c.b16 %v684, %v680
  %v973 = vpack.c.b16 %v685, %v681
  %v974 = vpack.c.b16 %v686, %v682
  %v975 = vpack.c.b16 %v687, %v683
  %v976 = vpack.c.b16 %v692, %v688
  %v977 = vpack.c.b16 %v693, %v689
  %v978 = vpack.c.b16 %v694, %v690
  %v979 = vpack.c.b16 %v695, %v691
  %v980 = vpack.c.b16 %v700, %v696
  %v981 = vpack.c.b16 %v701, %v697
  %v982 = vpack.c.b16 %v702, %v698
  %v983 = vpack.c.b16 %v703, %v699
  %v984 = vpack.c.b16 %v708, %v704
  %v985 = vpack.c.b16 %v709, %v705
  %v986 = vpack.c.b16 %v710, %v706
  %v987 = vpack.c.b16 %v711, %v707
  %v988 = vpack.c.b16 %v716, %v712
  %v989 = vpack.c.b16 %v717, %v713
  %v990 = vpack.c.b16 %v718, %v714
  %v991 = vpack.c.b16 %v719, %v715
  %v992 = vpack.c.b16 %v724, %v720
  %v993 = vpack.c.b16 %v725, %v721
  %v994 = vpack.c.b16 %v726, %v722
  %v995 = vpack.c.b16 %v727, %v723
  %v996 = vpack.c.b16 %v732, %v728
  %v997 = vpack.c.b16 %v733, %v729
  %v998 = vpack.c.b16 %v734, %v730
  %v999 = vpack.c.b16 %v735, %v731
  %v1000 = vpack.c.b16 %v740, %v736
  %v1001 = vpack.c.b16 %v741, %v737
  %v1002 = vpack.c.b16 %v742, %v738
  %v1003 = vpack.c.b16 %v743, %v739
  %v1004 = vpack.c.b16 %v748, %v744
  %v1005 = vpack.c.b16 %v749, %v745
  %v1006 = vpack.c.b16 %v750, %v746
  %v1007 = vpack.c.b16 %v751, %v747
  %v1008 = vpack.c.b16 %v756, %v752
  %v1009 = vpack.c.b16 %v757, %v753
  %v1010 = vpack.c.b16 %v758, %v754
  %v1011 = vpack.c.b16 %v759, %v755
  %v1012 = vpack.c.b16 %v764, %v760
  %v1013 = vpack.c.b16 %v765, %v761
  %v1014 = vpack.c.b16 %v766, %v762
  %v1015 = vpack.c.b16 %v767, %v763
  %v1016 = vpack.c.b16 %v772, %v768
  %v1017 = vpack.c.b16 %v773, %v769
  %v1018 = vpack.c.b16 %v774, %v770
  %v1019 = vpack.c.b16 %v775, %v771
  %v1020 = vpack.c.b16 %v780, %v776
  %v1021 = vpack.c.b16 %v781, %v777
  %v1022 = vpack.c.b16 %v782, %v778
  %v1023 = vpack.c.b16 %v783, %v779
  %v1024 = vpack.c.b16 %v788, %v784
  %v1025 = vpack.c.b16 %v789, %v785
  %v1026 = vpack.c.b16 %v790, %v786
  %v1027 = vpack.c.b16 %v791, %v787
  %v1028 = vpack.c.b16 %v796, %v792
  %v1029 = vpack.c.b16 %v797, %v793
  %v1030 = vpack.c.b16 %v798, %v794
  %v1031 = vpack.c.b16 %v799, %v795
  %v1032 = vpack.c.b16 %v804, %v800
  %v1033 = vpack.c.b16 %v805, %v801
  %v1034 = vpack.c.b16 %v806, %v802
  %v1035 = vpack.c.b16 %v807, %v803
  %v1036 = vpack.c.b16 %v812, %v808
  %v1037 = vpack.c.b16 %v813, %v809
  %v1038 = vpack.c.b16 %v814, %v810
  %v1039 = vpack.c.b16 %v815, %v811
  %v1040 = vpack.c.b16 %v820, %v816
  %v1041 = vpack.c.b16 %v821, %v817
  %v1042 = vpack.c.b16 %v822, %v818
  %v1043 = vpack.c.b16 %v823, %v819
  %v1044 = vpack.c.b16 %v828, %v824
  %v1045 = vpack.c.b16 %v829, %v825
  %v1046 = vpack.c.b16 %v830, %v826
  %v1047 = vpack.c.b16 %v831, %v827
  %v1048 = vpack.c.b16 %v836, %v832
  %v1049 = vpack.c.b16 %v837, %v833
  %v1050 = vpack.c.b16 %v838, %v834
  %v1051 = vpack.c.b16 %v839, %v835
  %v1052 = vpack.c.b16 %v844, %v840
  %v1053 = vpack.c.b16 %v845, %v841
  %v1054 = vpack.c.b16 %v846, %v842
  %v1055 = vpack.c.b16 %v847, %v843
  %v1056 = vpack.c.b16 %v852, %v848
  %v1057 = vpack.c.b16 %v853, %v849
  %v1058 = vpack.c.b16 %v854, %v850
  %v1059 = vpack.c.b16 %v855, %v851
  %v1060 = vpack.c.b16 %v860, %v856
  %v1061 = vpack.c.b16 %v861, %v857
  %v1062 = vpack.c.b16 %v862, %v858
  %v1063 = vpack.c.b16 %v863, %v859
  %v1064 = vpack.c.b16 %v868, %v864
  %v1065 = vpack.c.b16 %v869, %v865
  %v1066 = vpack.c.b16 %v870, %v866
  %v1067 = vpack.c.b16 %v871, %v867
  %vm1264 = vcmask 130048
  %v1266 = vsel %vm1264, %v277, 0
  %1268 = vmatpush.bf16.msra.mxu0 %v900
  %1269 = vmatpush.bf16.msra.mxu0 %v896
  %1270 = vmatpush.bf16.msra.mxu0 %v892
  %1271 = vmatpush.bf16.msra.mxu0 %v888
  %1272 = vmatpush.bf16.msra.mxu0 %v884
  %1273 = vmatpush.bf16.msra.mxu0 %v880
  %1274 = vmatpush.bf16.msra.mxu0 %v876
  %1275 = vmatpush.bf16.msra.mxu0 %v872
  %1276 = vmatmul.bf16.gmra.mxu0 %v271
  %v1277 = vpop.f32.mrf.mxu0
  %v1278 = vadd.f32 %v252, %v1277
  %v1279 = vpop.f32.mrf.mxu0
  %1280 = vdwg.mxu0
  %1281 = vmatpush.bf16.msra.mxu0 %v932
  %1282 = vmatpush.bf16.msra.mxu0 %v928
  %1283 = vmatpush.bf16.msra.mxu0 %v924
  %1284 = vmatpush.bf16.msra.mxu0 %v920
  %1285 = vmatpush.bf16.msra.mxu0 %v916
  %1286 = vmatpush.bf16.msra.mxu0 %v912
  %1287 = vmatpush.bf16.msra.mxu0 %v908
  %1288 = vmatpush.bf16.msra.mxu0 %v904
  %1289 = vmatmul.bf16.gmra.mxu0 %v272
  %v1290 = vpop.f32.mrf.mxu0
  %v1291 = vadd.f32 %v1278, %v1290
  %v1292 = vpop.f32.mrf.mxu0
  %1293 = vdwg.mxu0
  %1294 = vmatpush.bf16.msra.mxu0 %v964
  %1295 = vmatpush.bf16.msra.mxu0 %v960
  %1296 = vmatpush.bf16.msra.mxu0 %v956
  %1297 = vmatpush.bf16.msra.mxu0 %v952
  %1298 = vmatpush.bf16.msra.mxu0 %v948
  %1299 = vmatpush.bf16.msra.mxu0 %v944
  %1300 = vmatpush.bf16.msra.mxu0 %v940
  %1301 = vmatpush.bf16.msra.mxu0 %v936
  %1302 = vmatmul.bf16.gmra.mxu0 %v273
  %v1303 = vpop.f32.mrf.mxu0
  %v1304 = vadd.f32 %v1291, %v1303
  %v1305 = vpop.f32.mrf.mxu0
  %1306 = vdwg.mxu0
  %1307 = vmatpush.bf16.msra.mxu0 %v996
  %1308 = vmatpush.bf16.msra.mxu0 %v992
  %1309 = vmatpush.bf16.msra.mxu0 %v988
  %1310 = vmatpush.bf16.msra.mxu0 %v984
  %1311 = vmatpush.bf16.msra.mxu0 %v980
  %1312 = vmatpush.bf16.msra.mxu0 %v976
  %1313 = vmatpush.bf16.msra.mxu0 %v972
  %1314 = vmatpush.bf16.msra.mxu0 %v968
  %1315 = vmatmul.bf16.gmra.mxu0 %v274
  %v1316 = vpop.f32.mrf.mxu0
  %v1317 = vadd.f32 %v1304, %v1316
  %v1318 = vpop.f32.mrf.mxu0
  %1319 = vdwg.mxu0
  %1320 = vmatpush.bf16.msra.mxu0 %v1028
  %1321 = vmatpush.bf16.msra.mxu0 %v1024
  %1322 = vmatpush.bf16.msra.mxu0 %v1020
  %1323 = vmatpush.bf16.msra.mxu0 %v1016
  %1324 = vmatpush.bf16.msra.mxu0 %v1012
  %1325 = vmatpush.bf16.msra.mxu0 %v1008
  %1326 = vmatpush.bf16.msra.mxu0 %v1004
  %1327 = vmatpush.bf16.msra.mxu0 %v1000
  %1328 = vmatmul.bf16.gmra.mxu0 %v275
  %v1329 = vpop.f32.mrf.mxu0
  %v1330 = vadd.f32 %v1317, %v1329
  %v1331 = vpop.f32.mrf.mxu0
  %1332 = vdwg.mxu0
  %1333 = vmatpush.bf16.msra.mxu0 %v1060
  %1334 = vmatpush.bf16.msra.mxu0 %v1056
  %1335 = vmatpush.bf16.msra.mxu0 %v1052
  %1336 = vmatpush.bf16.msra.mxu0 %v1048
  %1337 = vmatpush.bf16.msra.mxu0 %v1044
  %1338 = vmatpush.bf16.msra.mxu0 %v1040
  %1339 = vmatpush.bf16.msra.mxu0 %v1036
  %1340 = vmatpush.bf16.msra.mxu0 %v1032
  %1341 = vmatmul.bf16.gmra.mxu0 %v276
  %v1342 = vpop.f32.mrf.mxu0
  %v1343 = vadd.f32 %v1330, %v1342
  %v1344 = vpop.f32.mrf.mxu0
  %1345 = vdwg.mxu0
  %1346 = vmatpush.bf16.msra.mxu0 0
  %1347 = vmatpush.bf16.msra.mxu0 0
  %1348 = vmatpush.bf16.msra.mxu0 0
  %1349 = vmatpush.bf16.msra.mxu0 0
  %1350 = vmatpush.bf16.msra.mxu0 0
  %1351 = vmatpush.bf16.msra.mxu0 0
  %1352 = vmatpush.bf16.msra.mxu0 0
  %1353 = vmatpush.bf16.msra.mxu0 %v1064
  %1354 = vmatmul.bf16.gmra.mxu0 %v1266
  %v1355 = vpop.f32.mrf.mxu0
  %v1356 = vadd.f32 %v1343, %v1355
  %v1357 = vpop.f32.mrf.mxu0
  %1358 = vdwg.mxu0
  %1359 = vmatpush.bf16.msra.mxu0 %v901
  %1360 = vmatpush.bf16.msra.mxu0 %v897
  %1361 = vmatpush.bf16.msra.mxu0 %v893
  %1362 = vmatpush.bf16.msra.mxu0 %v889
  %1363 = vmatpush.bf16.msra.mxu0 %v885
  %1364 = vmatpush.bf16.msra.mxu0 %v881
  %1365 = vmatpush.bf16.msra.mxu0 %v877
  %1366 = vmatpush.bf16.msra.mxu0 %v873
  %1367 = vmatmul.bf16.gmra.mxu0 %v271
  %v1368 = vpop.f32.mrf.mxu0
  %v1369 = vadd.f32 %v253, %v1368
  %v1370 = vpop.f32.mrf.mxu0
  %1371 = vdwg.mxu0
  %1372 = vmatpush.bf16.msra.mxu0 %v933
  %1373 = vmatpush.bf16.msra.mxu0 %v929
  %1374 = vmatpush.bf16.msra.mxu0 %v925
  %1375 = vmatpush.bf16.msra.mxu0 %v921
  %1376 = vmatpush.bf16.msra.mxu0 %v917
  %1377 = vmatpush.bf16.msra.mxu0 %v913
  %1378 = vmatpush.bf16.msra.mxu0 %v909
  %1379 = vmatpush.bf16.msra.mxu0 %v905
  %1380 = vmatmul.bf16.gmra.mxu0 %v272
  %v1381 = vpop.f32.mrf.mxu0
  %v1382 = vadd.f32 %v1369, %v1381
  %v1383 = vpop.f32.mrf.mxu0
  %1384 = vdwg.mxu0
  %1385 = vmatpush.bf16.msra.mxu0 %v965
  %1386 = vmatpush.bf16.msra.mxu0 %v961
  %1387 = vmatpush.bf16.msra.mxu0 %v957
  %1388 = vmatpush.bf16.msra.mxu0 %v953
  %1389 = vmatpush.bf16.msra.mxu0 %v949
  %1390 = vmatpush.bf16.msra.mxu0 %v945
  %1391 = vmatpush.bf16.msra.mxu0 %v941
  %1392 = vmatpush.bf16.msra.mxu0 %v937
  %1393 = vmatmul.bf16.gmra.mxu0 %v273
  %v1394 = vpop.f32.mrf.mxu0
  %v1395 = vadd.f32 %v1382, %v1394
  %v1396 = vpop.f32.mrf.mxu0
  %1397 = vdwg.mxu0
  %1398 = vmatpush.bf16.msra.mxu0 %v997
  %1399 = vmatpush.bf16.msra.mxu0 %v993
  %1400 = vmatpush.bf16.msra.mxu0 %v989
  %1401 = vmatpush.bf16.msra.mxu0 %v985
  %1402 = vmatpush.bf16.msra.mxu0 %v981
  %1403 = vmatpush.bf16.msra.mxu0 %v977
  %1404 = vmatpush.bf16.msra.mxu0 %v973
  %1405 = vmatpush.bf16.msra.mxu0 %v969
  %1406 = vmatmul.bf16.gmra.mxu0 %v274
  %v1407 = vpop.f32.mrf.mxu0
  %v1408 = vadd.f32 %v1395, %v1407
  %v1409 = vpop.f32.mrf.mxu0
  %1410 = vdwg.mxu0
  %1411 = vmatpush.bf16.msra.mxu0 %v1029
  %1412 = vmatpush.bf16.msra.mxu0 %v1025
  %1413 = vmatpush.bf16.msra.mxu0 %v1021
  %1414 = vmatpush.bf16.msra.mxu0 %v1017
  %1415 = vmatpush.bf16.msra.mxu0 %v1013
  %1416 = vmatpush.bf16.msra.mxu0 %v1009
  %1417 = vmatpush.bf16.msra.mxu0 %v1005
  %1418 = vmatpush.bf16.msra.mxu0 %v1001
  %1419 = vmatmul.bf16.gmra.mxu0 %v275
  %v1420 = vpop.f32.mrf.mxu0
  %v1421 = vadd.f32 %v1408, %v1420
  %v1422 = vpop.f32.mrf.mxu0
  %1423 = vdwg.mxu0
  %1424 = vmatpush.bf16.msra.mxu0 %v1061
  %1425 = vmatpush.bf16.msra.mxu0 %v1057
  %1426 = vmatpush.bf16.msra.mxu0 %v1053
  %1427 = vmatpush.bf16.msra.mxu0 %v1049
  %1428 = vmatpush.bf16.msra.mxu0 %v1045
  %1429 = vmatpush.bf16.msra.mxu0 %v1041
  %1430 = vmatpush.bf16.msra.mxu0 %v1037
  %1431 = vmatpush.bf16.msra.mxu0 %v1033
  %1432 = vmatmul.bf16.gmra.mxu0 %v276
  %v1433 = vpop.f32.mrf.mxu0
  %v1434 = vadd.f32 %v1421, %v1433
  %v1435 = vpop.f32.mrf.mxu0
  %1436 = vdwg.mxu0
  %1437 = vmatpush.bf16.msra.mxu0 0
  %1438 = vmatpush.bf16.msra.mxu0 0
  %1439 = vmatpush.bf16.msra.mxu0 0
  %1440 = vmatpush.bf16.msra.mxu0 0
  %1441 = vmatpush.bf16.msra.mxu0 0
  %1442 = vmatpush.bf16.msra.mxu0 0
  %1443 = vmatpush.bf16.msra.mxu0 0
  %1444 = vmatpush.bf16.msra.mxu0 %v1065
  %1445 = vmatmul.bf16.gmra.mxu0 %v1266
  %v1446 = vpop.f32.mrf.mxu0
  %v1447 = vadd.f32 %v1434, %v1446
  %v1448 = vpop.f32.mrf.mxu0
  %1449 = vdwg.mxu0
  %1450 = vmatpush.bf16.msra.mxu0 %v902
  %1451 = vmatpush.bf16.msra.mxu0 %v898
  %1452 = vmatpush.bf16.msra.mxu0 %v894
  %1453 = vmatpush.bf16.msra.mxu0 %v890
  %1454 = vmatpush.bf16.msra.mxu0 %v886
  %1455 = vmatpush.bf16.msra.mxu0 %v882
  %1456 = vmatpush.bf16.msra.mxu0 %v878
  %1457 = vmatpush.bf16.msra.mxu0 %v874
  %1458 = vmatmul.bf16.gmra.mxu0 %v271
  %v1459 = vpop.f32.mrf.mxu0
  %v1460 = vadd.f32 %v254, %v1459
  %v1461 = vpop.f32.mrf.mxu0
  %1462 = vdwg.mxu0
  %1463 = vmatpush.bf16.msra.mxu0 %v934
  %1464 = vmatpush.bf16.msra.mxu0 %v930
  %1465 = vmatpush.bf16.msra.mxu0 %v926
  %1466 = vmatpush.bf16.msra.mxu0 %v922
  %1467 = vmatpush.bf16.msra.mxu0 %v918
  %1468 = vmatpush.bf16.msra.mxu0 %v914
  %1469 = vmatpush.bf16.msra.mxu0 %v910
  %1470 = vmatpush.bf16.msra.mxu0 %v906
  %1471 = vmatmul.bf16.gmra.mxu0 %v272
  %v1472 = vpop.f32.mrf.mxu0
  %v1473 = vadd.f32 %v1460, %v1472
  %v1474 = vpop.f32.mrf.mxu0
  %1475 = vdwg.mxu0
  %1476 = vmatpush.bf16.msra.mxu0 %v966
  %1477 = vmatpush.bf16.msra.mxu0 %v962
  %1478 = vmatpush.bf16.msra.mxu0 %v958
  %1479 = vmatpush.bf16.msra.mxu0 %v954
  %1480 = vmatpush.bf16.msra.mxu0 %v950
  %1481 = vmatpush.bf16.msra.mxu0 %v946
  %1482 = vmatpush.bf16.msra.mxu0 %v942
  %1483 = vmatpush.bf16.msra.mxu0 %v938
  %1484 = vmatmul.bf16.gmra.mxu0 %v273
  %v1485 = vpop.f32.mrf.mxu0
  %v1486 = vadd.f32 %v1473, %v1485
  %v1487 = vpop.f32.mrf.mxu0
  %1488 = vdwg.mxu0
  %1489 = vmatpush.bf16.msra.mxu0 %v998
  %1490 = vmatpush.bf16.msra.mxu0 %v994
  %1491 = vmatpush.bf16.msra.mxu0 %v990
  %1492 = vmatpush.bf16.msra.mxu0 %v986
  %1493 = vmatpush.bf16.msra.mxu0 %v982
  %1494 = vmatpush.bf16.msra.mxu0 %v978
  %1495 = vmatpush.bf16.msra.mxu0 %v974
  %1496 = vmatpush.bf16.msra.mxu0 %v970
  %1497 = vmatmul.bf16.gmra.mxu0 %v274
  %v1498 = vpop.f32.mrf.mxu0
  %v1499 = vadd.f32 %v1486, %v1498
  %v1500 = vpop.f32.mrf.mxu0
  %1501 = vdwg.mxu0
  %1502 = vmatpush.bf16.msra.mxu0 %v1030
  %1503 = vmatpush.bf16.msra.mxu0 %v1026
  %1504 = vmatpush.bf16.msra.mxu0 %v1022
  %1505 = vmatpush.bf16.msra.mxu0 %v1018
  %1506 = vmatpush.bf16.msra.mxu0 %v1014
  %1507 = vmatpush.bf16.msra.mxu0 %v1010
  %1508 = vmatpush.bf16.msra.mxu0 %v1006
  %1509 = vmatpush.bf16.msra.mxu0 %v1002
  %1510 = vmatmul.bf16.gmra.mxu0 %v275
  %v1511 = vpop.f32.mrf.mxu0
  %v1512 = vadd.f32 %v1499, %v1511
  %v1513 = vpop.f32.mrf.mxu0
  %1514 = vdwg.mxu0
  %1515 = vmatpush.bf16.msra.mxu0 %v1062
  %1516 = vmatpush.bf16.msra.mxu0 %v1058
  %1517 = vmatpush.bf16.msra.mxu0 %v1054
  %1518 = vmatpush.bf16.msra.mxu0 %v1050
  %1519 = vmatpush.bf16.msra.mxu0 %v1046
  %1520 = vmatpush.bf16.msra.mxu0 %v1042
  %1521 = vmatpush.bf16.msra.mxu0 %v1038
  %1522 = vmatpush.bf16.msra.mxu0 %v1034
  %1523 = vmatmul.bf16.gmra.mxu0 %v276
  %v1524 = vpop.f32.mrf.mxu0
  %v1525 = vadd.f32 %v1512, %v1524
  %v1526 = vpop.f32.mrf.mxu0
  %1527 = vdwg.mxu0
  %1528 = vmatpush.bf16.msra.mxu0 0
  %1529 = vmatpush.bf16.msra.mxu0 0
  %1530 = vmatpush.bf16.msra.mxu0 0
  %1531 = vmatpush.bf16.msra.mxu0 0
  %1532 = vmatpush.bf16.msra.mxu0 0
  %1533 = vmatpush.bf16.msra.mxu0 0
  %1534 = vmatpush.bf16.msra.mxu0 0
  %1535 = vmatpush.bf16.msra.mxu0 %v1066
  %1536 = vmatmul.bf16.gmra.mxu0 %v1266
  %v1537 = vpop.f32.mrf.mxu0
  %v1538 = vadd.f32 %v1525, %v1537
  %v1539 = vpop.f32.mrf.mxu0
  %1540 = vdwg.mxu0
  %1541 = vmatpush.bf16.msra.mxu0 %v903
  %1542 = vmatpush.bf16.msra.mxu0 %v899
  %1543 = vmatpush.bf16.msra.mxu0 %v895
  %1544 = vmatpush.bf16.msra.mxu0 %v891
  %1545 = vmatpush.bf16.msra.mxu0 %v887
  %1546 = vmatpush.bf16.msra.mxu0 %v883
  %1547 = vmatpush.bf16.msra.mxu0 %v879
  %1548 = vmatpush.bf16.msra.mxu0 %v875
  %1549 = vmatmul.bf16.gmra.mxu0 %v271
  %v1550 = vpop.f32.mrf.mxu0
  %v1551 = vadd.f32 %v255, %v1550
  %v1552 = vpop.f32.mrf.mxu0
  %1553 = vdwg.mxu0
  %1554 = vmatpush.bf16.msra.mxu0 %v935
  %1555 = vmatpush.bf16.msra.mxu0 %v931
  %1556 = vmatpush.bf16.msra.mxu0 %v927
  %1557 = vmatpush.bf16.msra.mxu0 %v923
  %1558 = vmatpush.bf16.msra.mxu0 %v919
  %1559 = vmatpush.bf16.msra.mxu0 %v915
  %1560 = vmatpush.bf16.msra.mxu0 %v911
  %1561 = vmatpush.bf16.msra.mxu0 %v907
  %1562 = vmatmul.bf16.gmra.mxu0 %v272
  %v1563 = vpop.f32.mrf.mxu0
  %v1564 = vadd.f32 %v1551, %v1563
  %v1565 = vpop.f32.mrf.mxu0
  %1566 = vdwg.mxu0
  %1567 = vmatpush.bf16.msra.mxu0 %v967
  %1568 = vmatpush.bf16.msra.mxu0 %v963
  %1569 = vmatpush.bf16.msra.mxu0 %v959
  %1570 = vmatpush.bf16.msra.mxu0 %v955
  %1571 = vmatpush.bf16.msra.mxu0 %v951
  %1572 = vmatpush.bf16.msra.mxu0 %v947
  %1573 = vmatpush.bf16.msra.mxu0 %v943
  %1574 = vmatpush.bf16.msra.mxu0 %v939
  %1575 = vmatmul.bf16.gmra.mxu0 %v273
  %v1576 = vpop.f32.mrf.mxu0
  %v1577 = vadd.f32 %v1564, %v1576
  %v1578 = vpop.f32.mrf.mxu0
  %1579 = vdwg.mxu0
  %1580 = vmatpush.bf16.msra.mxu0 %v999
  %1581 = vmatpush.bf16.msra.mxu0 %v995
  %1582 = vmatpush.bf16.msra.mxu0 %v991
  %1583 = vmatpush.bf16.msra.mxu0 %v987
  %1584 = vmatpush.bf16.msra.mxu0 %v983
  %1585 = vmatpush.bf16.msra.mxu0 %v979
  %1586 = vmatpush.bf16.msra.mxu0 %v975
  %1587 = vmatpush.bf16.msra.mxu0 %v971
  %1588 = vmatmul.bf16.gmra.mxu0 %v274
  %v1589 = vpop.f32.mrf.mxu0
  %v1590 = vadd.f32 %v1577, %v1589
  %v1591 = vpop.f32.mrf.mxu0
  %1592 = vdwg.mxu0
  %1593 = vmatpush.bf16.msra.mxu0 %v1031
  %1594 = vmatpush.bf16.msra.mxu0 %v1027
  %1595 = vmatpush.bf16.msra.mxu0 %v1023
  %1596 = vmatpush.bf16.msra.mxu0 %v1019
  %1597 = vmatpush.bf16.msra.mxu0 %v1015
  %1598 = vmatpush.bf16.msra.mxu0 %v1011
  %1599 = vmatpush.bf16.msra.mxu0 %v1007
  %1600 = vmatpush.bf16.msra.mxu0 %v1003
  %1601 = vmatmul.bf16.gmra.mxu0 %v275
  %v1602 = vpop.f32.mrf.mxu0
  %v1603 = vadd.f32 %v1590, %v1602
  %v1604 = vpop.f32.mrf.mxu0
  %1605 = vdwg.mxu0
  %1606 = vmatpush.bf16.msra.mxu0 %v1063
  %1607 = vmatpush.bf16.msra.mxu0 %v1059
  %1608 = vmatpush.bf16.msra.mxu0 %v1055
  %1609 = vmatpush.bf16.msra.mxu0 %v1051
  %1610 = vmatpush.bf16.msra.mxu0 %v1047
  %1611 = vmatpush.bf16.msra.mxu0 %v1043
  %1612 = vmatpush.bf16.msra.mxu0 %v1039
  %1613 = vmatpush.bf16.msra.mxu0 %v1035
  %1614 = vmatmul.bf16.gmra.mxu0 %v276
  %v1615 = vpop.f32.mrf.mxu0
  %v1616 = vadd.f32 %v1603, %v1615
  %v1617 = vpop.f32.mrf.mxu0
  %1618 = vdwg.mxu0
  %1619 = vmatpush.bf16.msra.mxu0 0
  %1620 = vmatpush.bf16.msra.mxu0 0
  %1621 = vmatpush.bf16.msra.mxu0 0
  %1622 = vmatpush.bf16.msra.mxu0 0
  %1623 = vmatpush.bf16.msra.mxu0 0
  %1624 = vmatpush.bf16.msra.mxu0 0
  %1625 = vmatpush.bf16.msra.mxu0 0
  %1626 = vmatpush.bf16.msra.mxu0 %v1067
  %1627 = vmatmul.bf16.gmra.mxu0 %v1266
  %v1628 = vpop.f32.mrf.mxu0
  %v1629 = vadd.f32 %v1616, %v1628
  %v1630 = vpop.f32.mrf.mxu0
  %1631 = vdwg.mxu0
  %v1632 = vmax.f32 %v1356, 0.0
  %v1633 = vmax.f32 %v1447, 0.0
  %v1634 = vmax.f32 %v1538, 0.0
  %v1635 = vmax.f32 %v1629, 0.0
  %v1636 = vpack.c.bf16 %v1632, %v1632
  %v1637 = vpack.c.bf16 %v1633, %v1633
  %v1638 = vpack.c.bf16 %v1634, %v1634
  %v1639 = vpack.c.bf16 %v1635, %v1635
  %v1640 = vld [vmem:[%s4] sm:$0xf]
  %v1641 = vld [vmem:[%s4 + $0x4] sm:$0xf]
  %v1642 = vld [vmem:[%s4 + $0x8] sm:$0xf]
  %v1643 = vld [vmem:[%s4 + $0xc] sm:$0xf]
  %v1644 = vld [vmem:[%s4 + $0x10] sm:$0xf]
  %v1645 = vld [vmem:[%s4 + $0x14] sm:$0xf]
  %v1646 = vld [vmem:[%s4 + $0x18] sm:$0xf]
  %v1647 = vld [vmem:[%s4 + $0x1c] sm:$0xf]
  %v1648 = vld [vmem:[%s4 + $0x20] sm:$0xf]
  %v1649 = vld [vmem:[%s4 + $0x24] sm:$0xf]
  %v1650 = vld [vmem:[%s4 + $0x28] sm:$0xf]
  %v1651 = vld [vmem:[%s4 + $0x2c] sm:$0xf]
  %v1652 = vld [vmem:[%s4 + $0x30] sm:$0xf]
  %v1653 = vld [vmem:[%s4 + $0x34] sm:$0xf]
  %v1654 = vld [vmem:[%s4 + $0x38] sm:$0xf]
  %v1655 = vld [vmem:[%s4 + $0x3c] sm:$0xf]
  %v1656 = vld [vmem:[%s4 + $0x40] sm:$0xf]
  %v1657 = vld [vmem:[%s4 + $0x44] sm:$0xf]
  %v1658 = vld [vmem:[%s4 + $0x48] sm:$0xf]
  %v1659 = vld [vmem:[%s4 + $0x4c] sm:$0xf]
  %v1660 = vld [vmem:[%s4 + $0x50] sm:$0xf]
  %v1661 = vld [vmem:[%s4 + $0x54] sm:$0xf]
  %v1662 = vld [vmem:[%s4 + $0x58] sm:$0xf]
  %v1663 = vld [vmem:[%s4 + $0x5c] sm:$0xf]
  %v1664 = vld [vmem:[%s4 + $0x60] sm:$0xf]
  %v1665 = vld [vmem:[%s4 + $0x64] sm:$0xf]
  %v1666 = vld [vmem:[%s4 + $0x68] sm:$0xf]
  %v1667 = vld [vmem:[%s4 + $0x6c] sm:$0xf]
  %v1668 = vld [vmem:[%s4 + $0x70] sm:$0xf]
  %v1669 = vld [vmem:[%s4 + $0x74] sm:$0xf]
  %v1670 = vld [vmem:[%s4 + $0x78] sm:$0xf]
  %v1671 = vld [vmem:[%s4 + $0x7c] sm:$0xf]
  %v1672 = vld [vmem:[%s4 + $0x80] sm:$0xf]
  %v1673 = vld [vmem:[%s4 + $0x84] sm:$0xf]
  %v1674 = vld [vmem:[%s4 + $0x88] sm:$0xf]
  %v1675 = vld [vmem:[%s4 + $0x8c] sm:$0xf]
  %v1676 = vld [vmem:[%s4 + $0x90] sm:$0xf]
  %v1677 = vld [vmem:[%s4 + $0x94] sm:$0xf]
  %v1678 = vld [vmem:[%s4 + $0x98] sm:$0xf]
  %v1679 = vld [vmem:[%s4 + $0x9c] sm:$0xf]
  %v1680 = vld [vmem:[%s4 + $0xa0] sm:$0xf]
  %v1681 = vld [vmem:[%s4 + $0xa4] sm:$0xf]
  %v1682 = vld [vmem:[%s4 + $0xa8] sm:$0xf]
  %v1683 = vld [vmem:[%s4 + $0xac] sm:$0xf]
  %v1684 = vld [vmem:[%s4 + $0xb0] sm:$0xf]
  %v1685 = vld [vmem:[%s4 + $0xb4] sm:$0xf]
  %v1686 = vld [vmem:[%s4 + $0xb8] sm:$0xf]
  %v1687 = vld [vmem:[%s4 + $0xbc] sm:$0xf]
  %v1688 = vld [vmem:[%s4 + $0xc0] sm:$0xf]
  %v1689 = vld [vmem:[%s4 + $0xc4] sm:$0xf]
  %v1690 = vld [vmem:[%s5] sm:$0x1]
  %v1692 = vperm.slane %v1690, 0
  %v1744 = vunpack.c.l.b16 %v1640
  %v1745 = vunpack.c.l.b16 %v1641
  %v1746 = vunpack.c.l.b16 %v1642
  %v1747 = vunpack.c.l.b16 %v1643
  %v1748 = vunpack.c.l.b16 %v1644
  %v1749 = vunpack.c.l.b16 %v1645
  %v1750 = vunpack.c.l.b16 %v1646
  %v1751 = vunpack.c.l.b16 %v1647
  %v1752 = vunpack.c.l.b16 %v1648
  %v1753 = vunpack.c.l.b16 %v1649
  %v1754 = vunpack.c.l.b16 %v1650
  %v1755 = vunpack.c.l.b16 %v1651
  %v1756 = vunpack.c.l.b16 %v1652
  %v1757 = vunpack.c.l.b16 %v1653
  %v1758 = vunpack.c.l.b16 %v1654
  %v1759 = vunpack.c.l.b16 %v1655
  %v1760 = vunpack.c.l.b16 %v1656
  %v1761 = vunpack.c.l.b16 %v1657
  %v1762 = vunpack.c.l.b16 %v1658
  %v1763 = vunpack.c.l.b16 %v1659
  %v1764 = vunpack.c.l.b16 %v1660
  %v1765 = vunpack.c.l.b16 %v1661
  %v1766 = vunpack.c.l.b16 %v1662
  %v1767 = vunpack.c.l.b16 %v1663
  %v1768 = vunpack.c.l.b16 %v1664
  %v1769 = vunpack.c.l.b16 %v1665
  %v1770 = vunpack.c.l.b16 %v1666
  %v1771 = vunpack.c.l.b16 %v1667
  %v1772 = vunpack.c.l.b16 %v1668
  %v1773 = vunpack.c.l.b16 %v1669
  %v1774 = vunpack.c.l.b16 %v1670
  %v1775 = vunpack.c.l.b16 %v1671
  %v1776 = vunpack.c.l.b16 %v1672
  %v1777 = vunpack.c.l.b16 %v1673
  %v1778 = vunpack.c.l.b16 %v1674
  %v1779 = vunpack.c.l.b16 %v1675
  %v1780 = vunpack.c.l.b16 %v1676
  %v1781 = vunpack.c.l.b16 %v1677
  %v1782 = vunpack.c.l.b16 %v1678
  %v1783 = vunpack.c.l.b16 %v1679
  %v1784 = vunpack.c.l.b16 %v1680
  %v1785 = vunpack.c.l.b16 %v1681
  %v1786 = vunpack.c.l.b16 %v1682
  %v1787 = vunpack.c.l.b16 %v1683
  %v1788 = vunpack.c.l.b16 %v1684
  %v1789 = vunpack.c.l.b16 %v1685
  %v1790 = vunpack.c.l.b16 %v1686
  %v1791 = vunpack.c.l.b16 %v1687
  %v1792 = vunpack.c.l.b16 %v1688
  %v1793 = vunpack.c.l.b16 %v1689
  %v1794 = vpack.c.b16 %v1745, %v1744
  %v1795 = vpack.c.b16 %v1747, %v1746
  %v1796 = vpack.c.b16 %v1749, %v1748
  %v1797 = vpack.c.b16 %v1751, %v1750
  %v1798 = vpack.c.b16 %v1753, %v1752
  %v1799 = vpack.c.b16 %v1755, %v1754
  %v1800 = vpack.c.b16 %v1757, %v1756
  %v1801 = vpack.c.b16 %v1759, %v1758
  %v1802 = vpack.c.b16 %v1761, %v1760
  %v1803 = vpack.c.b16 %v1763, %v1762
  %v1804 = vpack.c.b16 %v1765, %v1764
  %v1805 = vpack.c.b16 %v1767, %v1766
  %v1806 = vpack.c.b16 %v1769, %v1768
  %v1807 = vpack.c.b16 %v1771, %v1770
  %v1808 = vpack.c.b16 %v1773, %v1772
  %v1809 = vpack.c.b16 %v1775, %v1774
  %v1810 = vpack.c.b16 %v1777, %v1776
  %v1811 = vpack.c.b16 %v1779, %v1778
  %v1812 = vpack.c.b16 %v1781, %v1780
  %v1813 = vpack.c.b16 %v1783, %v1782
  %v1814 = vpack.c.b16 %v1785, %v1784
  %v1815 = vpack.c.b16 %v1787, %v1786
  %v1816 = vpack.c.b16 %v1789, %v1788
  %v1817 = vpack.c.b16 %v1791, %v1790
  %v1818 = vpack.c.b16 %v1793, %v1792
  %v1845 = vsel %vm1264, %v1639, 0
  %1847 = vmatpush.bf16.msra.mxu0 %v1801
  %1848 = vmatpush.bf16.msra.mxu0 %v1800
  %1849 = vmatpush.bf16.msra.mxu0 %v1799
  %1850 = vmatpush.bf16.msra.mxu0 %v1798
  %1851 = vmatpush.bf16.msra.mxu0 %v1797
  %1852 = vmatpush.bf16.msra.mxu0 %v1796
  %1853 = vmatpush.bf16.msra.mxu0 %v1795
  %1854 = vmatpush.bf16.msra.mxu0 %v1794
  %1855 = vmatmul.bf16.gmra.mxu0 %v1636
  %v1856 = vpop.f32.mrf.mxu0
  %v1857 = vadd.f32 %v1692, %v1856
  %v1858 = vpop.f32.mrf.mxu0
  %1859 = vdwg.mxu0
  %1860 = vmatpush.bf16.msra.mxu0 %v1809
  %1861 = vmatpush.bf16.msra.mxu0 %v1808
  %1862 = vmatpush.bf16.msra.mxu0 %v1807
  %1863 = vmatpush.bf16.msra.mxu0 %v1806
  %1864 = vmatpush.bf16.msra.mxu0 %v1805
  %1865 = vmatpush.bf16.msra.mxu0 %v1804
  %1866 = vmatpush.bf16.msra.mxu0 %v1803
  %1867 = vmatpush.bf16.msra.mxu0 %v1802
  %1868 = vmatmul.bf16.gmra.mxu0 %v1637
  %v1869 = vpop.f32.mrf.mxu0
  %v1870 = vadd.f32 %v1857, %v1869
  %v1871 = vpop.f32.mrf.mxu0
  %1872 = vdwg.mxu0
  %1873 = vmatpush.bf16.msra.mxu0 %v1817
  %1874 = vmatpush.bf16.msra.mxu0 %v1816
  %1875 = vmatpush.bf16.msra.mxu0 %v1815
  %1876 = vmatpush.bf16.msra.mxu0 %v1814
  %1877 = vmatpush.bf16.msra.mxu0 %v1813
  %1878 = vmatpush.bf16.msra.mxu0 %v1812
  %1879 = vmatpush.bf16.msra.mxu0 %v1811
  %1880 = vmatpush.bf16.msra.mxu0 %v1810
  %1881 = vmatmul.bf16.gmra.mxu0 %v1638
  %v1882 = vpop.f32.mrf.mxu0
  %v1883 = vadd.f32 %v1870, %v1882
  %v1884 = vpop.f32.mrf.mxu0
  %1885 = vdwg.mxu0
  %1886 = vmatpush.bf16.msra.mxu0 0
  %1887 = vmatpush.bf16.msra.mxu0 0
  %1888 = vmatpush.bf16.msra.mxu0 0
  %1889 = vmatpush.bf16.msra.mxu0 0
  %1890 = vmatpush.bf16.msra.mxu0 0
  %1891 = vmatpush.bf16.msra.mxu0 0
  %1892 = vmatpush.bf16.msra.mxu0 0
  %1893 = vmatpush.bf16.msra.mxu0 %v1818
  %1894 = vmatmul.bf16.gmra.mxu0 %v1845
  %v1895 = vpop.f32.mrf.mxu0
  %v1896 = vadd.f32 %v1883, %v1895
  %v1897 = vpop.f32.mrf.mxu0
  %1898 = vdwg.mxu0
  %v1899 = vmax.f32 %v1896, 0.0
  %v1900 = vpack.c.bf16 %v1899, %v1899
  %v1901 = vld [vmem:[%s6] sm:$0xff]
  %v1902 = vld [vmem:[%s6 + $0x8] sm:$0xff]
  %v1903 = vld [vmem:[%s6 + $0x10] sm:$0xff]
  %v1904 = vld [vmem:[%s6 + $0x18] sm:$0xff]
  %v1905 = vld [vmem:[%s6 + $0x20] sm:$0xff]
  %v1906 = vld [vmem:[%s6 + $0x28] sm:$0xff]
  %v1907 = vld [vmem:[%s6 + $0x30] sm:$0xff]
  %v1908 = vld [vmem:[%s6 + $0x38] sm:$0xff]
  %v1909 = vld [vmem:[%s6 + $0x40] sm:$0xff]
  %v1910 = vld [vmem:[%s6 + $0x48] sm:$0xff]
  %v1911 = vld [vmem:[%s6 + $0x50] sm:$0xff]
  %v1912 = vld [vmem:[%s6 + $0x58] sm:$0xff]
  %v1913 = vld [vmem:[%s6 + $0x60] sm:$0x33]
  %v1914 = vld [vmem:[%s7] sm:$0x3]
  %v1916 = vperm.slane %v1914, 0
  %v1917 = vperm.slane %v1914, 1
  %v1933 = vunpack.c.l.b16 %v1901
  %v1934 = vunpack.c.h.b16 %v1901
  %v1935 = vunpack.c.l.b16 %v1902
  %v1936 = vunpack.c.h.b16 %v1902
  %v1937 = vunpack.c.l.b16 %v1903
  %v1938 = vunpack.c.h.b16 %v1903
  %v1939 = vunpack.c.l.b16 %v1904
  %v1940 = vunpack.c.h.b16 %v1904
  %v1941 = vunpack.c.l.b16 %v1905
  %v1942 = vunpack.c.h.b16 %v1905
  %v1943 = vunpack.c.l.b16 %v1906
  %v1944 = vunpack.c.h.b16 %v1906
  %v1945 = vunpack.c.l.b16 %v1907
  %v1946 = vunpack.c.h.b16 %v1907
  %v1947 = vunpack.c.l.b16 %v1908
  %v1948 = vunpack.c.h.b16 %v1908
  %v1949 = vunpack.c.l.b16 %v1909
  %v1950 = vunpack.c.h.b16 %v1909
  %v1951 = vunpack.c.l.b16 %v1910
  %v1952 = vunpack.c.h.b16 %v1910
  %v1953 = vunpack.c.l.b16 %v1911
  %v1954 = vunpack.c.h.b16 %v1911
  %v1955 = vunpack.c.l.b16 %v1912
  %v1956 = vunpack.c.h.b16 %v1912
  %v1957 = vunpack.c.l.b16 %v1913
  %v1958 = vunpack.c.h.b16 %v1913
  %v1959 = vpack.c.b16 %v1935, %v1933
  %v1960 = vpack.c.b16 %v1936, %v1934
  %v1961 = vpack.c.b16 %v1939, %v1937
  %v1962 = vpack.c.b16 %v1940, %v1938
  %v1963 = vpack.c.b16 %v1943, %v1941
  %v1964 = vpack.c.b16 %v1944, %v1942
  %v1965 = vpack.c.b16 %v1947, %v1945
  %v1966 = vpack.c.b16 %v1948, %v1946
  %v1967 = vpack.c.b16 %v1951, %v1949
  %v1968 = vpack.c.b16 %v1952, %v1950
  %v1969 = vpack.c.b16 %v1955, %v1953
  %v1970 = vpack.c.b16 %v1956, %v1954
  %v1971 = vpack.c.b16 %v1957, %v1957
  %v1972 = vpack.c.b16 %v1958, %v1958
  %vm1985 = vcmask 818176
  %v1987 = vsel %vm1985, %v1900, 0
  %vm1989 = vcmask 1041408
  %v1991 = vsel %vm1989, %v1971, 0
  %v1994 = vsel %vm1989, %v1972, 0
  %1996 = vmatpush.bf16.msra.mxu0 0
  %1997 = vmatpush.bf16.msra.mxu0 %v1991
  %1998 = vmatpush.bf16.msra.mxu0 %v1969
  %1999 = vmatpush.bf16.msra.mxu0 %v1967
  %2000 = vmatpush.bf16.msra.mxu0 %v1965
  %2001 = vmatpush.bf16.msra.mxu0 %v1963
  %2002 = vmatpush.bf16.msra.mxu0 %v1961
  %2003 = vmatpush.bf16.msra.mxu0 %v1959
  %2004 = vmatmul.bf16.gmra.mxu0 %v1987
  %v2005 = vpop.f32.mrf.mxu0
  %v2006 = vadd.f32 %v1916, %v2005
  %v2007 = vpop.f32.mrf.mxu0
  %2008 = vdwg.mxu0
  %2009 = vmatpush.bf16.msra.mxu0 0
  %2010 = vmatpush.bf16.msra.mxu0 %v1994
  %2011 = vmatpush.bf16.msra.mxu0 %v1970
  %2012 = vmatpush.bf16.msra.mxu0 %v1968
  %2013 = vmatpush.bf16.msra.mxu0 %v1966
  %2014 = vmatpush.bf16.msra.mxu0 %v1964
  %2015 = vmatpush.bf16.msra.mxu0 %v1962
  %2016 = vmatpush.bf16.msra.mxu0 %v1960
  %2017 = vmatmul.bf16.gmra.mxu0 %v1987
  %v2018 = vpop.f32.mrf.mxu0
  %v2019 = vadd.f32 %v1917, %v2018
  %v2020 = vpop.f32.mrf.mxu0
  %2021 = vdwg.mxu0
  %v2022 = vld [vmem:[%s1] sm:$0xff]
  %v2023 = vmul.f32 %v2019, 0.5
  %v2024 = vmul.f32 %v2023, 1.442695
  %v2025 = vpow.pop %v2024
  %v2026 = vmul.f32 %v2022, %v2025
  %v2027 = vadd.f32 %v2026, %v2006
  %v2028 = vpack.c.bf16 %v2027, %v2027
  %v2029 = vld [vmem:[%s8] sm:$0xf]
  %v2030 = vld [vmem:[%s8 + $0x4] sm:$0xf]
  %v2031 = vld [vmem:[%s8 + $0x8] sm:$0xf]
  %v2032 = vld [vmem:[%s8 + $0xc] sm:$0xf]
  %v2033 = vld [vmem:[%s8 + $0x10] sm:$0xf]
  %v2034 = vld [vmem:[%s8 + $0x14] sm:$0xf]
  %v2035 = vld [vmem:[%s8 + $0x18] sm:$0xf]
  %v2036 = vld [vmem:[%s8 + $0x1c] sm:$0xf]
  %v2037 = vld [vmem:[%s8 + $0x20] sm:$0xf]
  %v2038 = vld [vmem:[%s8 + $0x24] sm:$0xf]
  %v2039 = vld [vmem:[%s8 + $0x28] sm:$0xf]
  %v2040 = vld [vmem:[%s8 + $0x2c] sm:$0xf]
  %v2041 = vld [vmem:[%s8 + $0x30] sm:$0xf]
  %v2042 = vld [vmem:[%s8 + $0x34] sm:$0xf]
  %v2043 = vld [vmem:[%s8 + $0x38] sm:$0xf]
  %v2044 = vld [vmem:[%s8 + $0x3c] sm:$0xf]
  %v2045 = vld [vmem:[%s9] sm:$0x1]
  %v2047 = vperm.slane %v2045, 0
  %v2065 = vunpack.c.l.b16 %v2029
  %v2066 = vunpack.c.l.b16 %v2030
  %v2067 = vunpack.c.l.b16 %v2031
  %v2068 = vunpack.c.l.b16 %v2032
  %v2069 = vunpack.c.l.b16 %v2033
  %v2070 = vunpack.c.l.b16 %v2034
  %v2071 = vunpack.c.l.b16 %v2035
  %v2072 = vunpack.c.l.b16 %v2036
  %v2073 = vunpack.c.l.b16 %v2037
  %v2074 = vunpack.c.l.b16 %v2038
  %v2075 = vunpack.c.l.b16 %v2039
  %v2076 = vunpack.c.l.b16 %v2040
  %v2077 = vunpack.c.l.b16 %v2041
  %v2078 = vunpack.c.l.b16 %v2042
  %v2079 = vunpack.c.l.b16 %v2043
  %v2080 = vunpack.c.l.b16 %v2044
  %v2081 = vpack.c.b16 %v2066, %v2065
  %v2082 = vpack.c.b16 %v2068, %v2067
  %v2083 = vpack.c.b16 %v2070, %v2069
  %v2084 = vpack.c.b16 %v2072, %v2071
  %v2085 = vpack.c.b16 %v2074, %v2073
  %v2086 = vpack.c.b16 %v2076, %v2075
  %v2087 = vpack.c.b16 %v2078, %v2077
  %v2088 = vpack.c.b16 %v2080, %v2079
  %2097 = vmatpush.bf16.msra.mxu0 %v2088
  %2098 = vmatpush.bf16.msra.mxu0 %v2087
  %2099 = vmatpush.bf16.msra.mxu0 %v2086
  %2100 = vmatpush.bf16.msra.mxu0 %v2085
  %2101 = vmatpush.bf16.msra.mxu0 %v2084
  %2102 = vmatpush.bf16.msra.mxu0 %v2083
  %2103 = vmatpush.bf16.msra.mxu0 %v2082
  %2104 = vmatpush.bf16.msra.mxu0 %v2081
  %2105 = vmatmul.bf16.gmra.mxu0 %v2028
  %v2106 = vpop.f32.mrf.mxu0
  %v2107 = vadd.f32 %v2047, %v2106
  %v2108 = vpop.f32.mrf.mxu0
  %2109 = vdwg.mxu0
  %v2110 = vmax.f32 %v2107, 0.0
  %v2111 = vpack.c.bf16 %v2110, %v2110
  %v2112 = vld [vmem:[%s10] sm:$0xff]
  %v2113 = vld [vmem:[%s10 + $0x8] sm:$0xff]
  %v2114 = vld [vmem:[%s10 + $0x10] sm:$0xff]
  %v2115 = vld [vmem:[%s10 + $0x18] sm:$0xff]
  %v2116 = vld [vmem:[%s10 + $0x20] sm:$0xff]
  %v2117 = vld [vmem:[%s10 + $0x28] sm:$0xff]
  %v2118 = vld [vmem:[%s10 + $0x30] sm:$0xff]
  %v2119 = vld [vmem:[%s10 + $0x38] sm:$0xff]
  %v2120 = vld [vmem:[%s10 + $0x40] sm:$0xff]
  %v2121 = vld [vmem:[%s10 + $0x48] sm:$0xff]
  %v2122 = vld [vmem:[%s10 + $0x50] sm:$0xff]
  %v2123 = vld [vmem:[%s10 + $0x58] sm:$0xff]
  %v2124 = vld [vmem:[%s10 + $0x60] sm:$0xff]
  %v2125 = vld [vmem:[%s10 + $0x68] sm:$0xff]
  %v2126 = vld [vmem:[%s10 + $0x70] sm:$0xff]
  %v2127 = vld [vmem:[%s10 + $0x78] sm:$0xff]
  %v2128 = vld [vmem:[%s10 + $0x80] sm:$0xff]
  %v2129 = vld [vmem:[%s10 + $0x88] sm:$0xff]
  %v2130 = vld [vmem:[%s10 + $0x90] sm:$0xff]
  %v2131 = vld [vmem:[%s10 + $0x98] sm:$0xff]
  %v2132 = vld [vmem:[%s10 + $0xa0] sm:$0xff]
  %v2133 = vld [vmem:[%s10 + $0xa8] sm:$0xff]
  %v2134 = vld [vmem:[%s10 + $0xb0] sm:$0xff]
  %v2135 = vld [vmem:[%s10 + $0xb8] sm:$0xff]
  %v2136 = vld [vmem:[%s10 + $0xc0] sm:$0x33]
  %v2137 = vld [vmem:[%s10 + $0xc8] sm:$0x33]
  %v2138 = vld [vmem:[%s11] sm:$0xf]
  %v2140 = vperm.slane %v2138, 0
  %v2141 = vperm.slane %v2138, 1
  %v2142 = vperm.slane %v2138, 2
  %v2143 = vperm.slane %v2138, 3
  %v2174 = vunpack.c.l.b16 %v2112
  %v2175 = vunpack.c.h.b16 %v2112
  %v2176 = vunpack.c.l.b16 %v2113
  %v2177 = vunpack.c.h.b16 %v2113
  %v2178 = vunpack.c.l.b16 %v2114
  %v2179 = vunpack.c.h.b16 %v2114
  %v2180 = vunpack.c.l.b16 %v2115
  %v2181 = vunpack.c.h.b16 %v2115
  %v2182 = vunpack.c.l.b16 %v2116
  %v2183 = vunpack.c.h.b16 %v2116
  %v2184 = vunpack.c.l.b16 %v2117
  %v2185 = vunpack.c.h.b16 %v2117
  %v2186 = vunpack.c.l.b16 %v2118
  %v2187 = vunpack.c.h.b16 %v2118
  %v2188 = vunpack.c.l.b16 %v2119
  %v2189 = vunpack.c.h.b16 %v2119
  %v2190 = vunpack.c.l.b16 %v2120
  %v2191 = vunpack.c.h.b16 %v2120
  %v2192 = vunpack.c.l.b16 %v2121
  %v2193 = vunpack.c.h.b16 %v2121
  %v2194 = vunpack.c.l.b16 %v2122
  %v2195 = vunpack.c.h.b16 %v2122
  %v2196 = vunpack.c.l.b16 %v2123
  %v2197 = vunpack.c.h.b16 %v2123
  %v2198 = vunpack.c.l.b16 %v2124
  %v2199 = vunpack.c.h.b16 %v2124
  %v2200 = vunpack.c.l.b16 %v2125
  %v2201 = vunpack.c.h.b16 %v2125
  %v2202 = vunpack.c.l.b16 %v2126
  %v2203 = vunpack.c.h.b16 %v2126
  %v2204 = vunpack.c.l.b16 %v2127
  %v2205 = vunpack.c.h.b16 %v2127
  %v2206 = vunpack.c.l.b16 %v2128
  %v2207 = vunpack.c.h.b16 %v2128
  %v2208 = vunpack.c.l.b16 %v2129
  %v2209 = vunpack.c.h.b16 %v2129
  %v2210 = vunpack.c.l.b16 %v2130
  %v2211 = vunpack.c.h.b16 %v2130
  %v2212 = vunpack.c.l.b16 %v2131
  %v2213 = vunpack.c.h.b16 %v2131
  %v2214 = vunpack.c.l.b16 %v2132
  %v2215 = vunpack.c.h.b16 %v2132
  %v2216 = vunpack.c.l.b16 %v2133
  %v2217 = vunpack.c.h.b16 %v2133
  %v2218 = vunpack.c.l.b16 %v2134
  %v2219 = vunpack.c.h.b16 %v2134
  %v2220 = vunpack.c.l.b16 %v2135
  %v2221 = vunpack.c.h.b16 %v2135
  %v2222 = vunpack.c.l.b16 %v2136
  %v2223 = vunpack.c.h.b16 %v2136
  %v2224 = vunpack.c.l.b16 %v2137
  %v2225 = vunpack.c.h.b16 %v2137
  %v2226 = vpack.c.b16 %v2178, %v2174
  %v2227 = vpack.c.b16 %v2179, %v2175
  %v2228 = vpack.c.b16 %v2180, %v2176
  %v2229 = vpack.c.b16 %v2181, %v2177
  %v2230 = vpack.c.b16 %v2186, %v2182
  %v2231 = vpack.c.b16 %v2187, %v2183
  %v2232 = vpack.c.b16 %v2188, %v2184
  %v2233 = vpack.c.b16 %v2189, %v2185
  %v2234 = vpack.c.b16 %v2194, %v2190
  %v2235 = vpack.c.b16 %v2195, %v2191
  %v2236 = vpack.c.b16 %v2196, %v2192
  %v2237 = vpack.c.b16 %v2197, %v2193
  %v2238 = vpack.c.b16 %v2202, %v2198
  %v2239 = vpack.c.b16 %v2203, %v2199
  %v2240 = vpack.c.b16 %v2204, %v2200
  %v2241 = vpack.c.b16 %v2205, %v2201
  %v2242 = vpack.c.b16 %v2210, %v2206
  %v2243 = vpack.c.b16 %v2211, %v2207
  %v2244 = vpack.c.b16 %v2212, %v2208
  %v2245 = vpack.c.b16 %v2213, %v2209
  %v2246 = vpack.c.b16 %v2218, %v2214
  %v2247 = vpack.c.b16 %v2219, %v2215
  %v2248 = vpack.c.b16 %v2220, %v2216
  %v2249 = vpack.c.b16 %v2221, %v2217
  %v2250 = vpack.c.b16 %v2222, %v2222
  %v2251 = vpack.c.b16 %v2223, %v2223
  %v2252 = vpack.c.b16 %v2224, %v2224
  %v2253 = vpack.c.b16 %v2225, %v2225
  %v2279 = vsel %vm1985, %v2111, 0
  %v2282 = vsel %vm1989, %v2250, 0
  %v2285 = vsel %vm1989, %v2251, 0
  %v2288 = vsel %vm1989, %v2252, 0
  %v2291 = vsel %vm1989, %v2253, 0
  %2293 = vmatpush.bf16.msra.mxu0 0
  %2294 = vmatpush.bf16.msra.mxu0 %v2282
  %2295 = vmatpush.bf16.msra.mxu0 %v2246
  %2296 = vmatpush.bf16.msra.mxu0 %v2242
  %2297 = vmatpush.bf16.msra.mxu0 %v2238
  %2298 = vmatpush.bf16.msra.mxu0 %v2234
  %2299 = vmatpush.bf16.msra.mxu0 %v2230
  %2300 = vmatpush.bf16.msra.mxu0 %v2226
  %2301 = vmatmul.bf16.gmra.mxu0 %v2279
  %v2302 = vpop.f32.mrf.mxu0
  %v2303 = vadd.f32 %v2140, %v2302
  %v2304 = vpop.f32.mrf.mxu0
  %2305 = vdwg.mxu0
  %2306 = vmatpush.bf16.msra.mxu0 0
  %2307 = vmatpush.bf16.msra.mxu0 %v2285
  %2308 = vmatpush.bf16.msra.mxu0 %v2247
  %2309 = vmatpush.bf16.msra.mxu0 %v2243
  %2310 = vmatpush.bf16.msra.mxu0 %v2239
  %2311 = vmatpush.bf16.msra.mxu0 %v2235
  %2312 = vmatpush.bf16.msra.mxu0 %v2231
  %2313 = vmatpush.bf16.msra.mxu0 %v2227
  %2314 = vmatmul.bf16.gmra.mxu0 %v2279
  %v2315 = vpop.f32.mrf.mxu0
  %v2316 = vadd.f32 %v2141, %v2315
  %v2317 = vpop.f32.mrf.mxu0
  %2318 = vdwg.mxu0
  %2319 = vmatpush.bf16.msra.mxu0 0
  %2320 = vmatpush.bf16.msra.mxu0 %v2288
  %2321 = vmatpush.bf16.msra.mxu0 %v2248
  %2322 = vmatpush.bf16.msra.mxu0 %v2244
  %2323 = vmatpush.bf16.msra.mxu0 %v2240
  %2324 = vmatpush.bf16.msra.mxu0 %v2236
  %2325 = vmatpush.bf16.msra.mxu0 %v2232
  %2326 = vmatpush.bf16.msra.mxu0 %v2228
  %2327 = vmatmul.bf16.gmra.mxu0 %v2279
  %v2328 = vpop.f32.mrf.mxu0
  %v2329 = vadd.f32 %v2142, %v2328
  %v2330 = vpop.f32.mrf.mxu0
  %2331 = vdwg.mxu0
  %2332 = vmatpush.bf16.msra.mxu0 0
  %2333 = vmatpush.bf16.msra.mxu0 %v2291
  %2334 = vmatpush.bf16.msra.mxu0 %v2249
  %2335 = vmatpush.bf16.msra.mxu0 %v2245
  %2336 = vmatpush.bf16.msra.mxu0 %v2241
  %2337 = vmatpush.bf16.msra.mxu0 %v2237
  %2338 = vmatpush.bf16.msra.mxu0 %v2233
  %2339 = vmatpush.bf16.msra.mxu0 %v2229
  %2340 = vmatmul.bf16.gmra.mxu0 %v2279
  %v2341 = vpop.f32.mrf.mxu0
  %v2342 = vadd.f32 %v2143, %v2341
  %v2343 = vpop.f32.mrf.mxu0
  %2344 = vdwg.mxu0
  %v2345 = vmax.f32 %v2303, 0.0
  %v2346 = vmax.f32 %v2316, 0.0
  %v2347 = vmax.f32 %v2329, 0.0
  %v2348 = vmax.f32 %v2342, 0.0
  %v2349 = vpack.c.bf16 %v2345, %v2345
  %v2350 = vpack.c.bf16 %v2346, %v2346
  %v2351 = vpack.c.bf16 %v2347, %v2347
  %v2352 = vpack.c.bf16 %v2348, %v2348
  %v2353 = vld [vmem:[%s12] sm:$0xff]
  %v2354 = vld [vmem:[%s12 + $0x8] sm:$0xff]
  %v2355 = vld [vmem:[%s12 + $0x10] sm:$0xff]
  %v2356 = vld [vmem:[%s12 + $0x18] sm:$0xf]
  %v2357 = vld [vmem:[%s12 + $0x1c] sm:$0xff]
  %v2358 = vld [vmem:[%s12 + $0x24] sm:$0xff]
  %v2359 = vld [vmem:[%s12 + $0x2c] sm:$0xff]
  %v2360 = vld [vmem:[%s12 + $0x34] sm:$0xf]
  %v2361 = vld [vmem:[%s12 + $0x38] sm:$0xff]
  %v2362 = vld [vmem:[%s12 + $0x40] sm:$0xff]
  %v2363 = vld [vmem:[%s12 + $0x48] sm:$0xff]
  %v2364 = vld [vmem:[%s12 + $0x50] sm:$0xf]
  %v2365 = vld [vmem:[%s12 + $0x54] sm:$0xff]
  %v2366 = vld [vmem:[%s12 + $0x5c] sm:$0xff]
  %v2367 = vld [vmem:[%s12 + $0x64] sm:$0xff]
  %v2368 = vld [vmem:[%s12 + $0x6c] sm:$0xf]
  %v2369 = vld [vmem:[%s12 + $0x70] sm:$0xff]
  %v2370 = vld [vmem:[%s12 + $0x78] sm:$0xff]
  %v2371 = vld [vmem:[%s12 + $0x80] sm:$0xff]
  %v2372 = vld [vmem:[%s12 + $0x88] sm:$0xf]
  %v2373 = vld [vmem:[%s12 + $0x8c] sm:$0xff]
  %v2374 = vld [vmem:[%s12 + $0x94] sm:$0xff]
  %v2375 = vld [vmem:[%s12 + $0x9c] sm:$0xff]
  %v2376 = vld [vmem:[%s12 + $0xa4] sm:$0xf]
  %v2377 = vld [vmem:[%s12 + $0xa8] sm:$0xff]
  %v2378 = vld [vmem:[%s12 + $0xb0] sm:$0xff]
  %v2379 = vld [vmem:[%s12 + $0xb8] sm:$0xff]
  %v2380 = vld [vmem:[%s12 + $0xc0] sm:$0xf]
  %v2381 = vld [vmem:[%s12 + $0xc4] sm:$0xff]
  %v2382 = vld [vmem:[%s12 + $0xcc] sm:$0xff]
  %v2383 = vld [vmem:[%s12 + $0xd4] sm:$0xff]
  %v2384 = vld [vmem:[%s12 + $0xdc] sm:$0xf]
  %v2385 = vld [vmem:[%s12 + $0xe0] sm:$0xff]
  %v2386 = vld [vmem:[%s12 + $0xe8] sm:$0xff]
  %v2387 = vld [vmem:[%s12 + $0xf0] sm:$0xff]
  %v2388 = vld [vmem:[%s12 + $0xf8] sm:$0xf]
  %v2389 = vld [vmem:[%s12 + $0xfc] sm:$0xff]
  %v2390 = vld [vmem:[%s12 + $0x104] sm:$0xff]
  %v2391 = vld [vmem:[%s12 + $0x10c] sm:$0xff]
  %v2392 = vld [vmem:[%s12 + $0x114] sm:$0xf]
  %v2393 = vld [vmem:[%s12 + $0x118] sm:$0xff]
  %v2394 = vld [vmem:[%s12 + $0x120] sm:$0xff]
  %v2395 = vld [vmem:[%s12 + $0x128] sm:$0xff]
  %v2396 = vld [vmem:[%s12 + $0x130] sm:$0xf]
  %v2397 = vld [vmem:[%s12 + $0x134] sm:$0xff]
  %v2398 = vld [vmem:[%s12 + $0x13c] sm:$0xff]
  %v2399 = vld [vmem:[%s12 + $0x144] sm:$0xff]
  %v2400 = vld [vmem:[%s12 + $0x14c] sm:$0xf]
  %v2401 = vld [vmem:[%s12 + $0x150] sm:$0xff]
  %v2402 = vld [vmem:[%s12 + $0x158] sm:$0xff]
  %v2403 = vld [vmem:[%s12 + $0x160] sm:$0xff]
  %v2404 = vld [vmem:[%s12 + $0x168] sm:$0xf]
  %v2405 = vld [vmem:[%s12 + $0x16c] sm:$0xff]
  %v2406 = vld [vmem:[%s12 + $0x174] sm:$0xff]
  %v2407 = vld [vmem:[%s12 + $0x17c] sm:$0xff]
  %v2408 = vld [vmem:[%s12 + $0x184] sm:$0xf]
  %v2409 = vld [vmem:[%s12 + $0x188] sm:$0xff]
  %v2410 = vld [vmem:[%s12 + $0x190] sm:$0xff]
  %v2411 = vld [vmem:[%s12 + $0x198] sm:$0xff]
  %v2412 = vld [vmem:[%s12 + $0x1a0] sm:$0xf]
  %v2413 = vld [vmem:[%s12 + $0x1a4] sm:$0xff]
  %v2414 = vld [vmem:[%s12 + $0x1ac] sm:$0xff]
  %v2415 = vld [vmem:[%s12 + $0x1b4] sm:$0xff]
  %v2416 = vld [vmem:[%s12 + $0x1bc] sm:$0xf]
  %v2417 = vld [vmem:[%s12 + $0x1c0] sm:$0xff]
  %v2418 = vld [vmem:[%s12 + $0x1c8] sm:$0xff]
  %v2419 = vld [vmem:[%s12 + $0x1d0] sm:$0xff]
  %v2420 = vld [vmem:[%s12 + $0x1d8] sm:$0xf]
  %v2421 = vld [vmem:[%s12 + $0x1dc] sm:$0xff]
  %v2422 = vld [vmem:[%s12 + $0x1e4] sm:$0xff]
  %v2423 = vld [vmem:[%s12 + $0x1ec] sm:$0xff]
  %v2424 = vld [vmem:[%s12 + $0x1f4] sm:$0xf]
  %v2425 = vld [vmem:[%s12 + $0x1f8] sm:$0xff]
  %v2426 = vld [vmem:[%s12 + $0x200] sm:$0xff]
  %v2427 = vld [vmem:[%s12 + $0x208] sm:$0xff]
  %v2428 = vld [vmem:[%s12 + $0x210] sm:$0xf]
  %v2429 = vld [vmem:[%s12 + $0x214] sm:$0xff]
  %v2430 = vld [vmem:[%s12 + $0x21c] sm:$0xff]
  %v2431 = vld [vmem:[%s12 + $0x224] sm:$0xff]
  %v2432 = vld [vmem:[%s12 + $0x22c] sm:$0xf]
  %v2433 = vld [vmem:[%s12 + $0x230] sm:$0xff]
  %v2434 = vld [vmem:[%s12 + $0x238] sm:$0xff]
  %v2435 = vld [vmem:[%s12 + $0x240] sm:$0xff]
  %v2436 = vld [vmem:[%s12 + $0x248] sm:$0xf]
  %v2437 = vld [vmem:[%s12 + $0x24c] sm:$0xff]
  %v2438 = vld [vmem:[%s12 + $0x254] sm:$0xff]
  %v2439 = vld [vmem:[%s12 + $0x25c] sm:$0xff]
  %v2440 = vld [vmem:[%s12 + $0x264] sm:$0xf]
  %v2441 = vld [vmem:[%s12 + $0x268] sm:$0xff]
  %v2442 = vld [vmem:[%s12 + $0x270] sm:$0xff]
  %v2443 = vld [vmem:[%s12 + $0x278] sm:$0xff]
  %v2444 = vld [vmem:[%s12 + $0x280] sm:$0xf]
  %v2445 = vld [vmem:[%s12 + $0x284] sm:$0xff]
  %v2446 = vld [vmem:[%s12 + $0x28c] sm:$0xff]
  %v2447 = vld [vmem:[%s12 + $0x294] sm:$0xff]
  %v2448 = vld [vmem:[%s12 + $0x29c] sm:$0xf]
  %v2449 = vld [vmem:[%s12 + $0x2a0] sm:$0xff]
  %v2450 = vld [vmem:[%s12 + $0x2a8] sm:$0xff]
  %v2451 = vld [vmem:[%s12 + $0x2b0] sm:$0xff]
  %v2452 = vld [vmem:[%s12 + $0x2b8] sm:$0xf]
  %v2453 = vld [vmem:[%s12 + $0x2bc] sm:$0xff]
  %v2454 = vld [vmem:[%s12 + $0x2c4] sm:$0xff]
  %v2455 = vld [vmem:[%s12 + $0x2cc] sm:$0xff]
  %v2456 = vld [vmem:[%s12 + $0x2d4] sm:$0xf]
  %v2457 = vld [vmem:[%s12 + $0x2d8] sm:$0xff]
  %v2458 = vld [vmem:[%s12 + $0x2e0] sm:$0xff]
  %v2459 = vld [vmem:[%s12 + $0x2e8] sm:$0xff]
  %v2460 = vld [vmem:[%s12 + $0x2f0] sm:$0xf]
  %v2461 = vld [vmem:[%s12 + $0x2f4] sm:$0xff]
  %v2462 = vld [vmem:[%s12 + $0x2fc] sm:$0xff]
  %v2463 = vld [vmem:[%s12 + $0x304] sm:$0xff]
  %v2464 = vld [vmem:[%s12 + $0x30c] sm:$0xf]
  %v2465 = vld [vmem:[%s12 + $0x310] sm:$0xff]
  %v2466 = vld [vmem:[%s12 + $0x318] sm:$0xff]
  %v2467 = vld [vmem:[%s12 + $0x320] sm:$0xff]
  %v2468 = vld [vmem:[%s12 + $0x328] sm:$0xf]
  %v2469 = vld [vmem:[%s12 + $0x32c] sm:$0xff]
  %v2470 = vld [vmem:[%s12 + $0x334] sm:$0xff]
  %v2471 = vld [vmem:[%s12 + $0x33c] sm:$0xff]
  %v2472 = vld [vmem:[%s12 + $0x344] sm:$0xf]
  %v2473 = vld [vmem:[%s12 + $0x348] sm:$0xff]
  %v2474 = vld [vmem:[%s12 + $0x350] sm:$0xff]
  %v2475 = vld [vmem:[%s12 + $0x358] sm:$0xff]
  %v2476 = vld [vmem:[%s12 + $0x360] sm:$0xf]
  %v2477 = vld [vmem:[%s12 + $0x364] sm:$0xff]
  %v2478 = vld [vmem:[%s12 + $0x36c] sm:$0xff]
  %v2479 = vld [vmem:[%s12 + $0x374] sm:$0xff]
  %v2480 = vld [vmem:[%s12 + $0x37c] sm:$0xf]
  %v2481 = vld [vmem:[%s12 + $0x380] sm:$0xff]
  %v2482 = vld [vmem:[%s12 + $0x388] sm:$0xff]
  %v2483 = vld [vmem:[%s12 + $0x390] sm:$0xff]
  %v2484 = vld [vmem:[%s12 + $0x398] sm:$0xf]
  %v2485 = vld [vmem:[%s12 + $0x39c] sm:$0xff]
  %v2486 = vld [vmem:[%s12 + $0x3a4] sm:$0xff]
  %v2487 = vld [vmem:[%s12 + $0x3ac] sm:$0xff]
  %v2488 = vld [vmem:[%s12 + $0x3b4] sm:$0xf]
  %v2489 = vld [vmem:[%s12 + $0x3b8] sm:$0xff]
  %v2490 = vld [vmem:[%s12 + $0x3c0] sm:$0xff]
  %v2491 = vld [vmem:[%s12 + $0x3c8] sm:$0xff]
  %v2492 = vld [vmem:[%s12 + $0x3d0] sm:$0xf]
  %v2493 = vld [vmem:[%s12 + $0x3d4] sm:$0xff]
  %v2494 = vld [vmem:[%s12 + $0x3dc] sm:$0xff]
  %v2495 = vld [vmem:[%s12 + $0x3e4] sm:$0xff]
  %v2496 = vld [vmem:[%s12 + $0x3ec] sm:$0xf]
  %v2497 = vld [vmem:[%s12 + $0x3f0] sm:$0xff]
  %v2498 = vld [vmem:[%s12 + $0x3f8] sm:$0xff]
  %v2499 = vld [vmem:[%s12 + $0x400] sm:$0xff]
  %v2500 = vld [vmem:[%s12 + $0x408] sm:$0xf]
  %v2501 = vld [vmem:[%s12 + $0x40c] sm:$0xff]
  %v2502 = vld [vmem:[%s12 + $0x414] sm:$0xff]
  %v2503 = vld [vmem:[%s12 + $0x41c] sm:$0xff]
  %v2504 = vld [vmem:[%s12 + $0x424] sm:$0xf]
  %v2505 = vld [vmem:[%s12 + $0x428] sm:$0xff]
  %v2506 = vld [vmem:[%s12 + $0x430] sm:$0xff]
  %v2507 = vld [vmem:[%s12 + $0x438] sm:$0xff]
  %v2508 = vld [vmem:[%s12 + $0x440] sm:$0xf]
  %v2509 = vld [vmem:[%s12 + $0x444] sm:$0xff]
  %v2510 = vld [vmem:[%s12 + $0x44c] sm:$0xff]
  %v2511 = vld [vmem:[%s12 + $0x454] sm:$0xff]
  %v2512 = vld [vmem:[%s12 + $0x45c] sm:$0xf]
  %v2513 = vld [vmem:[%s12 + $0x460] sm:$0xff]
  %v2514 = vld [vmem:[%s12 + $0x468] sm:$0xff]
  %v2515 = vld [vmem:[%s12 + $0x470] sm:$0xff]
  %v2516 = vld [vmem:[%s12 + $0x478] sm:$0xf]
  %v2517 = vld [vmem:[%s12 + $0x47c] sm:$0xff]
  %v2518 = vld [vmem:[%s12 + $0x484] sm:$0xff]
  %v2519 = vld [vmem:[%s12 + $0x48c] sm:$0xff]
  %v2520 = vld [vmem:[%s12 + $0x494] sm:$0xf]
  %v2521 = vld [vmem:[%s12 + $0x498] sm:$0xff]
  %v2522 = vld [vmem:[%s12 + $0x4a0] sm:$0xff]
  %v2523 = vld [vmem:[%s12 + $0x4a8] sm:$0xff]
  %v2524 = vld [vmem:[%s12 + $0x4b0] sm:$0xf]
  %v2525 = vld [vmem:[%s12 + $0x4b4] sm:$0xff]
  %v2526 = vld [vmem:[%s12 + $0x4bc] sm:$0xff]
  %v2527 = vld [vmem:[%s12 + $0x4c4] sm:$0xff]
  %v2528 = vld [vmem:[%s12 + $0x4cc] sm:$0xf]
  %v2529 = vld [vmem:[%s12 + $0x4d0] sm:$0xff]
  %v2530 = vld [vmem:[%s12 + $0x4d8] sm:$0xff]
  %v2531 = vld [vmem:[%s12 + $0x4e0] sm:$0xff]
  %v2532 = vld [vmem:[%s12 + $0x4e8] sm:$0xf]
  %v2533 = vld [vmem:[%s12 + $0x4ec] sm:$0xff]
  %v2534 = vld [vmem:[%s12 + $0x4f4] sm:$0xff]
  %v2535 = vld [vmem:[%s12 + $0x4fc] sm:$0xff]
  %v2536 = vld [vmem:[%s12 + $0x504] sm:$0xf]
  %v2537 = vld [vmem:[%s12 + $0x508] sm:$0xff]
  %v2538 = vld [vmem:[%s12 + $0x510] sm:$0xff]
  %v2539 = vld [vmem:[%s12 + $0x518] sm:$0xff]
  %v2540 = vld [vmem:[%s12 + $0x520] sm:$0xf]
  %v2541 = vld [vmem:[%s12 + $0x524] sm:$0xff]
  %v2542 = vld [vmem:[%s12 + $0x52c] sm:$0xff]
  %v2543 = vld [vmem:[%s12 + $0x534] sm:$0xff]
  %v2544 = vld [vmem:[%s12 + $0x53c] sm:$0xf]
  %v2545 = vld [vmem:[%s12 + $0x540] sm:$0xff]
  %v2546 = vld [vmem:[%s12 + $0x548] sm:$0xff]
  %v2547 = vld [vmem:[%s12 + $0x550] sm:$0xff]
  %v2548 = vld [vmem:[%s12 + $0x558] sm:$0xf]
  %v2549 = vld [vmem:[%s12 + $0x55c] sm:$0xff]
  %v2550 = vld [vmem:[%s12 + $0x564] sm:$0xff]
  %v2551 = vld [vmem:[%s12 + $0x56c] sm:$0xff]
  %v2552 = vld [vmem:[%s12 + $0x574] sm:$0xf]
  %v2553 = vld [vmem:[%s13] sm:$0x7f]
  %v2555 = vperm.slane %v2553, 0
  %v2556 = vperm.slane %v2553, 1
  %v2557 = vperm.slane %v2553, 2
  %v2558 = vperm.slane %v2553, 3
  %v2559 = vperm.slane %v2553, 4
  %v2560 = vperm.slane %v2553, 5
  %v2561 = vperm.slane %v2553, 6
  %v2769 = vunpack.c.l.b16 %v2353
  %v2770 = vunpack.c.h.b16 %v2353
  %v2771 = vunpack.c.l.b16 %v2354
  %v2772 = vunpack.c.h.b16 %v2354
  %v2773 = vunpack.c.l.b16 %v2355
  %v2774 = vunpack.c.h.b16 %v2355
  %v2775 = vunpack.c.l.b16 %v2356
  %v2776 = vunpack.c.l.b16 %v2357
  %v2777 = vunpack.c.h.b16 %v2357
  %v2778 = vunpack.c.l.b16 %v2358
  %v2779 = vunpack.c.h.b16 %v2358
  %v2780 = vunpack.c.l.b16 %v2359
  %v2781 = vunpack.c.h.b16 %v2359
  %v2782 = vunpack.c.l.b16 %v2360
  %v2783 = vunpack.c.l.b16 %v2361
  %v2784 = vunpack.c.h.b16 %v2361
  %v2785 = vunpack.c.l.b16 %v2362
  %v2786 = vunpack.c.h.b16 %v2362
  %v2787 = vunpack.c.l.b16 %v2363
  %v2788 = vunpack.c.h.b16 %v2363
  %v2789 = vunpack.c.l.b16 %v2364
  %v2790 = vunpack.c.l.b16 %v2365
  %v2791 = vunpack.c.h.b16 %v2365
  %v2792 = vunpack.c.l.b16 %v2366
  %v2793 = vunpack.c.h.b16 %v2366
  %v2794 = vunpack.c.l.b16 %v2367
  %v2795 = vunpack.c.h.b16 %v2367
  %v2796 = vunpack.c.l.b16 %v2368
  %v2797 = vunpack.c.l.b16 %v2369
  %v2798 = vunpack.c.h.b16 %v2369
  %v2799 = vunpack.c.l.b16 %v2370
  %v2800 = vunpack.c.h.b16 %v2370
  %v2801 = vunpack.c.l.b16 %v2371
  %v2802 = vunpack.c.h.b16 %v2371
  %v2803 = vunpack.c.l.b16 %v2372
  %v2804 = vunpack.c.l.b16 %v2373
  %v2805 = vunpack.c.h.b16 %v2373
  %v2806 = vunpack.c.l.b16 %v2374
  %v2807 = vunpack.c.h.b16 %v2374
  %v2808 = vunpack.c.l.b16 %v2375
  %v2809 = vunpack.c.h.b16 %v2375
  %v2810 = vunpack.c.l.b16 %v2376
  %v2811 = vunpack.c.l.b16 %v2377
  %v2812 = vunpack.c.h.b16 %v2377
  %v2813 = vunpack.c.l.b16 %v2378
  %v2814 = vunpack.c.h.b16 %v2378
  %v2815 = vunpack.c.l.b16 %v2379
  %v2816 = vunpack.c.h.b16 %v2379
  %v2817 = vunpack.c.l.b16 %v2380
  %v2818 = vunpack.c.l.b16 %v2381
  %v2819 = vunpack.c.h.b16 %v2381
  %v2820 = vunpack.c.l.b16 %v2382
  %v2821 = vunpack.c.h.b16 %v2382
  %v2822 = vunpack.c.l.b16 %v2383
  %v2823 = vunpack.c.h.b16 %v2383
  %v2824 = vunpack.c.l.b16 %v2384
  %v2825 = vunpack.c.l.b16 %v2385
  %v2826 = vunpack.c.h.b16 %v2385
  %v2827 = vunpack.c.l.b16 %v2386
  %v2828 = vunpack.c.h.b16 %v2386
  %v2829 = vunpack.c.l.b16 %v2387
  %v2830 = vunpack.c.h.b16 %v2387
  %v2831 = vunpack.c.l.b16 %v2388
  %v2832 = vunpack.c.l.b16 %v2389
  %v2833 = vunpack.c.h.b16 %v2389
  %v2834 = vunpack.c.l.b16 %v2390
  %v2835 = vunpack.c.h.b16 %v2390
  %v2836 = vunpack.c.l.b16 %v2391
  %v2837 = vunpack.c.h.b16 %v2391
  %v2838 = vunpack.c.l.b16 %v2392
  %v2839 = vunpack.c.l.b16 %v2393
  %v2840 = vunpack.c.h.b16 %v2393
  %v2841 = vunpack.c.l.b16 %v2394
  %v2842 = vunpack.c.h.b16 %v2394
  %v2843 = vunpack.c.l.b16 %v2395
  %v2844 = vunpack.c.h.b16 %v2395
  %v2845 = vunpack.c.l.b16 %v2396
  %v2846 = vunpack.c.l.b16 %v2397
  %v2847 = vunpack.c.h.b16 %v2397
  %v2848 = vunpack.c.l.b16 %v2398
  %v2849 = vunpack.c.h.b16 %v2398
  %v2850 = vunpack.c.l.b16 %v2399
  %v2851 = vunpack.c.h.b16 %v2399
  %v2852 = vunpack.c.l.b16 %v2400
  %v2853 = vunpack.c.l.b16 %v2401
  %v2854 = vunpack.c.h.b16 %v2401
  %v2855 = vunpack.c.l.b16 %v2402
  %v2856 = vunpack.c.h.b16 %v2402
  %v2857 = vunpack.c.l.b16 %v2403
  %v2858 = vunpack.c.h.b16 %v2403
  %v2859 = vunpack.c.l.b16 %v2404
  %v2860 = vunpack.c.l.b16 %v2405
  %v2861 = vunpack.c.h.b16 %v2405
  %v2862 = vunpack.c.l.b16 %v2406
  %v2863 = vunpack.c.h.b16 %v2406
  %v2864 = vunpack.c.l.b16 %v2407
  %v2865 = vunpack.c.h.b16 %v2407
  %v2866 = vunpack.c.l.b16 %v2408
  %v2867 = vunpack.c.l.b16 %v2409
  %v2868 = vunpack.c.h.b16 %v2409
  %v2869 = vunpack.c.l.b16 %v2410
  %v2870 = vunpack.c.h.b16 %v2410
  %v2871 = vunpack.c.l.b16 %v2411
  %v2872 = vunpack.c.h.b16 %v2411
  %v2873 = vunpack.c.l.b16 %v2412
  %v2874 = vunpack.c.l.b16 %v2413
  %v2875 = vunpack.c.h.b16 %v2413
  %v2876 = vunpack.c.l.b16 %v2414
  %v2877 = vunpack.c.h.b16 %v2414
  %v2878 = vunpack.c.l.b16 %v2415
  %v2879 = vunpack.c.h.b16 %v2415
  %v2880 = vunpack.c.l.b16 %v2416
  %v2881 = vunpack.c.l.b16 %v2417
  %v2882 = vunpack.c.h.b16 %v2417
  %v2883 = vunpack.c.l.b16 %v2418
  %v2884 = vunpack.c.h.b16 %v2418
  %v2885 = vunpack.c.l.b16 %v2419
  %v2886 = vunpack.c.h.b16 %v2419
  %v2887 = vunpack.c.l.b16 %v2420
  %v2888 = vunpack.c.l.b16 %v2421
  %v2889 = vunpack.c.h.b16 %v2421
  %v2890 = vunpack.c.l.b16 %v2422
  %v2891 = vunpack.c.h.b16 %v2422
  %v2892 = vunpack.c.l.b16 %v2423
  %v2893 = vunpack.c.h.b16 %v2423
  %v2894 = vunpack.c.l.b16 %v2424
  %v2895 = vunpack.c.l.b16 %v2425
  %v2896 = vunpack.c.h.b16 %v2425
  %v2897 = vunpack.c.l.b16 %v2426
  %v2898 = vunpack.c.h.b16 %v2426
  %v2899 = vunpack.c.l.b16 %v2427
  %v2900 = vunpack.c.h.b16 %v2427
  %v2901 = vunpack.c.l.b16 %v2428
  %v2902 = vunpack.c.l.b16 %v2429
  %v2903 = vunpack.c.h.b16 %v2429
  %v2904 = vunpack.c.l.b16 %v2430
  %v2905 = vunpack.c.h.b16 %v2430
  %v2906 = vunpack.c.l.b16 %v2431
  %v2907 = vunpack.c.h.b16 %v2431
  %v2908 = vunpack.c.l.b16 %v2432
  %v2909 = vunpack.c.l.b16 %v2433
  %v2910 = vunpack.c.h.b16 %v2433
  %v2911 = vunpack.c.l.b16 %v2434
  %v2912 = vunpack.c.h.b16 %v2434
  %v2913 = vunpack.c.l.b16 %v2435
  %v2914 = vunpack.c.h.b16 %v2435
  %v2915 = vunpack.c.l.b16 %v2436
  %v2916 = vunpack.c.l.b16 %v2437
  %v2917 = vunpack.c.h.b16 %v2437
  %v2918 = vunpack.c.l.b16 %v2438
  %v2919 = vunpack.c.h.b16 %v2438
  %v2920 = vunpack.c.l.b16 %v2439
  %v2921 = vunpack.c.h.b16 %v2439
  %v2922 = vunpack.c.l.b16 %v2440
  %v2923 = vunpack.c.l.b16 %v2441
  %v2924 = vunpack.c.h.b16 %v2441
  %v2925 = vunpack.c.l.b16 %v2442
  %v2926 = vunpack.c.h.b16 %v2442
  %v2927 = vunpack.c.l.b16 %v2443
  %v2928 = vunpack.c.h.b16 %v2443
  %v2929 = vunpack.c.l.b16 %v2444
  %v2930 = vunpack.c.l.b16 %v2445
  %v2931 = vunpack.c.h.b16 %v2445
  %v2932 = vunpack.c.l.b16 %v2446
  %v2933 = vunpack.c.h.b16 %v2446
  %v2934 = vunpack.c.l.b16 %v2447
  %v2935 = vunpack.c.h.b16 %v2447
  %v2936 = vunpack.c.l.b16 %v2448
  %v2937 = vunpack.c.l.b16 %v2449
  %v2938 = vunpack.c.h.b16 %v2449
  %v2939 = vunpack.c.l.b16 %v2450
  %v2940 = vunpack.c.h.b16 %v2450
  %v2941 = vunpack.c.l.b16 %v2451
  %v2942 = vunpack.c.h.b16 %v2451
  %v2943 = vunpack.c.l.b16 %v2452
  %v2944 = vunpack.c.l.b16 %v2453
  %v2945 = vunpack.c.h.b16 %v2453
  %v2946 = vunpack.c.l.b16 %v2454
  %v2947 = vunpack.c.h.b16 %v2454
  %v2948 = vunpack.c.l.b16 %v2455
  %v2949 = vunpack.c.h.b16 %v2455
  %v2950 = vunpack.c.l.b16 %v2456
  %v2951 = vunpack.c.l.b16 %v2457
  %v2952 = vunpack.c.h.b16 %v2457
  %v2953 = vunpack.c.l.b16 %v2458
  %v2954 = vunpack.c.h.b16 %v2458
  %v2955 = vunpack.c.l.b16 %v2459
  %v2956 = vunpack.c.h.b16 %v2459
  %v2957 = vunpack.c.l.b16 %v2460
  %v2958 = vunpack.c.l.b16 %v2461
  %v2959 = vunpack.c.h.b16 %v2461
  %v2960 = vunpack.c.l.b16 %v2462
  %v2961 = vunpack.c.h.b16 %v2462
  %v2962 = vunpack.c.l.b16 %v2463
  %v2963 = vunpack.c.h.b16 %v2463
  %v2964 = vunpack.c.l.b16 %v2464
  %v2965 = vunpack.c.l.b16 %v2465
  %v2966 = vunpack.c.h.b16 %v2465
  %v2967 = vunpack.c.l.b16 %v2466
  %v2968 = vunpack.c.h.b16 %v2466
  %v2969 = vunpack.c.l.b16 %v2467
  %v2970 = vunpack.c.h.b16 %v2467
  %v2971 = vunpack.c.l.b16 %v2468
  %v2972 = vunpack.c.l.b16 %v2469
  %v2973 = vunpack.c.h.b16 %v2469
  %v2974 = vunpack.c.l.b16 %v2470
  %v2975 = vunpack.c.h.b16 %v2470
  %v2976 = vunpack.c.l.b16 %v2471
  %v2977 = vunpack.c.h.b16 %v2471
  %v2978 = vunpack.c.l.b16 %v2472
  %v2979 = vunpack.c.l.b16 %v2473
  %v2980 = vunpack.c.h.b16 %v2473
  %v2981 = vunpack.c.l.b16 %v2474
  %v2982 = vunpack.c.h.b16 %v2474
  %v2983 = vunpack.c.l.b16 %v2475
  %v2984 = vunpack.c.h.b16 %v2475
  %v2985 = vunpack.c.l.b16 %v2476
  %v2986 = vunpack.c.l.b16 %v2477
  %v2987 = vunpack.c.h.b16 %v2477
  %v2988 = vunpack.c.l.b16 %v2478
  %v2989 = vunpack.c.h.b16 %v2478
  %v2990 = vunpack.c.l.b16 %v2479
  %v2991 = vunpack.c.h.b16 %v2479
  %v2992 = vunpack.c.l.b16 %v2480
  %v2993 = vunpack.c.l.b16 %v2481
  %v2994 = vunpack.c.h.b16 %v2481
  %v2995 = vunpack.c.l.b16 %v2482
  %v2996 = vunpack.c.h.b16 %v2482
  %v2997 = vunpack.c.l.b16 %v2483
  %v2998 = vunpack.c.h.b16 %v2483
  %v2999 = vunpack.c.l.b16 %v2484
  %v3000 = vunpack.c.l.b16 %v2485
  %v3001 = vunpack.c.h.b16 %v2485
  %v3002 = vunpack.c.l.b16 %v2486
  %v3003 = vunpack.c.h.b16 %v2486
  %v3004 = vunpack.c.l.b16 %v2487
  %v3005 = vunpack.c.h.b16 %v2487
  %v3006 = vunpack.c.l.b16 %v2488
  %v3007 = vunpack.c.l.b16 %v2489
  %v3008 = vunpack.c.h.b16 %v2489
  %v3009 = vunpack.c.l.b16 %v2490
  %v3010 = vunpack.c.h.b16 %v2490
  %v3011 = vunpack.c.l.b16 %v2491
  %v3012 = vunpack.c.h.b16 %v2491
  %v3013 = vunpack.c.l.b16 %v2492
  %v3014 = vunpack.c.l.b16 %v2493
  %v3015 = vunpack.c.h.b16 %v2493
  %v3016 = vunpack.c.l.b16 %v2494
  %v3017 = vunpack.c.h.b16 %v2494
  %v3018 = vunpack.c.l.b16 %v2495
  %v3019 = vunpack.c.h.b16 %v2495
  %v3020 = vunpack.c.l.b16 %v2496
  %v3021 = vunpack.c.l.b16 %v2497
  %v3022 = vunpack.c.h.b16 %v2497
  %v3023 = vunpack.c.l.b16 %v2498
  %v3024 = vunpack.c.h.b16 %v2498
  %v3025 = vunpack.c.l.b16 %v2499
  %v3026 = vunpack.c.h.b16 %v2499
  %v3027 = vunpack.c.l.b16 %v2500
  %v3028 = vunpack.c.l.b16 %v2501
  %v3029 = vunpack.c.h.b16 %v2501
  %v3030 = vunpack.c.l.b16 %v2502
  %v3031 = vunpack.c.h.b16 %v2502
  %v3032 = vunpack.c.l.b16 %v2503
  %v3033 = vunpack.c.h.b16 %v2503
  %v3034 = vunpack.c.l.b16 %v2504
  %v3035 = vunpack.c.l.b16 %v2505
  %v3036 = vunpack.c.h.b16 %v2505
  %v3037 = vunpack.c.l.b16 %v2506
  %v3038 = vunpack.c.h.b16 %v2506
  %v3039 = vunpack.c.l.b16 %v2507
  %v3040 = vunpack.c.h.b16 %v2507
  %v3041 = vunpack.c.l.b16 %v2508
  %v3042 = vunpack.c.l.b16 %v2509
  %v3043 = vunpack.c.h.b16 %v2509
  %v3044 = vunpack.c.l.b16 %v2510
  %v3045 = vunpack.c.h.b16 %v2510
  %v3046 = vunpack.c.l.b16 %v2511
  %v3047 = vunpack.c.h.b16 %v2511
  %v3048 = vunpack.c.l.b16 %v2512
  %v3049 = vunpack.c.l.b16 %v2513
  %v3050 = vunpack.c.h.b16 %v2513
  %v3051 = vunpack.c.l.b16 %v2514
  %v3052 = vunpack.c.h.b16 %v2514
  %v3053 = vunpack.c.l.b16 %v2515
  %v3054 = vunpack.c.h.b16 %v2515
  %v3055 = vunpack.c.l.b16 %v2516
  %v3056 = vunpack.c.l.b16 %v2517
  %v3057 = vunpack.c.h.b16 %v2517
  %v3058 = vunpack.c.l.b16 %v2518
  %v3059 = vunpack.c.h.b16 %v2518
  %v3060 = vunpack.c.l.b16 %v2519
  %v3061 = vunpack.c.h.b16 %v2519
  %v3062 = vunpack.c.l.b16 %v2520
  %v3063 = vunpack.c.l.b16 %v2521
  %v3064 = vunpack.c.h.b16 %v2521
  %v3065 = vunpack.c.l.b16 %v2522
  %v3066 = vunpack.c.h.b16 %v2522
  %v3067 = vunpack.c.l.b16 %v2523
  %v3068 = vunpack.c.h.b16 %v2523
  %v3069 = vunpack.c.l.b16 %v2524
  %v3070 = vunpack.c.l.b16 %v2525
  %v3071 = vunpack.c.h.b16 %v2525
  %v3072 = vunpack.c.l.b16 %v2526
  %v3073 = vunpack.c.h.b16 %v2526
  %v3074 = vunpack.c.l.b16 %v2527
  %v3075 = vunpack.c.h.b16 %v2527
  %v3076 = vunpack.c.l.b16 %v2528
  %v3077 = vunpack.c.l.b16 %v2529
  %v3078 = vunpack.c.h.b16 %v2529
  %v3079 = vunpack.c.l.b16 %v2530
  %v3080 = vunpack.c.h.b16 %v2530
  %v3081 = vunpack.c.l.b16 %v2531
  %v3082 = vunpack.c.h.b16 %v2531
  %v3083 = vunpack.c.l.b16 %v2532
  %v3084 = vunpack.c.l.b16 %v2533
  %v3085 = vunpack.c.h.b16 %v2533
  %v3086 = vunpack.c.l.b16 %v2534
  %v3087 = vunpack.c.h.b16 %v2534
  %v3088 = vunpack.c.l.b16 %v2535
  %v3089 = vunpack.c.h.b16 %v2535
  %v3090 = vunpack.c.l.b16 %v2536
  %v3091 = vunpack.c.l.b16 %v2537
  %v3092 = vunpack.c.h.b16 %v2537
  %v3093 = vunpack.c.l.b16 %v2538
  %v3094 = vunpack.c.h.b16 %v2538
  %v3095 = vunpack.c.l.b16 %v2539
  %v3096 = vunpack.c.h.b16 %v2539
  %v3097 = vunpack.c.l.b16 %v2540
  %v3098 = vunpack.c.l.b16 %v2541
  %v3099 = vunpack.c.h.b16 %v2541
  %v3100 = vunpack.c.l.b16 %v2542
  %v3101 = vunpack.c.h.b16 %v2542
  %v3102 = vunpack.c.l.b16 %v2543
  %v3103 = vunpack.c.h.b16 %v2543
  %v3104 = vunpack.c.l.b16 %v2544
  %v3105 = vunpack.c.l.b16 %v2545
  %v3106 = vunpack.c.h.b16 %v2545
  %v3107 = vunpack.c.l.b16 %v2546
  %v3108 = vunpack.c.h.b16 %v2546
  %v3109 = vunpack.c.l.b16 %v2547
  %v3110 = vunpack.c.h.b16 %v2547
  %v3111 = vunpack.c.l.b16 %v2548
  %v3112 = vunpack.c.l.b16 %v2549
  %v3113 = vunpack.c.h.b16 %v2549
  %v3114 = vunpack.c.l.b16 %v2550
  %v3115 = vunpack.c.h.b16 %v2550
  %v3116 = vunpack.c.l.b16 %v2551
  %v3117 = vunpack.c.h.b16 %v2551
  %v3118 = vunpack.c.l.b16 %v2552
  %v3119 = vpack.c.b16 %v2776, %v2769
  %v3120 = vpack.c.b16 %v2777, %v2770
  %v3121 = vpack.c.b16 %v2778, %v2771
  %v3122 = vpack.c.b16 %v2779, %v2772
  %v3123 = vpack.c.b16 %v2780, %v2773
  %v3124 = vpack.c.b16 %v2781, %v2774
  %v3125 = vpack.c.b16 %v2782, %v2775
  %v3126 = vpack.c.b16 %v2790, %v2783
  %v3127 = vpack.c.b16 %v2791, %v2784
  %v3128 = vpack.c.b16 %v2792, %v2785
  %v3129 = vpack.c.b16 %v2793, %v2786
  %v3130 = vpack.c.b16 %v2794, %v2787
  %v3131 = vpack.c.b16 %v2795, %v2788
  %v3132 = vpack.c.b16 %v2796, %v2789
  %v3133 = vpack.c.b16 %v2804, %v2797
  %v3134 = vpack.c.b16 %v2805, %v2798
  %v3135 = vpack.c.b16 %v2806, %v2799
  %v3136 = vpack.c.b16 %v2807, %v2800
  %v3137 = vpack.c.b16 %v2808, %v2801
  %v3138 = vpack.c.b16 %v2809, %v2802
  %v3139 = vpack.c.b16 %v2810, %v2803
  %v3140 = vpack.c.b16 %v2818, %v2811
  %v3141 = vpack.c.b16 %v2819, %v2812
  %v3142 = vpack.c.b16 %v2820, %v2813
  %v3143 = vpack.c.b16 %v2821, %v2814
  %v3144 = vpack.c.b16 %v2822, %v2815
  %v3145 = vpack.c.b16 %v2823, %v2816
  %v3146 = vpack.c.b16 %v2824, %v2817
  %v3147 = vpack.c.b16 %v2832, %v2825
  %v3148 = vpack.c.b16 %v2833, %v2826
  %v3149 = vpack.c.b16 %v2834, %v2827
  %v3150 = vpack.c.b16 %v2835, %v2828
  %v3151 = vpack.c.b16 %v2836, %v2829
  %v3152 = vpack.c.b16 %v2837, %v2830
  %v3153 = vpack.c.b16 %v2838, %v2831
  %v3154 = vpack.c.b16 %v2846, %v2839
  %v3155 = vpack.c.b16 %v2847, %v2840
  %v3156 = vpack.c.b16 %v2848, %v2841
  %v3157 = vpack.c.b16 %v2849, %v2842
  %v3158 = vpack.c.b16 %v2850, %v2843
  %v3159 = vpack.c.b16 %v2851, %v2844
  %v3160 = vpack.c.b16 %v2852, %v2845
  %v3161 = vpack.c.b16 %v2860, %v2853
  %v3162 = vpack.c.b16 %v2861, %v2854
  %v3163 = vpack.c.b16 %v2862, %v2855
  %v3164 = vpack.c.b16 %v2863, %v2856
  %v3165 = vpack.c.b16 %v2864, %v2857
  %v3166 = vpack.c.b16 %v2865, %v2858
  %v3167 = vpack.c.b16 %v2866, %v2859
  %v3168 = vpack.c.b16 %v2874, %v2867
  %v3169 = vpack.c.b16 %v2875, %v2868
  %v3170 = vpack.c.b16 %v2876, %v2869
  %v3171 = vpack.c.b16 %v2877, %v2870
  %v3172 = vpack.c.b16 %v2878, %v2871
  %v3173 = vpack.c.b16 %v2879, %v2872
  %v3174 = vpack.c.b16 %v2880, %v2873
  %v3175 = vpack.c.b16 %v2888, %v2881
  %v3176 = vpack.c.b16 %v2889, %v2882
  %v3177 = vpack.c.b16 %v2890, %v2883
  %v3178 = vpack.c.b16 %v2891, %v2884
  %v3179 = vpack.c.b16 %v2892, %v2885
  %v3180 = vpack.c.b16 %v2893, %v2886
  %v3181 = vpack.c.b16 %v2894, %v2887
  %v3182 = vpack.c.b16 %v2902, %v2895
  %v3183 = vpack.c.b16 %v2903, %v2896
  %v3184 = vpack.c.b16 %v2904, %v2897
  %v3185 = vpack.c.b16 %v2905, %v2898
  %v3186 = vpack.c.b16 %v2906, %v2899
  %v3187 = vpack.c.b16 %v2907, %v2900
  %v3188 = vpack.c.b16 %v2908, %v2901
  %v3189 = vpack.c.b16 %v2916, %v2909
  %v3190 = vpack.c.b16 %v2917, %v2910
  %v3191 = vpack.c.b16 %v2918, %v2911
  %v3192 = vpack.c.b16 %v2919, %v2912
  %v3193 = vpack.c.b16 %v2920, %v2913
  %v3194 = vpack.c.b16 %v2921, %v2914
  %v3195 = vpack.c.b16 %v2922, %v2915
  %v3196 = vpack.c.b16 %v2930, %v2923
  %v3197 = vpack.c.b16 %v2931, %v2924
  %v3198 = vpack.c.b16 %v2932, %v2925
  %v3199 = vpack.c.b16 %v2933, %v2926
  %v3200 = vpack.c.b16 %v2934, %v2927
  %v3201 = vpack.c.b16 %v2935, %v2928
  %v3202 = vpack.c.b16 %v2936, %v2929
  %v3203 = vpack.c.b16 %v2944, %v2937
  %v3204 = vpack.c.b16 %v2945, %v2938
  %v3205 = vpack.c.b16 %v2946, %v2939
  %v3206 = vpack.c.b16 %v2947, %v2940
  %v3207 = vpack.c.b16 %v2948, %v2941
  %v3208 = vpack.c.b16 %v2949, %v2942
  %v3209 = vpack.c.b16 %v2950, %v2943
  %v3210 = vpack.c.b16 %v2958, %v2951
  %v3211 = vpack.c.b16 %v2959, %v2952
  %v3212 = vpack.c.b16 %v2960, %v2953
  %v3213 = vpack.c.b16 %v2961, %v2954
  %v3214 = vpack.c.b16 %v2962, %v2955
  %v3215 = vpack.c.b16 %v2963, %v2956
  %v3216 = vpack.c.b16 %v2964, %v2957
  %v3217 = vpack.c.b16 %v2972, %v2965
  %v3218 = vpack.c.b16 %v2973, %v2966
  %v3219 = vpack.c.b16 %v2974, %v2967
  %v3220 = vpack.c.b16 %v2975, %v2968
  %v3221 = vpack.c.b16 %v2976, %v2969
  %v3222 = vpack.c.b16 %v2977, %v2970
  %v3223 = vpack.c.b16 %v2978, %v2971
  %v3224 = vpack.c.b16 %v2986, %v2979
  %v3225 = vpack.c.b16 %v2987, %v2980
  %v3226 = vpack.c.b16 %v2988, %v2981
  %v3227 = vpack.c.b16 %v2989, %v2982
  %v3228 = vpack.c.b16 %v2990, %v2983
  %v3229 = vpack.c.b16 %v2991, %v2984
  %v3230 = vpack.c.b16 %v2992, %v2985
  %v3231 = vpack.c.b16 %v3000, %v2993
  %v3232 = vpack.c.b16 %v3001, %v2994
  %v3233 = vpack.c.b16 %v3002, %v2995
  %v3234 = vpack.c.b16 %v3003, %v2996
  %v3235 = vpack.c.b16 %v3004, %v2997
  %v3236 = vpack.c.b16 %v3005, %v2998
  %v3237 = vpack.c.b16 %v3006, %v2999
  %v3238 = vpack.c.b16 %v3014, %v3007
  %v3239 = vpack.c.b16 %v3015, %v3008
  %v3240 = vpack.c.b16 %v3016, %v3009
  %v3241 = vpack.c.b16 %v3017, %v3010
  %v3242 = vpack.c.b16 %v3018, %v3011
  %v3243 = vpack.c.b16 %v3019, %v3012
  %v3244 = vpack.c.b16 %v3020, %v3013
  %v3245 = vpack.c.b16 %v3028, %v3021
  %v3246 = vpack.c.b16 %v3029, %v3022
  %v3247 = vpack.c.b16 %v3030, %v3023
  %v3248 = vpack.c.b16 %v3031, %v3024
  %v3249 = vpack.c.b16 %v3032, %v3025
  %v3250 = vpack.c.b16 %v3033, %v3026
  %v3251 = vpack.c.b16 %v3034, %v3027
  %v3252 = vpack.c.b16 %v3042, %v3035
  %v3253 = vpack.c.b16 %v3043, %v3036
  %v3254 = vpack.c.b16 %v3044, %v3037
  %v3255 = vpack.c.b16 %v3045, %v3038
  %v3256 = vpack.c.b16 %v3046, %v3039
  %v3257 = vpack.c.b16 %v3047, %v3040
  %v3258 = vpack.c.b16 %v3048, %v3041
  %v3259 = vpack.c.b16 %v3056, %v3049
  %v3260 = vpack.c.b16 %v3057, %v3050
  %v3261 = vpack.c.b16 %v3058, %v3051
  %v3262 = vpack.c.b16 %v3059, %v3052
  %v3263 = vpack.c.b16 %v3060, %v3053
  %v3264 = vpack.c.b16 %v3061, %v3054
  %v3265 = vpack.c.b16 %v3062, %v3055
  %v3266 = vpack.c.b16 %v3070, %v3063
  %v3267 = vpack.c.b16 %v3071, %v3064
  %v3268 = vpack.c.b16 %v3072, %v3065
  %v3269 = vpack.c.b16 %v3073, %v3066
  %v3270 = vpack.c.b16 %v3074, %v3067
  %v3271 = vpack.c.b16 %v3075, %v3068
  %v3272 = vpack.c.b16 %v3076, %v3069
  %v3273 = vpack.c.b16 %v3084, %v3077
  %v3274 = vpack.c.b16 %v3085, %v3078
  %v3275 = vpack.c.b16 %v3086, %v3079
  %v3276 = vpack.c.b16 %v3087, %v3080
  %v3277 = vpack.c.b16 %v3088, %v3081
  %v3278 = vpack.c.b16 %v3089, %v3082
  %v3279 = vpack.c.b16 %v3090, %v3083
  %v3280 = vpack.c.b16 %v3098, %v3091
  %v3281 = vpack.c.b16 %v3099, %v3092
  %v3282 = vpack.c.b16 %v3100, %v3093
  %v3283 = vpack.c.b16 %v3101, %v3094
  %v3284 = vpack.c.b16 %v3102, %v3095
  %v3285 = vpack.c.b16 %v3103, %v3096
  %v3286 = vpack.c.b16 %v3104, %v3097
  %v3287 = vpack.c.b16 %v3112, %v3105
  %v3288 = vpack.c.b16 %v3113, %v3106
  %v3289 = vpack.c.b16 %v3114, %v3107
  %v3290 = vpack.c.b16 %v3115, %v3108
  %v3291 = vpack.c.b16 %v3116, %v3109
  %v3292 = vpack.c.b16 %v3117, %v3110
  %v3293 = vpack.c.b16 %v3118, %v3111
  %v3470 = vsel %vm1264, %v2352, 0
  %3472 = vmatpush.bf16.msra.mxu0 %v3168
  %3473 = vmatpush.bf16.msra.mxu0 %v3161
  %3474 = vmatpush.bf16.msra.mxu0 %v3154
  %3475 = vmatpush.bf16.msra.mxu0 %v3147
  %3476 = vmatpush.bf16.msra.mxu0 %v3140
  %3477 = vmatpush.bf16.msra.mxu0 %v3133
  %3478 = vmatpush.bf16.msra.mxu0 %v3126
  %3479 = vmatpush.bf16.msra.mxu0 %v3119
  %3480 = vmatmul.bf16.gmra.mxu0 %v2349
  %v3481 = vpop.f32.mrf.mxu0
  %v3482 = vadd.f32 %v2555, %v3481
  %v3483 = vpop.f32.mrf.mxu0
  %3484 = vdwg.mxu0
  %3485 = vmatpush.bf16.msra.mxu0 %v3224
  %3486 = vmatpush.bf16.msra.mxu0 %v3217
  %3487 = vmatpush.bf16.msra.mxu0 %v3210
  %3488 = vmatpush.bf16.msra.mxu0 %v3203
  %3489 = vmatpush.bf16.msra.mxu0 %v3196
  %3490 = vmatpush.bf16.msra.mxu0 %v3189
  %3491 = vmatpush.bf16.msra.mxu0 %v3182
  %3492 = vmatpush.bf16.msra.mxu0 %v3175
  %3493 = vmatmul.bf16.gmra.mxu0 %v2350
  %v3494 = vpop.f32.mrf.mxu0
  %v3495 = vadd.f32 %v3482, %v3494
  %v3496 = vpop.f32.mrf.mxu0
  %3497 = vdwg.mxu0
  %3498 = vmatpush.bf16.msra.mxu0 %v3280
  %3499 = vmatpush.bf16.msra.mxu0 %v3273
  %3500 = vmatpush.bf16.msra.mxu0 %v3266
  %3501 = vmatpush.bf16.msra.mxu0 %v3259
  %3502 = vmatpush.bf16.msra.mxu0 %v3252
  %3503 = vmatpush.bf16.msra.mxu0 %v3245
  %3504 = vmatpush.bf16.msra.mxu0 %v3238
  %3505 = vmatpush.bf16.msra.mxu0 %v3231
  %3506 = vmatmul.bf16.gmra.mxu0 %v2351
  %v3507 = vpop.f32.mrf.mxu0
  %v3508 = vadd.f32 %v3495, %v3507
  %v3509 = vpop.f32.mrf.mxu0
  %3510 = vdwg.mxu0
  %3511 = vmatpush.bf16.msra.mxu0 0
  %3512 = vmatpush.bf16.msra.mxu0 0
  %3513 = vmatpush.bf16.msra.mxu0 0
  %3514 = vmatpush.bf16.msra.mxu0 0
  %3515 = vmatpush.bf16.msra.mxu0 0
  %3516 = vmatpush.bf16.msra.mxu0 0
  %3517 = vmatpush.bf16.msra.mxu0 0
  %3518 = vmatpush.bf16.msra.mxu0 %v3287
  %3519 = vmatmul.bf16.gmra.mxu0 %v3470
  %v3520 = vpop.f32.mrf.mxu0
  %v3521 = vadd.f32 %v3508, %v3520
  %v3522 = vpop.f32.mrf.mxu0
  %3523 = vdwg.mxu0
  %3524 = vmatpush.bf16.msra.mxu0 %v3169
  %3525 = vmatpush.bf16.msra.mxu0 %v3162
  %3526 = vmatpush.bf16.msra.mxu0 %v3155
  %3527 = vmatpush.bf16.msra.mxu0 %v3148
  %3528 = vmatpush.bf16.msra.mxu0 %v3141
  %3529 = vmatpush.bf16.msra.mxu0 %v3134
  %3530 = vmatpush.bf16.msra.mxu0 %v3127
  %3531 = vmatpush.bf16.msra.mxu0 %v3120
  %3532 = vmatmul.bf16.gmra.mxu0 %v2349
  %v3533 = vpop.f32.mrf.mxu0
  %v3534 = vadd.f32 %v2556, %v3533
  %v3535 = vpop.f32.mrf.mxu0
  %3536 = vdwg.mxu0
  %3537 = vmatpush.bf16.msra.mxu0 %v3225
  %3538 = vmatpush.bf16.msra.mxu0 %v3218
  %3539 = vmatpush.bf16.msra.mxu0 %v3211
  %3540 = vmatpush.bf16.msra.mxu0 %v3204
  %3541 = vmatpush.bf16.msra.mxu0 %v3197
  %3542 = vmatpush.bf16.msra.mxu0 %v3190
  %3543 = vmatpush.bf16.msra.mxu0 %v3183
  %3544 = vmatpush.bf16.msra.mxu0 %v3176
  %3545 = vmatmul.bf16.gmra.mxu0 %v2350
  %v3546 = vpop.f32.mrf.mxu0
  %v3547 = vadd.f32 %v3534, %v3546
  %v3548 = vpop.f32.mrf.mxu0
  %3549 = vdwg.mxu0
  %3550 = vmatpush.bf16.msra.mxu0 %v3281
  %3551 = vmatpush.bf16.msra.mxu0 %v3274
  %3552 = vmatpush.bf16.msra.mxu0 %v3267
  %3553 = vmatpush.bf16.msra.mxu0 %v3260
  %3554 = vmatpush.bf16.msra.mxu0 %v3253
  %3555 = vmatpush.bf16.msra.mxu0 %v3246
  %3556 = vmatpush.bf16.msra.mxu0 %v3239
  %3557 = vmatpush.bf16.msra.mxu0 %v3232
  %3558 = vmatmul.bf16.gmra.mxu0 %v2351
  %v3559 = vpop.f32.mrf.mxu0
  %v3560 = vadd.f32 %v3547, %v3559
  %v3561 = vpop.f32.mrf.mxu0
  %3562 = vdwg.mxu0
  %3563 = vmatpush.bf16.msra.mxu0 0
  %3564 = vmatpush.bf16.msra.mxu0 0
  %3565 = vmatpush.bf16.msra.mxu0 0
  %3566 = vmatpush.bf16.msra.mxu0 0
  %3567 = vmatpush.bf16.msra.mxu0 0
  %3568 = vmatpush.bf16.msra.mxu0 0
  %3569 = vmatpush.bf16.msra.mxu0 0
  %3570 = vmatpush.bf16.msra.mxu0 %v3288
  %3571 = vmatmul.bf16.gmra.mxu0 %v3470
  %v3572 = vpop.f32.mrf.mxu0
  %v3573 = vadd.f32 %v3560, %v3572
  %v3574 = vpop.f32.mrf.mxu0
  %3575 = vdwg.mxu0
  %3576 = vmatpush.bf16.msra.mxu0 %v3170
  %3577 = vmatpush.bf16.msra.mxu0 %v3163
  %3578 = vmatpush.bf16.msra.mxu0 %v3156
  %3579 = vmatpush.bf16.msra.mxu0 %v3149
  %3580 = vmatpush.bf16.msra.mxu0 %v3142
  %3581 = vmatpush.bf16.msra.mxu0 %v3135
  %3582 = vmatpush.bf16.msra.mxu0 %v3128
  %3583 = vmatpush.bf16.msra.mxu0 %v3121
  %3584 = vmatmul.bf16.gmra.mxu0 %v2349
  %v3585 = vpop.f32.mrf.mxu0
  %v3586 = vadd.f32 %v2557, %v3585
  %v3587 = vpop.f32.mrf.mxu0
  %3588 = vdwg.mxu0
  %3589 = vmatpush.bf16.msra.mxu0 %v3226
  %3590 = vmatpush.bf16.msra.mxu0 %v3219
  %3591 = vmatpush.bf16.msra.mxu0 %v3212
  %3592 = vmatpush.bf16.msra.mxu0 %v3205
  %3593 = vmatpush.bf16.msra.mxu0 %v3198
  %3594 = vmatpush.bf16.msra.mxu0 %v3191
  %3595 = vmatpush.bf16.msra.mxu0 %v3184
  %3596 = vmatpush.bf16.msra.mxu0 %v3177
  %3597 = vmatmul.bf16.gmra.mxu0 %v2350
  %v3598 = vpop.f32.mrf.mxu0
  %v3599 = vadd.f32 %v3586, %v3598
  %v3600 = vpop.f32.mrf.mxu0
  %3601 = vdwg.mxu0
  %3602 = vmatpush.bf16.msra.mxu0 %v3282
  %3603 = vmatpush.bf16.msra.mxu0 %v3275
  %3604 = vmatpush.bf16.msra.mxu0 %v3268
  %3605 = vmatpush.bf16.msra.mxu0 %v3261
  %3606 = vmatpush.bf16.msra.mxu0 %v3254
  %3607 = vmatpush.bf16.msra.mxu0 %v3247
  %3608 = vmatpush.bf16.msra.mxu0 %v3240
  %3609 = vmatpush.bf16.msra.mxu0 %v3233
  %3610 = vmatmul.bf16.gmra.mxu0 %v2351
  %v3611 = vpop.f32.mrf.mxu0
  %v3612 = vadd.f32 %v3599, %v3611
  %v3613 = vpop.f32.mrf.mxu0
  %3614 = vdwg.mxu0
  %3615 = vmatpush.bf16.msra.mxu0 0
  %3616 = vmatpush.bf16.msra.mxu0 0
  %3617 = vmatpush.bf16.msra.mxu0 0
  %3618 = vmatpush.bf16.msra.mxu0 0
  %3619 = vmatpush.bf16.msra.mxu0 0
  %3620 = vmatpush.bf16.msra.mxu0 0
  %3621 = vmatpush.bf16.msra.mxu0 0
  %3622 = vmatpush.bf16.msra.mxu0 %v3289
  %3623 = vmatmul.bf16.gmra.mxu0 %v3470
  %v3624 = vpop.f32.mrf.mxu0
  %v3625 = vadd.f32 %v3612, %v3624
  %v3626 = vpop.f32.mrf.mxu0
  %3627 = vdwg.mxu0
  %3628 = vmatpush.bf16.msra.mxu0 %v3171
  %3629 = vmatpush.bf16.msra.mxu0 %v3164
  %3630 = vmatpush.bf16.msra.mxu0 %v3157
  %3631 = vmatpush.bf16.msra.mxu0 %v3150
  %3632 = vmatpush.bf16.msra.mxu0 %v3143
  %3633 = vmatpush.bf16.msra.mxu0 %v3136
  %3634 = vmatpush.bf16.msra.mxu0 %v3129
  %3635 = vmatpush.bf16.msra.mxu0 %v3122
  %3636 = vmatmul.bf16.gmra.mxu0 %v2349
  %v3637 = vpop.f32.mrf.mxu0
  %v3638 = vadd.f32 %v2558, %v3637
  %v3639 = vpop.f32.mrf.mxu0
  %3640 = vdwg.mxu0
  %3641 = vmatpush.bf16.msra.mxu0 %v3227
  %3642 = vmatpush.bf16.msra.mxu0 %v3220
  %3643 = vmatpush.bf16.msra.mxu0 %v3213
  %3644 = vmatpush.bf16.msra.mxu0 %v3206
  %3645 = vmatpush.bf16.msra.mxu0 %v3199
  %3646 = vmatpush.bf16.msra.mxu0 %v3192
  %3647 = vmatpush.bf16.msra.mxu0 %v3185
  %3648 = vmatpush.bf16.msra.mxu0 %v3178
  %3649 = vmatmul.bf16.gmra.mxu0 %v2350
  %v3650 = vpop.f32.mrf.mxu0
  %v3651 = vadd.f32 %v3638, %v3650
  %v3652 = vpop.f32.mrf.mxu0
  %3653 = vdwg.mxu0
  %3654 = vmatpush.bf16.msra.mxu0 %v3283
  %3655 = vmatpush.bf16.msra.mxu0 %v3276
  %3656 = vmatpush.bf16.msra.mxu0 %v3269
  %3657 = vmatpush.bf16.msra.mxu0 %v3262
  %3658 = vmatpush.bf16.msra.mxu0 %v3255
  %3659 = vmatpush.bf16.msra.mxu0 %v3248
  %3660 = vmatpush.bf16.msra.mxu0 %v3241
  %3661 = vmatpush.bf16.msra.mxu0 %v3234
  %3662 = vmatmul.bf16.gmra.mxu0 %v2351
  %v3663 = vpop.f32.mrf.mxu0
  %v3664 = vadd.f32 %v3651, %v3663
  %v3665 = vpop.f32.mrf.mxu0
  %3666 = vdwg.mxu0
  %3667 = vmatpush.bf16.msra.mxu0 0
  %3668 = vmatpush.bf16.msra.mxu0 0
  %3669 = vmatpush.bf16.msra.mxu0 0
  %3670 = vmatpush.bf16.msra.mxu0 0
  %3671 = vmatpush.bf16.msra.mxu0 0
  %3672 = vmatpush.bf16.msra.mxu0 0
  %3673 = vmatpush.bf16.msra.mxu0 0
  %3674 = vmatpush.bf16.msra.mxu0 %v3290
  %3675 = vmatmul.bf16.gmra.mxu0 %v3470
  %v3676 = vpop.f32.mrf.mxu0
  %v3677 = vadd.f32 %v3664, %v3676
  %v3678 = vpop.f32.mrf.mxu0
  %3679 = vdwg.mxu0
  %3680 = vmatpush.bf16.msra.mxu0 %v3172
  %3681 = vmatpush.bf16.msra.mxu0 %v3165
  %3682 = vmatpush.bf16.msra.mxu0 %v3158
  %3683 = vmatpush.bf16.msra.mxu0 %v3151
  %3684 = vmatpush.bf16.msra.mxu0 %v3144
  %3685 = vmatpush.bf16.msra.mxu0 %v3137
  %3686 = vmatpush.bf16.msra.mxu0 %v3130
  %3687 = vmatpush.bf16.msra.mxu0 %v3123
  %3688 = vmatmul.bf16.gmra.mxu0 %v2349
  %v3689 = vpop.f32.mrf.mxu0
  %v3690 = vadd.f32 %v2559, %v3689
  %v3691 = vpop.f32.mrf.mxu0
  %3692 = vdwg.mxu0
  %3693 = vmatpush.bf16.msra.mxu0 %v3228
  %3694 = vmatpush.bf16.msra.mxu0 %v3221
  %3695 = vmatpush.bf16.msra.mxu0 %v3214
  %3696 = vmatpush.bf16.msra.mxu0 %v3207
  %3697 = vmatpush.bf16.msra.mxu0 %v3200
  %3698 = vmatpush.bf16.msra.mxu0 %v3193
  %3699 = vmatpush.bf16.msra.mxu0 %v3186
  %3700 = vmatpush.bf16.msra.mxu0 %v3179
  %3701 = vmatmul.bf16.gmra.mxu0 %v2350
  %v3702 = vpop.f32.mrf.mxu0
  %v3703 = vadd.f32 %v3690, %v3702
  %v3704 = vpop.f32.mrf.mxu0
  %3705 = vdwg.mxu0
  %3706 = vmatpush.bf16.msra.mxu0 %v3284
  %3707 = vmatpush.bf16.msra.mxu0 %v3277
  %3708 = vmatpush.bf16.msra.mxu0 %v3270
  %3709 = vmatpush.bf16.msra.mxu0 %v3263
  %3710 = vmatpush.bf16.msra.mxu0 %v3256
  %3711 = vmatpush.bf16.msra.mxu0 %v3249
  %3712 = vmatpush.bf16.msra.mxu0 %v3242
  %3713 = vmatpush.bf16.msra.mxu0 %v3235
  %3714 = vmatmul.bf16.gmra.mxu0 %v2351
  %v3715 = vpop.f32.mrf.mxu0
  %v3716 = vadd.f32 %v3703, %v3715
  %v3717 = vpop.f32.mrf.mxu0
  %3718 = vdwg.mxu0
  %3719 = vmatpush.bf16.msra.mxu0 0
  %3720 = vmatpush.bf16.msra.mxu0 0
  %3721 = vmatpush.bf16.msra.mxu0 0
  %3722 = vmatpush.bf16.msra.mxu0 0
  %3723 = vmatpush.bf16.msra.mxu0 0
  %3724 = vmatpush.bf16.msra.mxu0 0
  %3725 = vmatpush.bf16.msra.mxu0 0
  %3726 = vmatpush.bf16.msra.mxu0 %v3291
  %3727 = vmatmul.bf16.gmra.mxu0 %v3470
  %v3728 = vpop.f32.mrf.mxu0
  %v3729 = vadd.f32 %v3716, %v3728
  %v3730 = vpop.f32.mrf.mxu0
  %3731 = vdwg.mxu0
  %3732 = vmatpush.bf16.msra.mxu0 %v3173
  %3733 = vmatpush.bf16.msra.mxu0 %v3166
  %3734 = vmatpush.bf16.msra.mxu0 %v3159
  %3735 = vmatpush.bf16.msra.mxu0 %v3152
  %3736 = vmatpush.bf16.msra.mxu0 %v3145
  %3737 = vmatpush.bf16.msra.mxu0 %v3138
  %3738 = vmatpush.bf16.msra.mxu0 %v3131
  %3739 = vmatpush.bf16.msra.mxu0 %v3124
  %3740 = vmatmul.bf16.gmra.mxu0 %v2349
  %v3741 = vpop.f32.mrf.mxu0
  %v3742 = vadd.f32 %v2560, %v3741
  %v3743 = vpop.f32.mrf.mxu0
  %3744 = vdwg.mxu0
  %3745 = vmatpush.bf16.msra.mxu0 %v3229
  %3746 = vmatpush.bf16.msra.mxu0 %v3222
  %3747 = vmatpush.bf16.msra.mxu0 %v3215
  %3748 = vmatpush.bf16.msra.mxu0 %v3208
  %3749 = vmatpush.bf16.msra.mxu0 %v3201
  %3750 = vmatpush.bf16.msra.mxu0 %v3194
  %3751 = vmatpush.bf16.msra.mxu0 %v3187
  %3752 = vmatpush.bf16.msra.mxu0 %v3180
  %3753 = vmatmul.bf16.gmra.mxu0 %v2350
  %v3754 = vpop.f32.mrf.mxu0
  %v3755 = vadd.f32 %v3742, %v3754
  %v3756 = vpop.f32.mrf.mxu0
  %3757 = vdwg.mxu0
  %3758 = vmatpush.bf16.msra.mxu0 %v3285
  %3759 = vmatpush.bf16.msra.mxu0 %v3278
  %3760 = vmatpush.bf16.msra.mxu0 %v3271
  %3761 = vmatpush.bf16.msra.mxu0 %v3264
  %3762 = vmatpush.bf16.msra.mxu0 %v3257
  %3763 = vmatpush.bf16.msra.mxu0 %v3250
  %3764 = vmatpush.bf16.msra.mxu0 %v3243
  %3765 = vmatpush.bf16.msra.mxu0 %v3236
  %3766 = vmatmul.bf16.gmra.mxu0 %v2351
  %v3767 = vpop.f32.mrf.mxu0
  %v3768 = vadd.f32 %v3755, %v3767
  %v3769 = vpop.f32.mrf.mxu0
  %3770 = vdwg.mxu0
  %3771 = vmatpush.bf16.msra.mxu0 0
  %3772 = vmatpush.bf16.msra.mxu0 0
  %3773 = vmatpush.bf16.msra.mxu0 0
  %3774 = vmatpush.bf16.msra.mxu0 0
  %3775 = vmatpush.bf16.msra.mxu0 0
  %3776 = vmatpush.bf16.msra.mxu0 0
  %3777 = vmatpush.bf16.msra.mxu0 0
  %3778 = vmatpush.bf16.msra.mxu0 %v3292
  %3779 = vmatmul.bf16.gmra.mxu0 %v3470
  %v3780 = vpop.f32.mrf.mxu0
  %v3781 = vadd.f32 %v3768, %v3780
  %v3782 = vpop.f32.mrf.mxu0
  %3783 = vdwg.mxu0
  %3784 = vmatpush.bf16.msra.mxu0 %v3174
  %3785 = vmatpush.bf16.msra.mxu0 %v3167
  %3786 = vmatpush.bf16.msra.mxu0 %v3160
  %3787 = vmatpush.bf16.msra.mxu0 %v3153
  %3788 = vmatpush.bf16.msra.mxu0 %v3146
  %3789 = vmatpush.bf16.msra.mxu0 %v3139
  %3790 = vmatpush.bf16.msra.mxu0 %v3132
  %3791 = vmatpush.bf16.msra.mxu0 %v3125
  %3792 = vmatmul.bf16.gmra.mxu0 %v2349
  %v3793 = vpop.f32.mrf.mxu0
  %v3794 = vadd.f32 %v2561, %v3793
  %v3795 = vpop.f32.mrf.mxu0
  %3796 = vdwg.mxu0
  %3797 = vmatpush.bf16.msra.mxu0 %v3230
  %3798 = vmatpush.bf16.msra.mxu0 %v3223
  %3799 = vmatpush.bf16.msra.mxu0 %v3216
  %3800 = vmatpush.bf16.msra.mxu0 %v3209
  %3801 = vmatpush.bf16.msra.mxu0 %v3202
  %3802 = vmatpush.bf16.msra.mxu0 %v3195
  %3803 = vmatpush.bf16.msra.mxu0 %v3188
  %3804 = vmatpush.bf16.msra.mxu0 %v3181
  %3805 = vmatmul.bf16.gmra.mxu0 %v2350
  %v3806 = vpop.f32.mrf.mxu0
  %v3807 = vadd.f32 %v3794, %v3806
  %v3808 = vpop.f32.mrf.mxu0
  %3809 = vdwg.mxu0
  %3810 = vmatpush.bf16.msra.mxu0 %v3286
  %3811 = vmatpush.bf16.msra.mxu0 %v3279
  %3812 = vmatpush.bf16.msra.mxu0 %v3272
  %3813 = vmatpush.bf16.msra.mxu0 %v3265
  %3814 = vmatpush.bf16.msra.mxu0 %v3258
  %3815 = vmatpush.bf16.msra.mxu0 %v3251
  %3816 = vmatpush.bf16.msra.mxu0 %v3244
  %3817 = vmatpush.bf16.msra.mxu0 %v3237
  %3818 = vmatmul.bf16.gmra.mxu0 %v2351
  %v3819 = vpop.f32.mrf.mxu0
  %v3820 = vadd.f32 %v3807, %v3819
  %v3821 = vpop.f32.mrf.mxu0
  %3822 = vdwg.mxu0
  %3823 = vmatpush.bf16.msra.mxu0 0
  %3824 = vmatpush.bf16.msra.mxu0 0
  %3825 = vmatpush.bf16.msra.mxu0 0
  %3826 = vmatpush.bf16.msra.mxu0 0
  %3827 = vmatpush.bf16.msra.mxu0 0
  %3828 = vmatpush.bf16.msra.mxu0 0
  %3829 = vmatpush.bf16.msra.mxu0 0
  %3830 = vmatpush.bf16.msra.mxu0 %v3293
  %3831 = vmatmul.bf16.gmra.mxu0 %v3470
  %v3832 = vpop.f32.mrf.mxu0
  %v3833 = vadd.f32 %v3820, %v3832
  %v3834 = vpop.f32.mrf.mxu0
  %3835 = vdwg.mxu0
  %v3836 = vtanh.pop %v3521
  %v3837 = vtanh.pop %v3573
  %v3838 = vtanh.pop %v3625
  %v3839 = vtanh.pop %v3677
  %v3840 = vtanh.pop %v3729
  %v3841 = vtanh.pop %v3781
  %v3842 = vtanh.pop %v3833
  %3843 = vst [vmem:[%s14] sm:$0xff] %v3836
  %3844 = vst [vmem:[%s14 + $0x8] sm:$0xff] %v3837
  %3845 = vst [vmem:[%s14 + $0x10] sm:$0xff] %v3838
  %3846 = vst [vmem:[%s14 + $0x18] sm:$0xff] %v3839
  %3847 = vst [vmem:[%s14 + $0x20] sm:$0xff] %v3840
  %3848 = vst [vmem:[%s14 + $0x28] sm:$0xff] %v3841
  %3849 = vst.msk [vmem:[%s14 + $0x30] sm:$0xff] %vm1264, %v3842
  %3850 = vst [vmem:[%s15] sm:$0xff] %v2006
  %3851 = vst [vmem:[%s15 + $0x8] sm:$0xff] %v2019
  // Predicated region
  $region58: #{vae_forward.1} parent=0 // pred_check
    _
  $region59: #{vae_forward.1} parent=0 // pred_check_branch
    %3853 = sbr.rel (0) target = $region61
  $region60: #{vae_forward.1} parent=0 // pred_region
    _
  $region61: #{vae_forward.1} parent=0 // pred_fallthru
    _
  // Predicated region
  $region62: #{vae_forward.1} parent=0 // pred_check
    _
  $region63: #{vae_forward.1} parent=0 // pred_check_branch
    %3855 = sbr.rel (0) target = $region65
  $region64: #{vae_forward.1} parent=0 // pred_region
    _
  $region65: #{vae_forward.1} parent=0 // pred_fallthru
    _
  // Predicated region
  $region66: #{vae_forward.1} parent=0 // pred_check
    _
  $region67: #{vae_forward.1} parent=0 // pred_check_branch
    %3857 = sbr.rel (0) target = $region69
  $region68: #{vae_forward.1} parent=0 // pred_region
    _
  $region69: #{vae_forward.1} parent=0 // pred_fallthru
    _
  // Predicated region
  $region70: #{vae_forward.1} parent=0 // pred_check
    _
  $region71: #{vae_forward.1} parent=0 // pred_check_branch
    %3859 = sbr.rel (0) target = $region73
  $region72: #{vae_forward.1} parent=0 // pred_region
    _
  $region73: #{vae_forward.1} parent=0 // pred_fallthru
    _

</llo_original>
